<compile_context>
chip_gen: v7x
topology: tpu7x:2x2x1
jax: 0.10.0
libtpu: 0.0.40
codegen_flags: <defaults>
</compile_context>

<pallas_src>
import jax
import jax.numpy as jnp
from jax.experimental import pallas as pl
from jax.experimental.pallas import tpu as pltpu

EPS = 1e-5
SLOPE = 0.05

# Per output parity: padded-coordinate row/col offsets, ConvTranspose2d kernel
# taps and bilinear weights for the two contributing input rows/cols.
OFFS = ((0, 1), (1, 2))
KTAP = ((3, 1), (2, 0))
BWGT = ((0.25, 0.75), (0.75, 0.25))


# --------------------------------------------------------------------------
# In-kernel helper: unrolled 9-tap accumulation (no packed-lhs concat)
# --------------------------------------------------------------------------
def _deconv_taps(xt, w_ref):
    """xt: (TR+2, W+2, Cin) bf16 halo tile; w_ref: (9, Cin, 4*Cout) bf16 Ref.

    Returns the parity-packed result (TR*W, 4*Cout) in f32.  Tap order is
    t = 3*row_shift + col_shift, matching the packed weights.
    """
    trp2, wp2, cin = xt.shape
    tr, w = trp2 - 2, wp2 - 2
    c4 = w_ref.shape[-1]
    acc = jnp.zeros((tr * w, c4), jnp.float32)
    for c in range(3):
        xc = xt[:, c:c + w, :]                       # (TR+2, W, Cin)
        for s in range(3):
            lhs = xc[s:s + tr].reshape(tr * w, cin)  # (TR*W, Cin) bf16
            acc = acc + jnp.dot(lhs, w_ref[3 * s + c],
                                preferred_element_type=jnp.float32)
    return acc


# --------------------------------------------------------------------------
# Kernels
# --------------------------------------------------------------------------
def _stats_y_kernel(x_ref, w_ref, st_ref):
    """Per-tile sum / sum-of-squares of the deconv output (all 4 parities)."""
    y = _deconv_taps(x_ref[...], w_ref)
    st_ref[...] = jnp.concatenate(
        [jnp.sum(y, axis=0, keepdims=True),
         jnp.sum(y * y, axis=0, keepdims=True)], axis=0)[None]


def _stats_z_kernel(x_ref, w_ref, sc1_ref, sh1_ref, st_ref):
    """Per-tile stats of LeakyReLU(BN1(deconv(x)))."""
    y = _deconv_taps(x_ref[...], w_ref)
    z = y * sc1_ref[...] + sh1_ref[...]
    z = jnp.where(z >= 0.0, z, SLOPE * z)
    st_ref[...] = jnp.concatenate(
        [jnp.sum(z, axis=0, keepdims=True),
         jnp.sum(z * z, axis=0, keepdims=True)], axis=0)[None]


def _final_kernel(xz_ref, xe_ref, wdc_ref, wres_ref,
                  sc1_ref, sh1_ref, sc2_ref, sh2_ref, out_ref):
    """BN1 -> LeakyReLU -> BN2 plus bilinear+1x1 residual, parity-packed."""
    y = _deconv_taps(xz_ref[...], wdc_ref)
    z = y * sc1_ref[...] + sh1_ref[...]
    z = jnp.where(z >= 0.0, z, SLOPE * z)
    res = _deconv_taps(xe_ref[...], wres_ref)
    out_ref[...] = z * sc2_ref[...] + sh2_ref[...] + res


# --------------------------------------------------------------------------
# Tile sizing
# --------------------------------------------------------------------------
def _pick_tile_rows(N, H, W, cin, cout, budget_bytes, max_rows=None):
    """Largest divisor of H whose tile fits the VMEM budget, >=2 tiles if possible."""
    def tile_bytes(tr):
        in_t = (tr + 2) * (W + 2) * cin * 2           # bf16 halo tile
        out_t = tr * W * 4 * cout * 4                 # f32 output tile
        w_t = 9 * cin * 4 * cout * 2                  # bf16 packed weights
        # 2 double-buffered input streams + double-buffered output +
        # 2 double-buffered weight operands + in-kernel temporaries.
        return 4 * in_t + 2 * out_t + 4 * w_t + 3 * out_t + 2 * in_t

    divisors = [d for d in range(1, H + 1) if H % d == 0]
    if max_rows is not None:
        divisors = [d for d in divisors if d <= max_rows] or [1]
    min_tiles = 2 if N * H >= 2 else 1                # keep both v7x TCs busy
    cands = [d for d in divisors
             if tile_bytes(d) <= budget_bytes and N * (H // d) >= min_tiles]
    if not cands:
        cands = [d for d in divisors if N * (H // d) >= min_tiles] or divisors
        cands = [min(cands)]                          # smallest footprint fallback
    for align in (128, 8, 1):                         # prefer aligned MXU M dim
        pool = [d for d in cands if (d * W) % align == 0]
        if pool:
            return max(pool)
    return max(cands)


# --------------------------------------------------------------------------
# Wrapper
# --------------------------------------------------------------------------
def residual_deconv_block(x_nchw, params, *, max_tile_rows=None):
    """Pallas forward: (N, c_in, H, W) -> (N, c_out, 2H, 2W)."""
    N, Cin, H, W = x_nchw.shape
    wdc = params["w_dc_packed"]                       # (9, Cin, 4*Cout) bf16
    wres = params["w_res_packed"]
    C4 = wdc.shape[-1]
    Cout = C4 // 4

    # Wrapper relayout is done on the (small) bf16 input.
    x = jnp.transpose(x_nchw.astype(jnp.bfloat16), (0, 2, 3, 1))       # NHWC
    xz = jnp.pad(x, ((0, 0), (1, 1), (1, 1), (0, 0)))                  # zero pad (deconv)
    xe = jnp.pad(x, ((0, 0), (1, 1), (1, 1), (0, 0)), mode="edge")     # edge pad (bilinear)

    try:
        vmem_cap = int(pltpu.get_tpu_info().vmem_capacity_bytes)
    except Exception:
        vmem_cap = 64 * 1024 * 1024                   # v7x-safe fallback
    vmem_limit = min(int(vmem_cap * 0.7), 100 * 1024 * 1024)

    TR = _pick_tile_rows(N, H, W, Cin, Cout, vmem_limit // 2, max_tile_rows)
    TPI = H // TR                                     # tiles per image
    n_tiles = N * TPI
    grid = (n_tiles,)

    def halo_tiles(xp):
        # (N, H+2, W+2, Cin) -> (n_tiles, TR+2, W+2, Cin): each tile carries its
        # own 1-row halo (only 2 duplicated rows per tile).
        if TPI == 1:
            return xp.reshape(n_tiles, TR + 2, W + 2, Cin)
        t = jnp.stack([xp[:, i * TR:i * TR + TR + 2] for i in range(TPI)], axis=1)
        return t.reshape(n_tiles, TR + 2, W + 2, Cin)

    xzt = halo_tiles(xz)
    xet = halo_tiles(xe)

    in_spec = pl.BlockSpec((None, TR + 2, W + 2, Cin), lambda t: (t, 0, 0, 0))
    w_spec = pl.BlockSpec((9, Cin, C4), lambda t: (0, 0, 0))
    v_spec = pl.BlockSpec((1, C4), lambda t: (0, 0))
    st_spec = pl.BlockSpec((1, 2, C4), lambda t: (t, 0, 0))
    out_spec = pl.BlockSpec((None, TR * W, C4), lambda t: (t, 0, 0))
    cparams = pltpu.CompilerParams(dimension_semantics=("parallel",),
                                   vmem_limit_bytes=vmem_limit)
    stats_shape = jax.ShapeDtypeStruct((n_tiles, 2, C4), jnp.float32)
    cnt = jnp.float32(N * 2 * H * 2 * W)

    def finish_stats(stats, gamma, beta):
        s = jnp.sum(stats.reshape(n_tiles, 2, 4, Cout), axis=(0, 2))   # (2, Cout)
        mean = s[0] / cnt
        var = jnp.maximum(s[1] / cnt - mean * mean, 0.0)   # clamp cancellation
        scale = gamma * jax.lax.rsqrt(var + EPS)
        shift = beta - mean * scale
        return scale, shift

    def tile4(v):                        # per-Cout vector -> lane-packed (1, 4*Cout)
        return jnp.tile(v, 4).reshape(1, C4)

    # ---- pass 1: global BN1 statistics (per-tile partials, reduced here) ----
    stats_y = pl.pallas_call(
        _stats_y_kernel, grid=grid,
        in_specs=[in_spec, w_spec], out_specs=st_spec,
        out_shape=stats_shape, compiler_params=cparams,
    )(xzt, wdc)
    scale1, shift1 = finish_stats(stats_y, params["g1"], params["bt1"])
    sc1, sh1 = tile4(scale1), tile4(shift1)

    # ---- pass 2: global BN2 statistics of LeakyReLU(BN1(y)) ----
    stats_z = pl.pallas_call(
        _stats_z_kernel, grid=grid,
        in_specs=[in_spec, w_spec, v_spec, v_spec], out_specs=st_spec,
        out_shape=stats_shape, compiler_params=cparams,
    )(xzt, wdc, sc1, sh1)
    scale2, shift2 = finish_stats(stats_z, params["g2"], params["bt2"])
    shift2 = shift2 + params["b_rc"]                  # fold residual bias into BN2 shift
    sc2, sh2 = tile4(scale2), tile4(shift2)

    # ---- pass 3: normalize + activate + residual, parity-packed output ----
    out_t = pl.pallas_call(
        _final_kernel, grid=grid,
        in_specs=[in_spec, in_spec, w_spec, w_spec,
                  v_spec, v_spec, v_spec, v_spec],
        out_specs=out_spec,
        out_shape=jax.ShapeDtypeStruct((n_tiles, TR * W, C4), jnp.float32),
        compiler_params=cparams,
    )(xzt, xet, wdc, wres, sc1, sh1, sc2, sh2)

    # un-pack parities: rows ordered (n, h, w); lanes ordered (py, px, cout)
    out = out_t.reshape(N, H, W, 2, 2, Cout)
    out = jnp.transpose(out, (0, 5, 1, 3, 2, 4)).reshape(N, Cout, 2 * H, 2 * W)
    return out


# --------------------------------------------------------------------------
# Parameters
# --------------------------------------------------------------------------
def init_params(key, c_in, c_out, k_size=4):
    ks = jax.random.split(key, 8)
    w_dc_t = 0.1 * jax.random.normal(ks[0], (c_in, c_out, k_size, k_size), jnp.float32)
    b_dc = 0.05 * jax.random.normal(ks[1], (c_out,), jnp.float32)
    w_rc_t = 0.1 * jax.random.normal(ks[2], (c_out, c_in, 1, 1), jnp.float32)
    b_rc = 0.05 * jax.random.normal(ks[3], (c_out,), jnp.float32)
    g1 = 1.0 + 0.1 * jax.random.normal(ks[4], (c_out,), jnp.float32)
    bt1 = 0.1 * jax.random.normal(ks[5], (c_out,), jnp.float32)
    g2 = 1.0 + 0.1 * jax.random.normal(ks[6], (c_out,), jnp.float32)
    bt2 = 0.1 * jax.random.normal(ks[7], (c_out,), jnp.float32)

    # Packed rhs (9, Cin, 4*Cout): dim0 = tap (3*row_shift + col_shift),
    # lanes = (parity = 2*py + px, cout).  The deconv bias is dropped — it is
    # cancelled exactly by the training-mode BatchNorm that follows.
    w_rc = jnp.transpose(w_rc_t[:, :, 0, 0], (1, 0))          # (Cin, Cout)
    wdc = jnp.zeros((9, c_in, 4 * c_out), jnp.float32)
    wres = jnp.zeros((9, c_in, 4 * c_out), jnp.float32)
    for py in range(2):
        for px in range(2):
            p = 2 * py + px
            for dy in range(2):
                for dx in range(2):
                    t = 3 * OFFS[py][dy] + OFFS[px][dx]
                    kh, kw = KTAP[py][dy], KTAP[px][dx]
                    wdc = wdc.at[t, :, p * c_out:(p + 1) * c_out].set(
                        w_dc_t[:, :, kh, kw])
                    wres = wres.at[t, :, p * c_out:(p + 1) * c_out].set(
                        (BWGT[py][dy] * BWGT[px][dx]) * w_rc)

    return dict(
        torch=dict(w_dc=w_dc_t, b_dc=b_dc, w_rc=w_rc_t, b_rc=b_rc,
                   g1=g1, bt1=bt1, g2=g2, bt2=bt2),
        w_dc_packed=wdc.astype(jnp.bfloat16),
        w_res_packed=wres.astype(jnp.bfloat16),
        b_rc=b_rc, g1=g1, bt1=bt1, g2=g2, bt2=bt2,
    )


# --------------------------------------------------------------------------
# Pure-JAX reference matching the PyTorch forward (training-mode BN, f32)
# --------------------------------------------------------------------------
def reference_forward(x, p):
    w_dc = p["torch"]["w_dc"]                                       # (Cin, Cout, 4, 4)
    w = jnp.flip(jnp.transpose(w_dc, (1, 0, 2, 3)), axis=(2, 3))    # OIHW, flipped
    y = jax.lax.conv_general_dilated(
        x, w, window_strides=(1, 1), padding=[(2, 2), (2, 2)],
        lhs_dilation=(2, 2), dimension_numbers=("NCHW", "OIHW", "NCHW"),
        precision=jax.lax.Precision.HIGHEST)
    y = y + p["torch"]["b_dc"][None, :, None, None]

    def bn(z, g, b):
        m = jnp.mean(z, axis=(0, 2, 3), keepdims=True)
        v = jnp.mean((z - m) ** 2, axis=(0, 2, 3), keepdims=True)
        return g[None, :, None, None] * (z - m) / jnp.sqrt(v + EPS) + b[None, :, None, None]

    y = bn(y, p["torch"]["g1"], p["torch"]["bt1"])
    y = jnp.where(y >= 0, y, SLOPE * y)
    y = bn(y, p["torch"]["g2"], p["torch"]["bt2"])

    N, C, H, W = x.shape
    up = jax.image.resize(x, (N, C, 2 * H, 2 * W), method="bilinear")
    w_rc = p["torch"]["w_rc"][:, :, 0, 0]                           # (Cout, Cin)
    res = jnp.einsum("nchw,dc->ndhw", up, w_rc, precision=jax.lax.Precision.HIGHEST)
    res = res + p["torch"]["b_rc"][None, :, None, None]
    return y + res


if __name__ == "__main__":
    key = jax.random.PRNGKey(0)
    kx, kp = jax.random.split(key)
    N, C_IN, C_OUT, H, W = 2, 4, 8, 16, 16

    x = jax.random.normal(kx, (N, C_IN, H, W), jnp.float32)
    params = init_params(kp, C_IN, C_OUT)

    # Small demo shapes: cap tile rows so the grid has several steps (the
    # production default lets the VMEM budget pick much larger tiles).
    fwd = jax.jit(residual_deconv_block, static_argnames=("max_tile_rows",))
    out = jax.block_until_ready(fwd(x, params, max_tile_rows=4))

    ref = reference_forward(x, params)
    assert out.shape == (N, C_OUT, 2 * H, 2 * W)
    err = float(jnp.max(jnp.abs(out - ref)))
    # bf16 matmul operands (f32 accumulation) -> looser tolerance than pure f32.
    assert err < 5e-2, f"max abs err {err}"
    print("KERNEL_OK")
</pallas_src>

<mosaic_0001>
module attributes {stable_mosaic.version = 11 : i64} {
  func.func @_stats_y_kernel(%arg0: i32, %arg1: memref<1x6x18x4xbf16, #tpu.memory_space<vmem>>, %arg2: memref<9x4x32xbf16, #tpu.memory_space<vmem>>, %arg3: memref<1x2x32xf32, #tpu.memory_space<vmem>>) attributes {dimension_semantics = [#tpu.dimension_semantics<parallel>], iteration_bounds = array<i64: 8>, scalar_prefetch = 0 : i64, scratch_operands = 0 : i64, tpu.core_type = #tpu.core_type<tc>, window_params = [{transform_indices = @transform_0, window_bounds = array<i64: 1, 6, 18, 4>}, {pipeline_mode = #tpu.pipeline_mode<synchronous>, transform_indices = @transform_1, window_bounds = array<i64: 9, 4, 32>}, {transform_indices = @transform_2, window_bounds = array<i64: 1, 2, 32>}]} {
    %c0 = arith.constant 0 : index
    %c0_0 = arith.constant 0 : index
    %c0_1 = arith.constant 0 : index
    %c0_2 = arith.constant 0 : index
    %0 = vector.load %arg1[%c0, %c0_0, %c0_1, %c0_2] : memref<1x6x18x4xbf16, #tpu.memory_space<vmem>>, vector<1x6x18x4xbf16>
    %1 = vector.shape_cast %0 : vector<1x6x18x4xbf16> to vector<6x18x4xbf16>
    %cst = arith.constant 0.000000e+00 : f32
    %2 = vector.broadcast %cst : f32 to vector<64x32xf32>
    %3 = vector.extract_strided_slice %1 {offsets = [0, 0, 0], sizes = [6, 16, 4], strides = [1, 1, 1]} : vector<6x18x4xbf16> to vector<6x16x4xbf16>
    %4 = vector.extract_strided_slice %3 {offsets = [0, 0, 0], sizes = [4, 16, 4], strides = [1, 1, 1]} : vector<6x16x4xbf16> to vector<4x16x4xbf16>
    %5 = vector.shape_cast %4 : vector<4x16x4xbf16> to vector<64x4xbf16>
    %c0_3 = arith.constant 0 : index
    %c0_4 = arith.constant 0 : index
    %c0_5 = arith.constant 0 : index
    %6 = vector.load %arg2[%c0_3, %c0_4, %c0_5] : memref<9x4x32xbf16, #tpu.memory_space<vmem>>, vector<1x4x32xbf16>
    %7 = vector.shape_cast %6 : vector<1x4x32xbf16> to vector<4x32xbf16>
    %cst_6 = arith.constant dense<0.000000e+00> : vector<64x32xf32>
    %8 = tpu.matmul %5, %7, %cst_6 {dimension_numbers = #tpu.dot_dimension_numbers<[1], [0], [0], [1], [0, 0, 1, 1], [], []>} : vector<64x4xbf16>, vector<4x32xbf16>, vector<64x32xf32> -> vector<64x32xf32>
    %9 = arith.addf %2, %8 : vector<64x32xf32>
    %10 = vector.extract_strided_slice %3 {offsets = [1, 0, 0], sizes = [4, 16, 4], strides = [1, 1, 1]} : vector<6x16x4xbf16> to vector<4x16x4xbf16>
    %11 = vector.shape_cast %10 : vector<4x16x4xbf16> to vector<64x4xbf16>
    %c3 = arith.constant 3 : index
    %c0_7 = arith.constant 0 : index
    %c0_8 = arith.constant 0 : index
    %12 = vector.load %arg2[%c3, %c0_7, %c0_8] : memref<9x4x32xbf16, #tpu.memory_space<vmem>>, vector<1x4x32xbf16>
    %13 = vector.shape_cast %12 : vector<1x4x32xbf16> to vector<4x32xbf16>
    %cst_9 = arith.constant dense<0.000000e+00> : vector<64x32xf32>
    %14 = tpu.matmul %11, %13, %cst_9 {dimension_numbers = #tpu.dot_dimension_numbers<[1], [0], [0], [1], [0, 0, 1, 1], [], []>} : vector<64x4xbf16>, vector<4x32xbf16>, vector<64x32xf32> -> vector<64x32xf32>
    %15 = arith.addf %9, %14 : vector<64x32xf32>
    %16 = vector.extract_strided_slice %3 {offsets = [2, 0, 0], sizes = [4, 16, 4], strides = [1, 1, 1]} : vector<6x16x4xbf16> to vector<4x16x4xbf16>
    %17 = vector.shape_cast %16 : vector<4x16x4xbf16> to vector<64x4xbf16>
    %c6 = arith.constant 6 : index
    %c0_10 = arith.constant 0 : index
    %c0_11 = arith.constant 0 : index
    %18 = vector.load %arg2[%c6, %c0_10, %c0_11] : memref<9x4x32xbf16, #tpu.memory_space<vmem>>, vector<1x4x32xbf16>
    %19 = vector.shape_cast %18 : vector<1x4x32xbf16> to vector<4x32xbf16>
    %cst_12 = arith.constant dense<0.000000e+00> : vector<64x32xf32>
    %20 = tpu.matmul %17, %19, %cst_12 {dimension_numbers = #tpu.dot_dimension_numbers<[1], [0], [0], [1], [0, 0, 1, 1], [], []>} : vector<64x4xbf16>, vector<4x32xbf16>, vector<64x32xf32> -> vector<64x32xf32>
    %21 = arith.addf %15, %20 : vector<64x32xf32>
    %22 = vector.extract_strided_slice %1 {offsets = [0, 1, 0], sizes = [6, 16, 4], strides = [1, 1, 1]} : vector<6x18x4xbf16> to vector<6x16x4xbf16>
    %23 = vector.extract_strided_slice %22 {offsets = [0, 0, 0], sizes = [4, 16, 4], strides = [1, 1, 1]} : vector<6x16x4xbf16> to vector<4x16x4xbf16>
    %24 = vector.shape_cast %23 : vector<4x16x4xbf16> to vector<64x4xbf16>
    %c1 = arith.constant 1 : index
    %c0_13 = arith.constant 0 : index
    %c0_14 = arith.constant 0 : index
    %25 = vector.load %arg2[%c1, %c0_13, %c0_14] : memref<9x4x32xbf16, #tpu.memory_space<vmem>>, vector<1x4x32xbf16>
    %26 = vector.shape_cast %25 : vector<1x4x32xbf16> to vector<4x32xbf16>
    %cst_15 = arith.constant dense<0.000000e+00> : vector<64x32xf32>
    %27 = tpu.matmul %24, %26, %cst_15 {dimension_numbers = #tpu.dot_dimension_numbers<[1], [0], [0], [1], [0, 0, 1, 1], [], []>} : vector<64x4xbf16>, vector<4x32xbf16>, vector<64x32xf32> -> vector<64x32xf32>
    %28 = arith.addf %21, %27 : vector<64x32xf32>
    %29 = vector.extract_strided_slice %22 {offsets = [1, 0, 0], sizes = [4, 16, 4], strides = [1, 1, 1]} : vector<6x16x4xbf16> to vector<4x16x4xbf16>
    %30 = vector.shape_cast %29 : vector<4x16x4xbf16> to vector<64x4xbf16>
    %c4 = arith.constant 4 : index
    %c0_16 = arith.constant 0 : index
    %c0_17 = arith.constant 0 : index
    %31 = vector.load %arg2[%c4, %c0_16, %c0_17] : memref<9x4x32xbf16, #tpu.memory_space<vmem>>, vector<1x4x32xbf16>
    %32 = vector.shape_cast %31 : vector<1x4x32xbf16> to vector<4x32xbf16>
    %cst_18 = arith.constant dense<0.000000e+00> : vector<64x32xf32>
    %33 = tpu.matmul %30, %32, %cst_18 {dimension_numbers = #tpu.dot_dimension_numbers<[1], [0], [0], [1], [0, 0, 1, 1], [], []>} : vector<64x4xbf16>, vector<4x32xbf16>, vector<64x32xf32> -> vector<64x32xf32>
    %34 = arith.addf %28, %33 : vector<64x32xf32>
    %35 = vector.extract_strided_slice %22 {offsets = [2, 0, 0], sizes = [4, 16, 4], strides = [1, 1, 1]} : vector<6x16x4xbf16> to vector<4x16x4xbf16>
    %36 = vector.shape_cast %35 : vector<4x16x4xbf16> to vector<64x4xbf16>
    %c7 = arith.constant 7 : index
    %c0_19 = arith.constant 0 : index
    %c0_20 = arith.constant 0 : index
    %37 = vector.load %arg2[%c7, %c0_19, %c0_20] : memref<9x4x32xbf16, #tpu.memory_space<vmem>>, vector<1x4x32xbf16>
    %38 = vector.shape_cast %37 : vector<1x4x32xbf16> to vector<4x32xbf16>
    %cst_21 = arith.constant dense<0.000000e+00> : vector<64x32xf32>
    %39 = tpu.matmul %36, %38, %cst_21 {dimension_numbers = #tpu.dot_dimension_numbers<[1], [0], [0], [1], [0, 0, 1, 1], [], []>} : vector<64x4xbf16>, vector<4x32xbf16>, vector<64x32xf32> -> vector<64x32xf32>
    %40 = arith.addf %34, %39 : vector<64x32xf32>
    %41 = vector.extract_strided_slice %1 {offsets = [0, 2, 0], sizes = [6, 16, 4], strides = [1, 1, 1]} : vector<6x18x4xbf16> to vector<6x16x4xbf16>
    %42 = vector.extract_strided_slice %41 {offsets = [0, 0, 0], sizes = [4, 16, 4], strides = [1, 1, 1]} : vector<6x16x4xbf16> to vector<4x16x4xbf16>
    %43 = vector.shape_cast %42 : vector<4x16x4xbf16> to vector<64x4xbf16>
    %c2 = arith.constant 2 : index
    %c0_22 = arith.constant 0 : index
    %c0_23 = arith.constant 0 : index
    %44 = vector.load %arg2[%c2, %c0_22, %c0_23] : memref<9x4x32xbf16, #tpu.memory_space<vmem>>, vector<1x4x32xbf16>
    %45 = vector.shape_cast %44 : vector<1x4x32xbf16> to vector<4x32xbf16>
    %cst_24 = arith.constant dense<0.000000e+00> : vector<64x32xf32>
    %46 = tpu.matmul %43, %45, %cst_24 {dimension_numbers = #tpu.dot_dimension_numbers<[1], [0], [0], [1], [0, 0, 1, 1], [], []>} : vector<64x4xbf16>, vector<4x32xbf16>, vector<64x32xf32> -> vector<64x32xf32>
    %47 = arith.addf %40, %46 : vector<64x32xf32>
    %48 = vector.extract_strided_slice %41 {offsets = [1, 0, 0], sizes = [4, 16, 4], strides = [1, 1, 1]} : vector<6x16x4xbf16> to vector<4x16x4xbf16>
    %49 = vector.shape_cast %48 : vector<4x16x4xbf16> to vector<64x4xbf16>
    %c5 = arith.constant 5 : index
    %c0_25 = arith.constant 0 : index
    %c0_26 = arith.constant 0 : index
    %50 = vector.load %arg2[%c5, %c0_25, %c0_26] : memref<9x4x32xbf16, #tpu.memory_space<vmem>>, vector<1x4x32xbf16>
    %51 = vector.shape_cast %50 : vector<1x4x32xbf16> to vector<4x32xbf16>
    %cst_27 = arith.constant dense<0.000000e+00> : vector<64x32xf32>
    %52 = tpu.matmul %49, %51, %cst_27 {dimension_numbers = #tpu.dot_dimension_numbers<[1], [0], [0], [1], [0, 0, 1, 1], [], []>} : vector<64x4xbf16>, vector<4x32xbf16>, vector<64x32xf32> -> vector<64x32xf32>
    %53 = arith.addf %47, %52 : vector<64x32xf32>
    %54 = vector.extract_strided_slice %41 {offsets = [2, 0, 0], sizes = [4, 16, 4], strides = [1, 1, 1]} : vector<6x16x4xbf16> to vector<4x16x4xbf16>
    %55 = vector.shape_cast %54 : vector<4x16x4xbf16> to vector<64x4xbf16>
    %c8 = arith.constant 8 : index
    %c0_28 = arith.constant 0 : index
    %c0_29 = arith.constant 0 : index
    %56 = vector.load %arg2[%c8, %c0_28, %c0_29] : memref<9x4x32xbf16, #tpu.memory_space<vmem>>, vector<1x4x32xbf16>
    %57 = vector.shape_cast %56 : vector<1x4x32xbf16> to vector<4x32xbf16>
    %cst_30 = arith.constant dense<0.000000e+00> : vector<64x32xf32>
    %58 = tpu.matmul %55, %57, %cst_30 {dimension_numbers = #tpu.dot_dimension_numbers<[1], [0], [0], [1], [0, 0, 1, 1], [], []>} : vector<64x4xbf16>, vector<4x32xbf16>, vector<64x32xf32> -> vector<64x32xf32>
    %59 = arith.addf %53, %58 : vector<64x32xf32>
    %cst_31 = arith.constant dense<0.000000e+00> : vector<32xf32>
    %60 = vector.multi_reduction <add>, %59, %cst_31 [0] : vector<64x32xf32> to vector<32xf32>
    %61 = vector.shape_cast %60 : vector<32xf32> to vector<1x32xf32>
    %62 = arith.mulf %59, %59 : vector<64x32xf32>
    %cst_32 = arith.constant dense<0.000000e+00> : vector<32xf32>
    %63 = vector.multi_reduction <add>, %62, %cst_32 [0] : vector<64x32xf32> to vector<32xf32>
    %64 = vector.shape_cast %63 : vector<32xf32> to vector<1x32xf32>
    %65 = tpu.concatenate %61, %64 in 0 : vector<1x32xf32>, vector<1x32xf32> -> vector<2x32xf32>
    %66 = vector.shape_cast %65 : vector<2x32xf32> to vector<1x2x32xf32>
    %c0_33 = arith.constant 0 : index
    %c0_34 = arith.constant 0 : index
    %c0_35 = arith.constant 0 : index
    %67 = vector.load %arg3[%c0_33, %c0_34, %c0_35] : memref<1x2x32xf32, #tpu.memory_space<vmem>>, vector<1x2x32xf32>
    tpu.vector_store %arg3[%c0_33, %c0_34, %c0_35], %66 {strides = array<i32>} : memref<1x2x32xf32, #tpu.memory_space<vmem>>, vector<1x2x32xf32>,
    return
  }
  func.func @transform_0(%arg0: i32) -> (i32, i32, i32, i32) {
    %c0_i32 = arith.constant 0 : i32
    %c0_i32_0 = arith.constant 0 : i32
    %c0_i32_1 = arith.constant 0 : i32
    %c0_i32_2 = arith.constant 0 : i32
    return %arg0, %c0_i32, %c0_i32_0, %c0_i32_1 : i32, i32, i32, i32
  }
  func.func @transform_1(%arg0: i32) -> (i32, i32, i32) {
    %c0_i32 = arith.constant 0 : i32
    %c0_i32_0 = arith.constant 0 : i32
    %c0_i32_1 = arith.constant 0 : i32
    %c0_i32_2 = arith.constant 0 : i32
    return %c0_i32, %c0_i32_0, %c0_i32_1 : i32, i32, i32
  }
  func.func @transform_2(%arg0: i32) -> (i32, i32, i32) {
    %c0_i32 = arith.constant 0 : i32
    %c0_i32_0 = arith.constant 0 : i32
    %c0_i32_1 = arith.constant 0 : i32
    return %arg0, %c0_i32, %c0_i32_0 : i32, i32, i32
  }
}

module attributes {stable_mosaic.version = 11 : i64} {
  func.func @_final_kernel(%arg0: i32, %arg1: memref<1x6x18x4xbf16, #tpu.memory_space<vmem>>, %arg2: memref<1x6x18x4xbf16, #tpu.memory_space<vmem>>, %arg3: memref<9x4x32xbf16, #tpu.memory_space<vmem>>, %arg4: memref<9x4x32xbf16, #tpu.memory_space<vmem>>, %arg5: memref<1x32xf32, #tpu.memory_space<vmem>>, %arg6: memref<1x32xf32, #tpu.memory_space<vmem>>, %arg7: memref<1x32xf32, #tpu.memory_space<vmem>>, %arg8: memref<1x32xf32, #tpu.memory_space<vmem>>, %arg9: memref<1x64x32xf32, #tpu.memory_space<vmem>>) attributes {dimension_semantics = [#tpu.dimension_semantics<parallel>], iteration_bounds = array<i64: 8>, scalar_prefetch = 0 : i64, scratch_operands = 0 : i64, tpu.core_type = #tpu.core_type<tc>, window_params = [{transform_indices = @transform_0, window_bounds = array<i64: 1, 6, 18, 4>}, {transform_indices = @transform_1, window_bounds = array<i64: 1, 6, 18, 4>}, {pipeline_mode = #tpu.pipeline_mode<synchronous>, transform_indices = @transform_2, window_bounds = array<i64: 9, 4, 32>}, {pipeline_mode = #tpu.pipeline_mode<synchronous>, transform_indices = @transform_3, window_bounds = array<i64: 9, 4, 32>}, {pipeline_mode = #tpu.pipeline_mode<synchronous>, transform_indices = @transform_4, window_bounds = array<i64: 1, 32>}, {pipeline_mode = #tpu.pipeline_mode<synchronous>, transform_indices = @transform_5, window_bounds = array<i64: 1, 32>}, {pipeline_mode = #tpu.pipeline_mode<synchronous>, transform_indices = @transform_6, window_bounds = array<i64: 1, 32>}, {pipeline_mode = #tpu.pipeline_mode<synchronous>, transform_indices = @transform_7, window_bounds = array<i64: 1, 32>}, {transform_indices = @transform_8, window_bounds = array<i64: 1, 64, 32>}]} {
    %c0 = arith.constant 0 : index
    %c0_0 = arith.constant 0 : index
    %c0_1 = arith.constant 0 : index
    %c0_2 = arith.constant 0 : index
    %0 = vector.load %arg1[%c0, %c0_0, %c0_1, %c0_2] : memref<1x6x18x4xbf16, #tpu.memory_space<vmem>>, vector<1x6x18x4xbf16>
    %1 = vector.shape_cast %0 : vector<1x6x18x4xbf16> to vector<6x18x4xbf16>
    %cst = arith.constant 0.000000e+00 : f32
    %2 = vector.broadcast %cst : f32 to vector<64x32xf32>
    %3 = vector.extract_strided_slice %1 {offsets = [0, 0, 0], sizes = [6, 16, 4], strides = [1, 1, 1]} : vector<6x18x4xbf16> to vector<6x16x4xbf16>
    %4 = vector.extract_strided_slice %3 {offsets = [0, 0, 0], sizes = [4, 16, 4], strides = [1, 1, 1]} : vector<6x16x4xbf16> to vector<4x16x4xbf16>
    %5 = vector.shape_cast %4 : vector<4x16x4xbf16> to vector<64x4xbf16>
    %c0_3 = arith.constant 0 : index
    %c0_4 = arith.constant 0 : index
    %c0_5 = arith.constant 0 : index
    %6 = vector.load %arg3[%c0_3, %c0_4, %c0_5] : memref<9x4x32xbf16, #tpu.memory_space<vmem>>, vector<1x4x32xbf16>
    %7 = vector.shape_cast %6 : vector<1x4x32xbf16> to vector<4x32xbf16>
    %cst_6 = arith.constant dense<0.000000e+00> : vector<64x32xf32>
    %8 = tpu.matmul %5, %7, %cst_6 {dimension_numbers = #tpu.dot_dimension_numbers<[1], [0], [0], [1], [0, 0, 1, 1], [], []>} : vector<64x4xbf16>, vector<4x32xbf16>, vector<64x32xf32> -> vector<64x32xf32>
    %9 = arith.addf %2, %8 : vector<64x32xf32>
    %10 = vector.extract_strided_slice %3 {offsets = [1, 0, 0], sizes = [4, 16, 4], strides = [1, 1, 1]} : vector<6x16x4xbf16> to vector<4x16x4xbf16>
    %11 = vector.shape_cast %10 : vector<4x16x4xbf16> to vector<64x4xbf16>
    %c3 = arith.constant 3 : index
    %c0_7 = arith.constant 0 : index
    %c0_8 = arith.constant 0 : index
    %12 = vector.load %arg3[%c3, %c0_7, %c0_8] : memref<9x4x32xbf16, #tpu.memory_space<vmem>>, vector<1x4x32xbf16>
    %13 = vector.shape_cast %12 : vector<1x4x32xbf16> to vector<4x32xbf16>
    %cst_9 = arith.constant dense<0.000000e+00> : vector<64x32xf32>
    %14 = tpu.matmul %11, %13, %cst_9 {dimension_numbers = #tpu.dot_dimension_numbers<[1], [0], [0], [1], [0, 0, 1, 1], [], []>} : vector<64x4xbf16>, vector<4x32xbf16>, vector<64x32xf32> -> vector<64x32xf32>
    %15 = arith.addf %9, %14 : vector<64x32xf32>
    %16 = vector.extract_strided_slice %3 {offsets = [2, 0, 0], sizes = [4, 16, 4], strides = [1, 1, 1]} : vector<6x16x4xbf16> to vector<4x16x4xbf16>
    %17 = vector.shape_cast %16 : vector<4x16x4xbf16> to vector<64x4xbf16>
    %c6 = arith.constant 6 : index
    %c0_10 = arith.constant 0 : index
    %c0_11 = arith.constant 0 : index
    %18 = vector.load %arg3[%c6, %c0_10, %c0_11] : memref<9x4x32xbf16, #tpu.memory_space<vmem>>, vector<1x4x32xbf16>
    %19 = vector.shape_cast %18 : vector<1x4x32xbf16> to vector<4x32xbf16>
    %cst_12 = arith.constant dense<0.000000e+00> : vector<64x32xf32>
    %20 = tpu.matmul %17, %19, %cst_12 {dimension_numbers = #tpu.dot_dimension_numbers<[1], [0], [0], [1], [0, 0, 1, 1], [], []>} : vector<64x4xbf16>, vector<4x32xbf16>, vector<64x32xf32> -> vector<64x32xf32>
    %21 = arith.addf %15, %20 : vector<64x32xf32>
    %22 = vector.extract_strided_slice %1 {offsets = [0, 1, 0], sizes = [6, 16, 4], strides = [1, 1, 1]} : vector<6x18x4xbf16> to vector<6x16x4xbf16>
    %23 = vector.extract_strided_slice %22 {offsets = [0, 0, 0], sizes = [4, 16, 4], strides = [1, 1, 1]} : vector<6x16x4xbf16> to vector<4x16x4xbf16>
    %24 = vector.shape_cast %23 : vector<4x16x4xbf16> to vector<64x4xbf16>
    %c1 = arith.constant 1 : index
    %c0_13 = arith.constant 0 : index
    %c0_14 = arith.constant 0 : index
    %25 = vector.load %arg3[%c1, %c0_13, %c0_14] : memref<9x4x32xbf16, #tpu.memory_space<vmem>>, vector<1x4x32xbf16>
    %26 = vector.shape_cast %25 : vector<1x4x32xbf16> to vector<4x32xbf16>
    %cst_15 = arith.constant dense<0.000000e+00> : vector<64x32xf32>
    %27 = tpu.matmul %24, %26, %cst_15 {dimension_numbers = #tpu.dot_dimension_numbers<[1], [0], [0], [1], [0, 0, 1, 1], [], []>} : vector<64x4xbf16>, vector<4x32xbf16>, vector<64x32xf32> -> vector<64x32xf32>
    %28 = arith.addf %21, %27 : vector<64x32xf32>
    %29 = vector.extract_strided_slice %22 {offsets = [1, 0, 0], sizes = [4, 16, 4], strides = [1, 1, 1]} : vector<6x16x4xbf16> to vector<4x16x4xbf16>
    %30 = vector.shape_cast %29 : vector<4x16x4xbf16> to vector<64x4xbf16>
    %c4 = arith.constant 4 : index
    %c0_16 = arith.constant 0 : index
    %c0_17 = arith.constant 0 : index
    %31 = vector.load %arg3[%c4, %c0_16, %c0_17] : memref<9x4x32xbf16, #tpu.memory_space<vmem>>, vector<1x4x32xbf16>
    %32 = vector.shape_cast %31 : vector<1x4x32xbf16> to vector<4x32xbf16>
    %cst_18 = arith.constant dense<0.000000e+00> : vector<64x32xf32>
    %33 = tpu.matmul %30, %32, %cst_18 {dimension_numbers = #tpu.dot_dimension_numbers<[1], [0], [0], [1], [0, 0, 1, 1], [], []>} : vector<64x4xbf16>, vector<4x32xbf16>, vector<64x32xf32> -> vector<64x32xf32>
    %34 = arith.addf %28, %33 : vector<64x32xf32>
    %35 = vector.extract_strided_slice %22 {offsets = [2, 0, 0], sizes = [4, 16, 4], strides = [1, 1, 1]} : vector<6x16x4xbf16> to vector<4x16x4xbf16>
    %36 = vector.shape_cast %35 : vector<4x16x4xbf16> to vector<64x4xbf16>
    %c7 = arith.constant 7 : index
    %c0_19 = arith.constant 0 : index
    %c0_20 = arith.constant 0 : index
    %37 = vector.load %arg3[%c7, %c0_19, %c0_20] : memref<9x4x32xbf16, #tpu.memory_space<vmem>>, vector<1x4x32xbf16>
    %38 = vector.shape_cast %37 : vector<1x4x32xbf16> to vector<4x32xbf16>
    %cst_21 = arith.constant dense<0.000000e+00> : vector<64x32xf32>
    %39 = tpu.matmul %36, %38, %cst_21 {dimension_numbers = #tpu.dot_dimension_numbers<[1], [0], [0], [1], [0, 0, 1, 1], [], []>} : vector<64x4xbf16>, vector<4x32xbf16>, vector<64x32xf32> -> vector<64x32xf32>
    %40 = arith.addf %34, %39 : vector<64x32xf32>
    %41 = vector.extract_strided_slice %1 {offsets = [0, 2, 0], sizes = [6, 16, 4], strides = [1, 1, 1]} : vector<6x18x4xbf16> to vector<6x16x4xbf16>
    %42 = vector.extract_strided_slice %41 {offsets = [0, 0, 0], sizes = [4, 16, 4], strides = [1, 1, 1]} : vector<6x16x4xbf16> to vector<4x16x4xbf16>
    %43 = vector.shape_cast %42 : vector<4x16x4xbf16> to vector<64x4xbf16>
    %c2 = arith.constant 2 : index
    %c0_22 = arith.constant 0 : index
    %c0_23 = arith.constant 0 : index
    %44 = vector.load %arg3[%c2, %c0_22, %c0_23] : memref<9x4x32xbf16, #tpu.memory_space<vmem>>, vector<1x4x32xbf16>
    %45 = vector.shape_cast %44 : vector<1x4x32xbf16> to vector<4x32xbf16>
    %cst_24 = arith.constant dense<0.000000e+00> : vector<64x32xf32>
    %46 = tpu.matmul %43, %45, %cst_24 {dimension_numbers = #tpu.dot_dimension_numbers<[1], [0], [0], [1], [0, 0, 1, 1], [], []>} : vector<64x4xbf16>, vector<4x32xbf16>, vector<64x32xf32> -> vector<64x32xf32>
    %47 = arith.addf %40, %46 : vector<64x32xf32>
    %48 = vector.extract_strided_slice %41 {offsets = [1, 0, 0], sizes = [4, 16, 4], strides = [1, 1, 1]} : vector<6x16x4xbf16> to vector<4x16x4xbf16>
    %49 = vector.shape_cast %48 : vector<4x16x4xbf16> to vector<64x4xbf16>
    %c5 = arith.constant 5 : index
    %c0_25 = arith.constant 0 : index
    %c0_26 = arith.constant 0 : index
    %50 = vector.load %arg3[%c5, %c0_25, %c0_26] : memref<9x4x32xbf16, #tpu.memory_space<vmem>>, vector<1x4x32xbf16>
    %51 = vector.shape_cast %50 : vector<1x4x32xbf16> to vector<4x32xbf16>
    %cst_27 = arith.constant dense<0.000000e+00> : vector<64x32xf32>
    %52 = tpu.matmul %49, %51, %cst_27 {dimension_numbers = #tpu.dot_dimension_numbers<[1], [0], [0], [1], [0, 0, 1, 1], [], []>} : vector<64x4xbf16>, vector<4x32xbf16>, vector<64x32xf32> -> vector<64x32xf32>
    %53 = arith.addf %47, %52 : vector<64x32xf32>
    %54 = vector.extract_strided_slice %41 {offsets = [2, 0, 0], sizes = [4, 16, 4], strides = [1, 1, 1]} : vector<6x16x4xbf16> to vector<4x16x4xbf16>
    %55 = vector.shape_cast %54 : vector<4x16x4xbf16> to vector<64x4xbf16>
    %c8 = arith.constant 8 : index
    %c0_28 = arith.constant 0 : index
    %c0_29 = arith.constant 0 : index
    %56 = vector.load %arg3[%c8, %c0_28, %c0_29] : memref<9x4x32xbf16, #tpu.memory_space<vmem>>, vector<1x4x32xbf16>
    %57 = vector.shape_cast %56 : vector<1x4x32xbf16> to vector<4x32xbf16>
    %cst_30 = arith.constant dense<0.000000e+00> : vector<64x32xf32>
    %58 = tpu.matmul %55, %57, %cst_30 {dimension_numbers = #tpu.dot_dimension_numbers<[1], [0], [0], [1], [0, 0, 1, 1], [], []>} : vector<64x4xbf16>, vector<4x32xbf16>, vector<64x32xf32> -> vector<64x32xf32>
    %59 = arith.addf %53, %58 : vector<64x32xf32>
    %c0_31 = arith.constant 0 : index
    %c0_32 = arith.constant 0 : index
    %60 = vector.load %arg5[%c0_31, %c0_32] : memref<1x32xf32, #tpu.memory_space<vmem>>, vector<1x32xf32>
    %61 = vector.broadcast %60 : vector<1x32xf32> to vector<64x32xf32>
    %62 = arith.mulf %59, %61 : vector<64x32xf32>
    %c0_33 = arith.constant 0 : index
    %c0_34 = arith.constant 0 : index
    %63 = vector.load %arg6[%c0_33, %c0_34] : memref<1x32xf32, #tpu.memory_space<vmem>>, vector<1x32xf32>
    %64 = vector.broadcast %63 : vector<1x32xf32> to vector<64x32xf32>
    %65 = arith.addf %62, %64 : vector<64x32xf32>
    %cst_35 = arith.constant 0.000000e+00 : f32
    %66 = vector.broadcast %cst_35 : f32 to vector<64x32xf32>
    %67 = arith.cmpf oge, %65, %66 : vector<64x32xf32>
    %cst_36 = arith.constant 5.000000e-02 : f32
    %68 = vector.broadcast %cst_36 : f32 to vector<64x32xf32>
    %69 = arith.mulf %68, %65 : vector<64x32xf32>
    %70 = arith.select %67, %65, %69 : vector<64x32xi1>, vector<64x32xf32>
    %c0_37 = arith.constant 0 : index
    %c0_38 = arith.constant 0 : index
    %c0_39 = arith.constant 0 : index
    %c0_40 = arith.constant 0 : index
    %71 = vector.load %arg2[%c0_37, %c0_38, %c0_39, %c0_40] : memref<1x6x18x4xbf16, #tpu.memory_space<vmem>>, vector<1x6x18x4xbf16>
    %72 = vector.shape_cast %71 : vector<1x6x18x4xbf16> to vector<6x18x4xbf16>
    %cst_41 = arith.constant 0.000000e+00 : f32
    %73 = vector.broadcast %cst_41 : f32 to vector<64x32xf32>
    %74 = vector.extract_strided_slice %72 {offsets = [0, 0, 0], sizes = [6, 16, 4], strides = [1, 1, 1]} : vector<6x18x4xbf16> to vector<6x16x4xbf16>
    %75 = vector.extract_strided_slice %74 {offsets = [0, 0, 0], sizes = [4, 16, 4], strides = [1, 1, 1]} : vector<6x16x4xbf16> to vector<4x16x4xbf16>
    %76 = vector.shape_cast %75 : vector<4x16x4xbf16> to vector<64x4xbf16>
    %c0_42 = arith.constant 0 : index
    %c0_43 = arith.constant 0 : index
    %c0_44 = arith.constant 0 : index
    %77 = vector.load %arg4[%c0_42, %c0_43, %c0_44] : memref<9x4x32xbf16, #tpu.memory_space<vmem>>, vector<1x4x32xbf16>
    %78 = vector.shape_cast %77 : vector<1x4x32xbf16> to vector<4x32xbf16>
    %cst_45 = arith.constant dense<0.000000e+00> : vector<64x32xf32>
    %79 = tpu.matmul %76, %78, %cst_45 {dimension_numbers = #tpu.dot_dimension_numbers<[1], [0], [0], [1], [0, 0, 1, 1], [], []>} : vector<64x4xbf16>, vector<4x32xbf16>, vector<64x32xf32> -> vector<64x32xf32>
    %80 = arith.addf %73, %79 : vector<64x32xf32>
    %81 = vector.extract_strided_slice %74 {offsets = [1, 0, 0], sizes = [4, 16, 4], strides = [1, 1, 1]} : vector<6x16x4xbf16> to vector<4x16x4xbf16>
    %82 = vector.shape_cast %81 : vector<4x16x4xbf16> to vector<64x4xbf16>
    %c3_46 = arith.constant 3 : index
    %c0_47 = arith.constant 0 : index
    %c0_48 = arith.constant 0 : index
    %83 = vector.load %arg4[%c3_46, %c0_47, %c0_48] : memref<9x4x32xbf16, #tpu.memory_space<vmem>>, vector<1x4x32xbf16>
    %84 = vector.shape_cast %83 : vector<1x4x32xbf16> to vector<4x32xbf16>
    %cst_49 = arith.constant dense<0.000000e+00> : vector<64x32xf32>
    %85 = tpu.matmul %82, %84, %cst_49 {dimension_numbers = #tpu.dot_dimension_numbers<[1], [0], [0], [1], [0, 0, 1, 1], [], []>} : vector<64x4xbf16>, vector<4x32xbf16>, vector<64x32xf32> -> vector<64x32xf32>
    %86 = arith.addf %80, %85 : vector<64x32xf32>
    %87 = vector.extract_strided_slice %74 {offsets = [2, 0, 0], sizes = [4, 16, 4], strides = [1, 1, 1]} : vector<6x16x4xbf16> to vector<4x16x4xbf16>
    %88 = vector.shape_cast %87 : vector<4x16x4xbf16> to vector<64x4xbf16>
    %c6_50 = arith.constant 6 : index
    %c0_51 = arith.constant 0 : index
    %c0_52 = arith.constant 0 : index
    %89 = vector.load %arg4[%c6_50, %c0_51, %c0_52] : memref<9x4x32xbf16, #tpu.memory_space<vmem>>, vector<1x4x32xbf16>
    %90 = vector.shape_cast %89 : vector<1x4x32xbf16> to vector<4x32xbf16>
    %cst_53 = arith.constant dense<0.000000e+00> : vector<64x32xf32>
    %91 = tpu.matmul %88, %90, %cst_53 {dimension_numbers = #tpu.dot_dimension_numbers<[1], [0], [0], [1], [0, 0, 1, 1], [], []>} : vector<64x4xbf16>, vector<4x32xbf16>, vector<64x32xf32> -> vector<64x32xf32>
    %92 = arith.addf %86, %91 : vector<64x32xf32>
    %93 = vector.extract_strided_slice %72 {offsets = [0, 1, 0], sizes = [6, 16, 4], strides = [1, 1, 1]} : vector<6x18x4xbf16> to vector<6x16x4xbf16>
    %94 = vector.extract_strided_slice %93 {offsets = [0, 0, 0], sizes = [4, 16, 4], strides = [1, 1, 1]} : vector<6x16x4xbf16> to vector<4x16x4xbf16>
    %95 = vector.shape_cast %94 : vector<4x16x4xbf16> to vector<64x4xbf16>
    %c1_54 = arith.constant 1 : index
    %c0_55 = arith.constant 0 : index
    %c0_56 = arith.constant 0 : index
    %96 = vector.load %arg4[%c1_54, %c0_55, %c0_56] : memref<9x4x32xbf16, #tpu.memory_space<vmem>>, vector<1x4x32xbf16>
    %97 = vector.shape_cast %96 : vector<1x4x32xbf16> to vector<4x32xbf16>
    %cst_57 = arith.constant dense<0.000000e+00> : vector<64x32xf32>
    %98 = tpu.matmul %95, %97, %cst_57 {dimension_numbers = #tpu.dot_dimension_numbers<[1], [0], [0], [1], [0, 0, 1, 1], [], []>} : vector<64x4xbf16>, vector<4x32xbf16>, vector<64x32xf32> -> vector<64x32xf32>
    %99 = arith.addf %92, %98 : vector<64x32xf32>
    %100 = vector.extract_strided_slice %93 {offsets = [1, 0, 0], sizes = [4, 16, 4], strides = [1, 1, 1]} : vector<6x16x4xbf16> to vector<4x16x4xbf16>
    %101 = vector.shape_cast %100 : vector<4x16x4xbf16> to vector<64x4xbf16>
    %c4_58 = arith.constant 4 : index
    %c0_59 = arith.constant 0 : index
    %c0_60 = arith.constant 0 : index
    %102 = vector.load %arg4[%c4_58, %c0_59, %c0_60] : memref<9x4x32xbf16, #tpu.memory_space<vmem>>, vector<1x4x32xbf16>
    %103 = vector.shape_cast %102 : vector<1x4x32xbf16> to vector<4x32xbf16>
    %cst_61 = arith.constant dense<0.000000e+00> : vector<64x32xf32>
    %104 = tpu.matmul %101, %103, %cst_61 {dimension_numbers = #tpu.dot_dimension_numbers<[1], [0], [0], [1], [0, 0, 1, 1], [], []>} : vector<64x4xbf16>, vector<4x32xbf16>, vector<64x32xf32> -> vector<64x32xf32>
    %105 = arith.addf %99, %104 : vector<64x32xf32>
    %106 = vector.extract_strided_slice %93 {offsets = [2, 0, 0], sizes = [4, 16, 4], strides = [1, 1, 1]} : vector<6x16x4xbf16> to vector<4x16x4xbf16>
    %107 = vector.shape_cast %106 : vector<4x16x4xbf16> to vector<64x4xbf16>
    %c7_62 = arith.constant 7 : index
    %c0_63 = arith.constant 0 : index
    %c0_64 = arith.constant 0 : index
    %108 = vector.load %arg4[%c7_62, %c0_63, %c0_64] : memref<9x4x32xbf16, #tpu.memory_space<vmem>>, vector<1x4x32xbf16>
    %109 = vector.shape_cast %108 : vector<1x4x32xbf16> to vector<4x32xbf16>
    %cst_65 = arith.constant dense<0.000000e+00> : vector<64x32xf32>
    %110 = tpu.matmul %107, %109, %cst_65 {dimension_numbers = #tpu.dot_dimension_numbers<[1], [0], [0], [1], [0, 0, 1, 1], [], []>} : vector<64x4xbf16>, vector<4x32xbf16>, vector<64x32xf32> -> vector<64x32xf32>
    %111 = arith.addf %105, %110 : vector<64x32xf32>
    %112 = vector.extract_strided_slice %72 {offsets = [0, 2, 0], sizes = [6, 16, 4], strides = [1, 1, 1]} : vector<6x18x4xbf16> to vector<6x16x4xbf16>
    %113 = vector.extract_strided_slice %112 {offsets = [0, 0, 0], sizes = [4, 16, 4], strides = [1, 1, 1]} : vector<6x16x4xbf16> to vector<4x16x4xbf16>
    %114 = vector.shape_cast %113 : vector<4x16x4xbf16> to vector<64x4xbf16>
    %c2_66 = arith.constant 2 : index
    %c0_67 = arith.constant 0 : index
    %c0_68 = arith.constant 0 : index
    %115 = vector.load %arg4[%c2_66, %c0_67, %c0_68] : memref<9x4x32xbf16, #tpu.memory_space<vmem>>, vector<1x4x32xbf16>
    %116 = vector.shape_cast %115 : vector<1x4x32xbf16> to vector<4x32xbf16>
    %cst_69 = arith.constant dense<0.000000e+00> : vector<64x32xf32>
    %117 = tpu.matmul %114, %116, %cst_69 {dimension_numbers = #tpu.dot_dimension_numbers<[1], [0], [0], [1], [0, 0, 1, 1], [], []>} : vector<64x4xbf16>, vector<4x32xbf16>, vector<64x32xf32> -> vector<64x32xf32>
    %118 = arith.addf %111, %117 : vector<64x32xf32>
    %119 = vector.extract_strided_slice %112 {offsets = [1, 0, 0], sizes = [4, 16, 4], strides = [1, 1, 1]} : vector<6x16x4xbf16> to vector<4x16x4xbf16>
    %120 = vector.shape_cast %119 : vector<4x16x4xbf16> to vector<64x4xbf16>
    %c5_70 = arith.constant 5 : index
    %c0_71 = arith.constant 0 : index
    %c0_72 = arith.constant 0 : index
    %121 = vector.load %arg4[%c5_70, %c0_71, %c0_72] : memref<9x4x32xbf16, #tpu.memory_space<vmem>>, vector<1x4x32xbf16>
    %122 = vector.shape_cast %121 : vector<1x4x32xbf16> to vector<4x32xbf16>
    %cst_73 = arith.constant dense<0.000000e+00> : vector<64x32xf32>
    %123 = tpu.matmul %120, %122, %cst_73 {dimension_numbers = #tpu.dot_dimension_numbers<[1], [0], [0], [1], [0, 0, 1, 1], [], []>} : vector<64x4xbf16>, vector<4x32xbf16>, vector<64x32xf32> -> vector<64x32xf32>
    %124 = arith.addf %118, %123 : vector<64x32xf32>
    %125 = vector.extract_strided_slice %112 {offsets = [2, 0, 0], sizes = [4, 16, 4], strides = [1, 1, 1]} : vector<6x16x4xbf16> to vector<4x16x4xbf16>
    %126 = vector.shape_cast %125 : vector<4x16x4xbf16> to vector<64x4xbf16>
    %c8_74 = arith.constant 8 : index
    %c0_75 = arith.constant 0 : index
    %c0_76 = arith.constant 0 : index
    %127 = vector.load %arg4[%c8_74, %c0_75, %c0_76] : memref<9x4x32xbf16, #tpu.memory_space<vmem>>, vector<1x4x32xbf16>
    %128 = vector.shape_cast %127 : vector<1x4x32xbf16> to vector<4x32xbf16>
    %cst_77 = arith.constant dense<0.000000e+00> : vector<64x32xf32>
    %129 = tpu.matmul %126, %128, %cst_77 {dimension_numbers = #tpu.dot_dimension_numbers<[1], [0], [0], [1], [0, 0, 1, 1], [], []>} : vector<64x4xbf16>, vector<4x32xbf16>, vector<64x32xf32> -> vector<64x32xf32>
    %130 = arith.addf %124, %129 : vector<64x32xf32>
    %c0_78 = arith.constant 0 : index
    %c0_79 = arith.constant 0 : index
    %131 = vector.load %arg7[%c0_78, %c0_79] : memref<1x32xf32, #tpu.memory_space<vmem>>, vector<1x32xf32>
    %132 = vector.broadcast %131 : vector<1x32xf32> to vector<64x32xf32>
    %133 = arith.mulf %70, %132 : vector<64x32xf32>
    %c0_80 = arith.constant 0 : index
    %c0_81 = arith.constant 0 : index
    %134 = vector.load %arg8[%c0_80, %c0_81] : memref<1x32xf32, #tpu.memory_space<vmem>>, vector<1x32xf32>
    %135 = vector.broadcast %134 : vector<1x32xf32> to vector<64x32xf32>
    %136 = arith.addf %133, %135 : vector<64x32xf32>
    %137 = arith.addf %136, %130 : vector<64x32xf32>
    %c0_82 = arith.constant 0 : index
    %c0_83 = arith.constant 0 : index
    %c0_84 = arith.constant 0 : index
    %138 = vector.load %arg9[%c0_82, %c0_83, %c0_84] : memref<1x64x32xf32, #tpu.memory_space<vmem>>, vector<1x64x32xf32>
    %139 = vector.shape_cast %138 : vector<1x64x32xf32> to vector<64x32xf32>
    %140 = vector.shape_cast %137 : vector<64x32xf32> to vector<1x64x32xf32>
    tpu.vector_store %arg9[%c0_82, %c0_83, %c0_84], %140 {strides = array<i32>} : memref<1x64x32xf32, #tpu.memory_space<vmem>>, vector<1x64x32xf32>,
    return
  }
  func.func @transform_0(%arg0: i32) -> (i32, i32, i32, i32) {
    %c0_i32 = arith.constant 0 : i32
    %c0_i32_0 = arith.constant 0 : i32
    %c0_i32_1 = arith.constant 0 : i32
    %c0_i32_2 = arith.constant 0 : i32
    return %arg0, %c0_i32, %c0_i32_0, %c0_i32_1 : i32, i32, i32, i32
  }
  func.func @transform_1(%arg0: i32) -> (i32, i32, i32, i32) {
    %c0_i32 = arith.constant 0 : i32
    %c0_i32_0 = arith.constant 0 : i32
    %c0_i32_1 = arith.constant 0 : i32
    %c0_i32_2 = arith.constant 0 : i32
    return %arg0, %c0_i32, %c0_i32_0, %c0_i32_1 : i32, i32, i32, i32
  }
  func.func @transform_2(%arg0: i32) -> (i32, i32, i32) {
    %c0_i32 = arith.constant 0 : i32
    %c0_i32_0 = arith.constant 0 : i32
    %c0_i32_1 = arith.constant 0 : i32
    %c0_i32_2 = arith.constant 0 : i32
    return %c0_i32, %c0_i32_0, %c0_i32_1 : i32, i32, i32
  }
  func.func @transform_3(%arg0: i32) -> (i32, i32, i32) {
    %c0_i32 = arith.constant 0 : i32
    %c0_i32_0 = arith.constant 0 : i32
    %c0_i32_1 = arith.constant 0 : i32
    %c0_i32_2 = arith.constant 0 : i32
    return %c0_i32, %c0_i32_0, %c0_i32_1 : i32, i32, i32
  }
  func.func @transform_4(%arg0: i32) -> (i32, i32) {
    %c0_i32 = arith.constant 0 : i32
    %c0_i32_0 = arith.constant 0 : i32
    %c0_i32_1 = arith.constant 0 : i32
    return %c0_i32, %c0_i32_0 : i32, i32
  }
  func.func @transform_5(%arg0: i32) -> (i32, i32) {
    %c0_i32 = arith.constant 0 : i32
    %c0_i32_0 = arith.constant 0 : i32
    %c0_i32_1 = arith.constant 0 : i32
    return %c0_i32, %c0_i32_0 : i32, i32
  }
  func.func @transform_6(%arg0: i32) -> (i32, i32) {
    %c0_i32 = arith.constant 0 : i32
    %c0_i32_0 = arith.constant 0 : i32
    %c0_i32_1 = arith.constant 0 : i32
    return %c0_i32, %c0_i32_0 : i32, i32
  }
  func.func @transform_7(%arg0: i32) -> (i32, i32) {
    %c0_i32 = arith.constant 0 : i32
    %c0_i32_0 = arith.constant 0 : i32
    %c0_i32_1 = arith.constant 0 : i32
    return %c0_i32, %c0_i32_0 : i32, i32
  }
  func.func @transform_8(%arg0: i32) -> (i32, i32, i32) {
    %c0_i32 = arith.constant 0 : i32
    %c0_i32_0 = arith.constant 0 : i32
    %c0_i32_1 = arith.constant 0 : i32
    return %arg0, %c0_i32, %c0_i32_0 : i32, i32, i32
  }
}

module attributes {stable_mosaic.version = 11 : i64} {
  func.func @_stats_z_kernel(%arg0: i32, %arg1: memref<1x6x18x4xbf16, #tpu.memory_space<vmem>>, %arg2: memref<9x4x32xbf16, #tpu.memory_space<vmem>>, %arg3: memref<1x32xf32, #tpu.memory_space<vmem>>, %arg4: memref<1x32xf32, #tpu.memory_space<vmem>>, %arg5: memref<1x2x32xf32, #tpu.memory_space<vmem>>) attributes {dimension_semantics = [#tpu.dimension_semantics<parallel>], iteration_bounds = array<i64: 8>, scalar_prefetch = 0 : i64, scratch_operands = 0 : i64, tpu.core_type = #tpu.core_type<tc>, window_params = [{transform_indices = @transform_0, window_bounds = array<i64: 1, 6, 18, 4>}, {pipeline_mode = #tpu.pipeline_mode<synchronous>, transform_indices = @transform_1, window_bounds = array<i64: 9, 4, 32>}, {pipeline_mode = #tpu.pipeline_mode<synchronous>, transform_indices = @transform_2, window_bounds = array<i64: 1, 32>}, {pipeline_mode = #tpu.pipeline_mode<synchronous>, transform_indices = @transform_3, window_bounds = array<i64: 1, 32>}, {transform_indices = @transform_4, window_bounds = array<i64: 1, 2, 32>}]} {
    %c0 = arith.constant 0 : index
    %c0_0 = arith.constant 0 : index
    %c0_1 = arith.constant 0 : index
    %c0_2 = arith.constant 0 : index
    %0 = vector.load %arg1[%c0, %c0_0, %c0_1, %c0_2] : memref<1x6x18x4xbf16, #tpu.memory_space<vmem>>, vector<1x6x18x4xbf16>
    %1 = vector.shape_cast %0 : vector<1x6x18x4xbf16> to vector<6x18x4xbf16>
    %cst = arith.constant 0.000000e+00 : f32
    %2 = vector.broadcast %cst : f32 to vector<64x32xf32>
    %3 = vector.extract_strided_slice %1 {offsets = [0, 0, 0], sizes = [6, 16, 4], strides = [1, 1, 1]} : vector<6x18x4xbf16> to vector<6x16x4xbf16>
    %4 = vector.extract_strided_slice %3 {offsets = [0, 0, 0], sizes = [4, 16, 4], strides = [1, 1, 1]} : vector<6x16x4xbf16> to vector<4x16x4xbf16>
    %5 = vector.shape_cast %4 : vector<4x16x4xbf16> to vector<64x4xbf16>
    %c0_3 = arith.constant 0 : index
    %c0_4 = arith.constant 0 : index
    %c0_5 = arith.constant 0 : index
    %6 = vector.load %arg2[%c0_3, %c0_4, %c0_5] : memref<9x4x32xbf16, #tpu.memory_space<vmem>>, vector<1x4x32xbf16>
    %7 = vector.shape_cast %6 : vector<1x4x32xbf16> to vector<4x32xbf16>
    %cst_6 = arith.constant dense<0.000000e+00> : vector<64x32xf32>
    %8 = tpu.matmul %5, %7, %cst_6 {dimension_numbers = #tpu.dot_dimension_numbers<[1], [0], [0], [1], [0, 0, 1, 1], [], []>} : vector<64x4xbf16>, vector<4x32xbf16>, vector<64x32xf32> -> vector<64x32xf32>
    %9 = arith.addf %2, %8 : vector<64x32xf32>
    %10 = vector.extract_strided_slice %3 {offsets = [1, 0, 0], sizes = [4, 16, 4], strides = [1, 1, 1]} : vector<6x16x4xbf16> to vector<4x16x4xbf16>
    %11 = vector.shape_cast %10 : vector<4x16x4xbf16> to vector<64x4xbf16>
    %c3 = arith.constant 3 : index
    %c0_7 = arith.constant 0 : index
    %c0_8 = arith.constant 0 : index
    %12 = vector.load %arg2[%c3, %c0_7, %c0_8] : memref<9x4x32xbf16, #tpu.memory_space<vmem>>, vector<1x4x32xbf16>
    %13 = vector.shape_cast %12 : vector<1x4x32xbf16> to vector<4x32xbf16>
    %cst_9 = arith.constant dense<0.000000e+00> : vector<64x32xf32>
    %14 = tpu.matmul %11, %13, %cst_9 {dimension_numbers = #tpu.dot_dimension_numbers<[1], [0], [0], [1], [0, 0, 1, 1], [], []>} : vector<64x4xbf16>, vector<4x32xbf16>, vector<64x32xf32> -> vector<64x32xf32>
    %15 = arith.addf %9, %14 : vector<64x32xf32>
    %16 = vector.extract_strided_slice %3 {offsets = [2, 0, 0], sizes = [4, 16, 4], strides = [1, 1, 1]} : vector<6x16x4xbf16> to vector<4x16x4xbf16>
    %17 = vector.shape_cast %16 : vector<4x16x4xbf16> to vector<64x4xbf16>
    %c6 = arith.constant 6 : index
    %c0_10 = arith.constant 0 : index
    %c0_11 = arith.constant 0 : index
    %18 = vector.load %arg2[%c6, %c0_10, %c0_11] : memref<9x4x32xbf16, #tpu.memory_space<vmem>>, vector<1x4x32xbf16>
    %19 = vector.shape_cast %18 : vector<1x4x32xbf16> to vector<4x32xbf16>
    %cst_12 = arith.constant dense<0.000000e+00> : vector<64x32xf32>
    %20 = tpu.matmul %17, %19, %cst_12 {dimension_numbers = #tpu.dot_dimension_numbers<[1], [0], [0], [1], [0, 0, 1, 1], [], []>} : vector<64x4xbf16>, vector<4x32xbf16>, vector<64x32xf32> -> vector<64x32xf32>
    %21 = arith.addf %15, %20 : vector<64x32xf32>
    %22 = vector.extract_strided_slice %1 {offsets = [0, 1, 0], sizes = [6, 16, 4], strides = [1, 1, 1]} : vector<6x18x4xbf16> to vector<6x16x4xbf16>
    %23 = vector.extract_strided_slice %22 {offsets = [0, 0, 0], sizes = [4, 16, 4], strides = [1, 1, 1]} : vector<6x16x4xbf16> to vector<4x16x4xbf16>
    %24 = vector.shape_cast %23 : vector<4x16x4xbf16> to vector<64x4xbf16>
    %c1 = arith.constant 1 : index
    %c0_13 = arith.constant 0 : index
    %c0_14 = arith.constant 0 : index
    %25 = vector.load %arg2[%c1, %c0_13, %c0_14] : memref<9x4x32xbf16, #tpu.memory_space<vmem>>, vector<1x4x32xbf16>
    %26 = vector.shape_cast %25 : vector<1x4x32xbf16> to vector<4x32xbf16>
    %cst_15 = arith.constant dense<0.000000e+00> : vector<64x32xf32>
    %27 = tpu.matmul %24, %26, %cst_15 {dimension_numbers = #tpu.dot_dimension_numbers<[1], [0], [0], [1], [0, 0, 1, 1], [], []>} : vector<64x4xbf16>, vector<4x32xbf16>, vector<64x32xf32> -> vector<64x32xf32>
    %28 = arith.addf %21, %27 : vector<64x32xf32>
    %29 = vector.extract_strided_slice %22 {offsets = [1, 0, 0], sizes = [4, 16, 4], strides = [1, 1, 1]} : vector<6x16x4xbf16> to vector<4x16x4xbf16>
    %30 = vector.shape_cast %29 : vector<4x16x4xbf16> to vector<64x4xbf16>
    %c4 = arith.constant 4 : index
    %c0_16 = arith.constant 0 : index
    %c0_17 = arith.constant 0 : index
    %31 = vector.load %arg2[%c4, %c0_16, %c0_17] : memref<9x4x32xbf16, #tpu.memory_space<vmem>>, vector<1x4x32xbf16>
    %32 = vector.shape_cast %31 : vector<1x4x32xbf16> to vector<4x32xbf16>
    %cst_18 = arith.constant dense<0.000000e+00> : vector<64x32xf32>
    %33 = tpu.matmul %30, %32, %cst_18 {dimension_numbers = #tpu.dot_dimension_numbers<[1], [0], [0], [1], [0, 0, 1, 1], [], []>} : vector<64x4xbf16>, vector<4x32xbf16>, vector<64x32xf32> -> vector<64x32xf32>
    %34 = arith.addf %28, %33 : vector<64x32xf32>
    %35 = vector.extract_strided_slice %22 {offsets = [2, 0, 0], sizes = [4, 16, 4], strides = [1, 1, 1]} : vector<6x16x4xbf16> to vector<4x16x4xbf16>
    %36 = vector.shape_cast %35 : vector<4x16x4xbf16> to vector<64x4xbf16>
    %c7 = arith.constant 7 : index
    %c0_19 = arith.constant 0 : index
    %c0_20 = arith.constant 0 : index
    %37 = vector.load %arg2[%c7, %c0_19, %c0_20] : memref<9x4x32xbf16, #tpu.memory_space<vmem>>, vector<1x4x32xbf16>
    %38 = vector.shape_cast %37 : vector<1x4x32xbf16> to vector<4x32xbf16>
    %cst_21 = arith.constant dense<0.000000e+00> : vector<64x32xf32>
    %39 = tpu.matmul %36, %38, %cst_21 {dimension_numbers = #tpu.dot_dimension_numbers<[1], [0], [0], [1], [0, 0, 1, 1], [], []>} : vector<64x4xbf16>, vector<4x32xbf16>, vector<64x32xf32> -> vector<64x32xf32>
    %40 = arith.addf %34, %39 : vector<64x32xf32>
    %41 = vector.extract_strided_slice %1 {offsets = [0, 2, 0], sizes = [6, 16, 4], strides = [1, 1, 1]} : vector<6x18x4xbf16> to vector<6x16x4xbf16>
    %42 = vector.extract_strided_slice %41 {offsets = [0, 0, 0], sizes = [4, 16, 4], strides = [1, 1, 1]} : vector<6x16x4xbf16> to vector<4x16x4xbf16>
    %43 = vector.shape_cast %42 : vector<4x16x4xbf16> to vector<64x4xbf16>
    %c2 = arith.constant 2 : index
    %c0_22 = arith.constant 0 : index
    %c0_23 = arith.constant 0 : index
    %44 = vector.load %arg2[%c2, %c0_22, %c0_23] : memref<9x4x32xbf16, #tpu.memory_space<vmem>>, vector<1x4x32xbf16>
    %45 = vector.shape_cast %44 : vector<1x4x32xbf16> to vector<4x32xbf16>
    %cst_24 = arith.constant dense<0.000000e+00> : vector<64x32xf32>
    %46 = tpu.matmul %43, %45, %cst_24 {dimension_numbers = #tpu.dot_dimension_numbers<[1], [0], [0], [1], [0, 0, 1, 1], [], []>} : vector<64x4xbf16>, vector<4x32xbf16>, vector<64x32xf32> -> vector<64x32xf32>
    %47 = arith.addf %40, %46 : vector<64x32xf32>
    %48 = vector.extract_strided_slice %41 {offsets = [1, 0, 0], sizes = [4, 16, 4], strides = [1, 1, 1]} : vector<6x16x4xbf16> to vector<4x16x4xbf16>
    %49 = vector.shape_cast %48 : vector<4x16x4xbf16> to vector<64x4xbf16>
    %c5 = arith.constant 5 : index
    %c0_25 = arith.constant 0 : index
    %c0_26 = arith.constant 0 : index
    %50 = vector.load %arg2[%c5, %c0_25, %c0_26] : memref<9x4x32xbf16, #tpu.memory_space<vmem>>, vector<1x4x32xbf16>
    %51 = vector.shape_cast %50 : vector<1x4x32xbf16> to vector<4x32xbf16>
    %cst_27 = arith.constant dense<0.000000e+00> : vector<64x32xf32>
    %52 = tpu.matmul %49, %51, %cst_27 {dimension_numbers = #tpu.dot_dimension_numbers<[1], [0], [0], [1], [0, 0, 1, 1], [], []>} : vector<64x4xbf16>, vector<4x32xbf16>, vector<64x32xf32> -> vector<64x32xf32>
    %53 = arith.addf %47, %52 : vector<64x32xf32>
    %54 = vector.extract_strided_slice %41 {offsets = [2, 0, 0], sizes = [4, 16, 4], strides = [1, 1, 1]} : vector<6x16x4xbf16> to vector<4x16x4xbf16>
    %55 = vector.shape_cast %54 : vector<4x16x4xbf16> to vector<64x4xbf16>
    %c8 = arith.constant 8 : index
    %c0_28 = arith.constant 0 : index
    %c0_29 = arith.constant 0 : index
    %56 = vector.load %arg2[%c8, %c0_28, %c0_29] : memref<9x4x32xbf16, #tpu.memory_space<vmem>>, vector<1x4x32xbf16>
    %57 = vector.shape_cast %56 : vector<1x4x32xbf16> to vector<4x32xbf16>
    %cst_30 = arith.constant dense<0.000000e+00> : vector<64x32xf32>
    %58 = tpu.matmul %55, %57, %cst_30 {dimension_numbers = #tpu.dot_dimension_numbers<[1], [0], [0], [1], [0, 0, 1, 1], [], []>} : vector<64x4xbf16>, vector<4x32xbf16>, vector<64x32xf32> -> vector<64x32xf32>
    %59 = arith.addf %53, %58 : vector<64x32xf32>
    %c0_31 = arith.constant 0 : index
    %c0_32 = arith.constant 0 : index
    %60 = vector.load %arg3[%c0_31, %c0_32] : memref<1x32xf32, #tpu.memory_space<vmem>>, vector<1x32xf32>
    %61 = vector.broadcast %60 : vector<1x32xf32> to vector<64x32xf32>
    %62 = arith.mulf %59, %61 : vector<64x32xf32>
    %c0_33 = arith.constant 0 : index
    %c0_34 = arith.constant 0 : index
    %63 = vector.load %arg4[%c0_33, %c0_34] : memref<1x32xf32, #tpu.memory_space<vmem>>, vector<1x32xf32>
    %64 = vector.broadcast %63 : vector<1x32xf32> to vector<64x32xf32>
    %65 = arith.addf %62, %64 : vector<64x32xf32>
    %cst_35 = arith.constant 0.000000e+00 : f32
    %66 = vector.broadcast %cst_35 : f32 to vector<64x32xf32>
    %67 = arith.cmpf oge, %65, %66 : vector<64x32xf32>
    %cst_36 = arith.constant 5.000000e-02 : f32
    %68 = vector.broadcast %cst_36 : f32 to vector<64x32xf32>
    %69 = arith.mulf %68, %65 : vector<64x32xf32>
    %70 = arith.select %67, %65, %69 : vector<64x32xi1>, vector<64x32xf32>
    %cst_37 = arith.constant dense<0.000000e+00> : vector<32xf32>
    %71 = vector.multi_reduction <add>, %70, %cst_37 [0] : vector<64x32xf32> to vector<32xf32>
    %72 = vector.shape_cast %71 : vector<32xf32> to vector<1x32xf32>
    %73 = arith.mulf %70, %70 : vector<64x32xf32>
    %cst_38 = arith.constant dense<0.000000e+00> : vector<32xf32>
    %74 = vector.multi_reduction <add>, %73, %cst_38 [0] : vector<64x32xf32> to vector<32xf32>
    %75 = vector.shape_cast %74 : vector<32xf32> to vector<1x32xf32>
    %76 = tpu.concatenate %72, %75 in 0 : vector<1x32xf32>, vector<1x32xf32> -> vector<2x32xf32>
    %77 = vector.shape_cast %76 : vector<2x32xf32> to vector<1x2x32xf32>
    %c0_39 = arith.constant 0 : index
    %c0_40 = arith.constant 0 : index
    %c0_41 = arith.constant 0 : index
    %78 = vector.load %arg5[%c0_39, %c0_40, %c0_41] : memref<1x2x32xf32, #tpu.memory_space<vmem>>, vector<1x2x32xf32>
    tpu.vector_store %arg5[%c0_39, %c0_40, %c0_41], %77 {strides = array<i32>} : memref<1x2x32xf32, #tpu.memory_space<vmem>>, vector<1x2x32xf32>,
    return
  }
  func.func @transform_0(%arg0: i32) -> (i32, i32, i32, i32) {
    %c0_i32 = arith.constant 0 : i32
    %c0_i32_0 = arith.constant 0 : i32
    %c0_i32_1 = arith.constant 0 : i32
    %c0_i32_2 = arith.constant 0 : i32
    return %arg0, %c0_i32, %c0_i32_0, %c0_i32_1 : i32, i32, i32, i32
  }
  func.func @transform_1(%arg0: i32) -> (i32, i32, i32) {
    %c0_i32 = arith.constant 0 : i32
    %c0_i32_0 = arith.constant 0 : i32
    %c0_i32_1 = arith.constant 0 : i32
    %c0_i32_2 = arith.constant 0 : i32
    return %c0_i32, %c0_i32_0, %c0_i32_1 : i32, i32, i32
  }
  func.func @transform_2(%arg0: i32) -> (i32, i32) {
    %c0_i32 = arith.constant 0 : i32
    %c0_i32_0 = arith.constant 0 : i32
    %c0_i32_1 = arith.constant 0 : i32
    return %c0_i32, %c0_i32_0 : i32, i32
  }
  func.func @transform_3(%arg0: i32) -> (i32, i32) {
    %c0_i32 = arith.constant 0 : i32
    %c0_i32_0 = arith.constant 0 : i32
    %c0_i32_1 = arith.constant 0 : i32
    return %c0_i32, %c0_i32_0 : i32, i32
  }
  func.func @transform_4(%arg0: i32) -> (i32, i32, i32) {
    %c0_i32 = arith.constant 0 : i32
    %c0_i32_0 = arith.constant 0 : i32
    %c0_i32_1 = arith.constant 0 : i32
    return %arg0, %c0_i32, %c0_i32_0 : i32, i32, i32
  }
}

</mosaic_0001>

<llo_original>
// kernel: tile.28
$region0: #{tile.28}
  #allocation0 [shape = 's32[1]{0}', space=sflag, size = 0x4, scoped, tag = 'scoped memory for tile.28']
  %s0 = inlined_call_operand.vmem [shape: f32[8], index: 0, kind: input, shape index: {}]
  %s1 = inlined_call_operand.vmem [shape: f32[4,8], index: 1, kind: output, shape index: {}]
  // Predicated region
  $region2: #{tile.28} parent=0 // pred_check
    _
  $region3: #{tile.28} parent=0 // pred_check_branch
    %3 = sbr.rel (0) target = $region5
  $region4: #{tile.28} parent=0 // pred_region
    _
  $region5: #{tile.28} parent=0 // pred_fallthru
    _
  %v4 = vld [vmem:[%s0] ss:$0 sm:$0xff]
  %5 = vst [vmem:[%s1] sm:$0xf] %v4

// kernel: tile.29
$region0: #{tile.29}
  %s0 = inlined_call_operand.vmem [shape: f32[4,8], index: 0, kind: input, shape index: {}]
  %s1 = inlined_call_operand.vmem [shape: f32[1,32], index: 1, kind: output, shape index: {}]
  $region1: #{tile.29} parent=0
    #allocation0 [shape = 'u8[4096]{0}', space=vmem, size = 0x1000, scoped, tag = 'scoped mem for output reshape']
    #allocation1 [shape = 'u8[4096]{0}', space=vmem, size = 0x1000, scoped, tag = 'scoped mem for input reshape']
    %s3 = sshllo.u32 0, 4
    %v4 = vld [vmem:[%s0] sm:%s3]
    %5 = vst [vmem:[#allocation1] sm:%s3] %v4
    %v6 = vld [vmem:[#allocation1] sm:$0x1]
    %vm7 = vcmask 64512
    %8 = vst.msk [vmem:[#allocation0] sm:$0x1] %vm7, %v6
    %s9 = scalar_lea.vmem [#allocation1], 3
    %v10 = vld [vmem:[%s9] sm:$0x1]
    %11 = vrot.lane.b32.xlu0 %v10, 24
    %v12 = vpop.permute.xlu0 %11
    %vm13 = vcmask 261312
    %14 = vst.msk [vmem:[#allocation0] sm:$0x1] %vm13, %v12
    %s15 = scalar_lea.vmem [#allocation1], 2
    %v16 = vld [vmem:[%s15] sm:$0x1]
    %17 = vrot.lane.b32.xlu0 %v16, 16
    %v18 = vpop.permute.xlu0 %17
    %vm19 = vcmask 195712
    %20 = vst.msk [vmem:[#allocation0] sm:$0x1] %vm19, %v18
    %s21 = scalar_lea.vmem [#allocation1], 1
    %v22 = vld [vmem:[%s21] sm:$0x1]
    %23 = vrot.lane.b32.xlu0 %v22, 8
    %v24 = vpop.permute.xlu0 %23
    %vm25 = vcmask 130112
    %26 = vst.msk [vmem:[#allocation0] sm:$0x1] %vm25, %v24
    %s28 = sshllo.u32 0, 1
    %v30 = vld [vmem:[#allocation0] sm:%s28]
    %s31 = sshllo.u32 0, 1
    %32 = vst [vmem:[%s1] sm:%s31] %v30

// kernel: residual_deconv_block.3
$region0: #{residual_deconv_block.3}
  #allocation0 [shape = 'u32[]', space=smem, size = 0x4, offset = 0x4, fixed_abs, tag = 'smem constant byte address 0x4 - core index']
  #allocation1 [shape = 'u32[144,128]{1,0:T(1,128)}', space=vmem, size = 0x12000, scoped, tag = 'internal scratch']
  %s0 = inlined_call_operand.vmem [shape: bf16[8,6,18,4], index: 0, kind: input, shape index: {}]
  %s1 = inlined_call_operand.vmem [shape: bf16[9,4,32], index: 1, kind: input, shape index: {}]
  %s2 = inlined_call_operand.vmem [shape: f32[8,2,32], index: 2, kind: output, shape index: {}]
  %s3 = sld [smem:[#allocation0]]
  $region41: #{residual_deconv_block.3} parent=0
    _
  %s5 = ssub.s32 1, %s3
  %s6 = scalar_select 0, %s5, %s3
  loop: start=0, step=1, limit=10
  $region2: #{residual_deconv_block.3} parent=0 // loop_pre_header
    _
  $region3: #{residual_deconv_block.3} parent=0 // loop_header
    %s8 = sphi 0, %s12
    %p9 = scmp.ge.s32.totalorder %s8, 10
    %s18 = sphi 0, %s20
    %s21 = sphi 0, %s18
    %s22 = sphi 0, %s21
    %s38 = sphi 0, %s22
    %s42 = sphi 0, %s42
    %s44 = sphi 0, %s42
    %s45 = sphi 0, %s44
    %s59 = sphi 0, %s45
    %s65 = sphi 0, %s67
    %s68 = sphi 0, %s65
    %s69 = sphi 0, %s68
    %s85 = sphi 0, %s69
  $region4: #{residual_deconv_block.3} parent=0 // loop_header_branch
    %11 = sbr.rel (%p9) target = $region8
  $region5: #{residual_deconv_block.3} parent=0 // loop_body
    %s13 = ssub.s32 %s8, 1
    %s14 = ssub.s32 %s8, 2
    %s15 = sadd.s32 %s8, 1
    %s16 = ssub.s32 %s8, %s15
    %p17 = scmp.eq.s32.totalorder %s16, 0
    %s19 = sadd.s32 %s18, 1
    %s20 = scalar_select %p17, %s18, %s19
    %p23 = pneg %p17
    %p24 = scmp.eq.s32.totalorder %s8, 7
    %p25 = por %p23, %p24
    %p26 = scmp.ne.s32.totalorder %s18, %s21
    %p27 = scmp.eq.s32.totalorder %s8, 0
    %p28 = por %p26, %p27
    %p29 = scmp.ne.s32.totalorder %s18, %s21
    %p30 = scmp.eq.s32.totalorder %s13, 7
    %p31 = por %p29, %p30
    %p32 = scmp.ne.s32.totalorder %s21, %s22
    %p33 = scmp.eq.s32.totalorder %s13, 0
    %p34 = por %p32, %p33
    %p35 = scmp.ne.s32.totalorder %s21, %s22
    %p36 = scmp.eq.s32.totalorder %s14, 7
    %p37 = por %p35, %p36
    %p39 = scmp.ne.s32.totalorder %s22, %s38
    %p40 = scmp.eq.s32.totalorder %s14, 0
    %p41 = por %p39, %p40
    %s43 = sadd.s32 %s42, 1
    %p46 = scmp.eq.s32.totalorder %s8, 7
    %p47 = scmp.ne.s32.totalorder %s42, %s44
    %p48 = scmp.eq.s32.totalorder %s8, 0
    %p49 = por %p47, %p48
    %p50 = scmp.ne.s32.totalorder %s42, %s44
    %p51 = scmp.eq.s32.totalorder %s13, 7
    %p52 = por %p50, %p51
    %p53 = scmp.ne.s32.totalorder %s44, %s45
    %p54 = scmp.eq.s32.totalorder %s13, 0
    %p55 = por %p53, %p54
    %p56 = scmp.ne.s32.totalorder %s44, %s45
    %p57 = scmp.eq.s32.totalorder %s14, 7
    %p58 = por %p56, %p57
    %p60 = scmp.ne.s32.totalorder %s45, %s59
    %p61 = scmp.eq.s32.totalorder %s14, 0
    %p62 = por %p60, %p61
    %s63 = ssub.s32 %s8, %s15
    %p64 = scmp.eq.s32.totalorder %s63, 0
    %s66 = sadd.s32 %s65, 1
    %s67 = scalar_select %p64, %s65, %s66
    %p70 = pneg %p64
    %p71 = scmp.eq.s32.totalorder %s8, 7
    %p72 = por %p70, %p71
    %p73 = scmp.ne.s32.totalorder %s65, %s68
    %p74 = scmp.eq.s32.totalorder %s8, 0
    %p75 = por %p73, %p74
    %p76 = scmp.ne.s32.totalorder %s65, %s68
    %p77 = scmp.eq.s32.totalorder %s13, 7
    %p78 = por %p76, %p77
    %p79 = scmp.ne.s32.totalorder %s68, %s69
    %p80 = scmp.eq.s32.totalorder %s13, 0
    %p81 = por %p79, %p80
    %p82 = scmp.ne.s32.totalorder %s68, %s69
    %p83 = scmp.eq.s32.totalorder %s14, 7
    %p84 = por %p82, %p83
    %p86 = scmp.ne.s32.totalorder %s69, %s85
    %p87 = scmp.eq.s32.totalorder %s14, 0
    %p88 = por %p86, %p87
    %p89 = scmp.le.s32.totalorder 1, %s8
    %p90 = scmp.lt.s32.totalorder %s8, 9
    %p91 = pnand %p89, %p90
    %p92 = pneg %p91
    // Predicated region
    $region9: #{residual_deconv_block.3} parent=5 // pred_check
      _
    $region10: #{residual_deconv_block.3} parent=5 // pred_check_branch
      %94 = sbr.rel (%p91) target = $region12
    $region11: #{residual_deconv_block.3} parent=5 // pred_region
      %s95 = ssub.s32 %s8, 1
      // Predicated region
      $region13: #{residual_deconv_block.3} parent=11 // pred_check
        %p96 = pneg %p55
      $region14: #{residual_deconv_block.3} parent=11 // pred_check_branch
        %98 = sbr.rel (%p96) target = $region16
      $region15: #{residual_deconv_block.3} parent=11 // pred_region
        _
      $region16: #{residual_deconv_block.3} parent=11 // pred_fallthru
        _
    $region12: #{residual_deconv_block.3} parent=5 // pred_fallthru
      _
    %p99 = scmp.lt.s32.totalorder %s8, 8
    // Predicated region
    $region17: #{residual_deconv_block.3} parent=5 // pred_check
      %p100 = pneg %p99
    $region18: #{residual_deconv_block.3} parent=5 // pred_check_branch
      %102 = sbr.rel (%p100) target = $region20
    $region19: #{residual_deconv_block.3} parent=5 // pred_region
      // Predicated region
      $region21: #{residual_deconv_block.3} parent=19 // pred_check
        %p103 = pneg %p28
      $region22: #{residual_deconv_block.3} parent=19 // pred_check_branch
        %105 = sbr.rel (%p103) target = $region24
      $region23: #{residual_deconv_block.3} parent=19 // pred_region
        %p106 = scmp.lt.s32.totalorder %s8, 7
        %s107 = scalar_select %p106, %s8, 7
        %s108 = smul.addr %s107, 18
        %s109 = smul.addr %s108, 4
        %s110 = scalar_lea.vmem %s0, %s109
      $region24: #{residual_deconv_block.3} parent=19 // pred_fallthru
        _
    $region20: #{residual_deconv_block.3} parent=5 // pred_fallthru
      _
    %p111 = scmp.le.s32.totalorder 1, %s8
    %p112 = scmp.lt.s32.totalorder %s8, 9
    %p113 = pnand %p111, %p112
    %p114 = pneg %p113
    // Predicated region
    $region25: #{residual_deconv_block.3} parent=5 // pred_check
      _
    $region26: #{residual_deconv_block.3} parent=5 // pred_check_branch
      %116 = sbr.rel (%p113) target = $region28
    $region27: #{residual_deconv_block.3} parent=5 // pred_region
      %s117 = ssub.s32 %s8, 1
      %p118 = scmp.lt.s32.totalorder %s13, 7
      %s119 = scalar_select %p118, %s13, 7
      %s120 = smul.addr %s119, 18
      %s121 = smul.addr %s120, 4
      %s122 = scalar_lea.vmem %s0, %s121
      %p123 = pneg %p34
      %p124 = pneg %p31
      %p125 = pneg %p55
      %p126 = pneg %p52
      %p127 = pneg %p81
      %p128 = pneg %p78
      %p129 = scmp.lt.s32.totalorder %s13, 7
      %s130 = scalar_select %p129, %s13, 7
      %s131 = smul.addr %s130, 2
      %s132 = scalar_lea.vmem %s2, %s131
      %p133 = scmp.lt.s32.totalorder %s13, 7
      %s134 = scalar_select %p133, %s13, 7
      %s135 = smul.addr %s134, 18
      %s136 = smul.addr %s135, 4
      %s137 = scalar_lea.vmem %s0, %s136
      %p138 = scmp.lt.s32.totalorder %s13, 7
      %s139 = scalar_select %p138, %s13, 7
      %s140 = smul.addr %s139, 2
      %s141 = scalar_lea.vmem %s2, %s140
      %v143 = vld [vmem:[%s137] sm:$0xf]
      %v144 = vld [vmem:[%s137 + $0x4] sm:$0xf]
      %v145 = vld [vmem:[%s137 + $0x8] sm:$0x1]
      %v146 = vld [vmem:[%s137 + $0xc] sm:$0xf]
      %v147 = vld [vmem:[%s137 + $0x10] sm:$0xf]
      %v148 = vld [vmem:[%s137 + $0x14] sm:$0x1]
      %v149 = vld [vmem:[%s137 + $0x18] sm:$0xf]
      %v150 = vld [vmem:[%s137 + $0x1c] sm:$0xf]
      %v151 = vld [vmem:[%s137 + $0x20] sm:$0x1]
      %v152 = vld [vmem:[%s137 + $0x24] sm:$0xf]
      %v153 = vld [vmem:[%s137 + $0x28] sm:$0xf]
      %v154 = vld [vmem:[%s137 + $0x2c] sm:$0x1]
      %v155 = vld [vmem:[%s137 + $0x30] sm:$0xf]
      %v156 = vld [vmem:[%s137 + $0x34] sm:$0xf]
      %v157 = vld [vmem:[%s137 + $0x38] sm:$0x1]
      %v158 = vld [vmem:[%s137 + $0x3c] sm:$0xf]
      %v159 = vld [vmem:[%s137 + $0x40] sm:$0xf]
      %v160 = vld [vmem:[%s137 + $0x44] sm:$0x1]
      %v161 = vld [vmem:[%s1] sm:$0x3]
      %s162 = scalar_lea.vmem %s1, 6
      %v163 = vld [vmem:[%s162] sm:$0x3]
      %v172 = vunpack.c.l.b16 %v146
      %v173 = vunpack.c.l.b16 %v147
      %v174 = vunpack.c.l.b16 %v149
      %v175 = vunpack.c.l.b16 %v150
      %v176 = vunpack.c.l.b16 %v152
      %v177 = vunpack.c.l.b16 %v153
      %v178 = vunpack.c.l.b16 %v155
      %v179 = vunpack.c.l.b16 %v156
      %v180 = vpack.c.b16 %v173, %v172
      %v181 = vpack.c.b16 %v175, %v174
      %v182 = vpack.c.b16 %v177, %v176
      %v183 = vpack.c.b16 %v179, %v178
      %vm184 = vcmask 31744
      %v186 = vsel %vm184, %v180, 0
      %v189 = vsel %vm184, %v181, 0
      %v192 = vsel %vm184, %v182, 0
      %v195 = vsel %vm184, %v183, 0
      %vm197 = vcmask 1041408
      %v199 = vsel %vm197, %v163, 0
      %201 = vmatprep.subr.bf16.mxu0 0
      %202 = vmatpush1.bf16.msra.mxu0 %v199
      %203 = vmatprep.subr.bf16.mxu0 0
      %204 = vmatpush1.bf16.msra.mxu0 0
      %205 = vmatprep.subr.bf16.mxu0 0
      %206 = vmatpush1.bf16.msra.mxu0 0
      %207 = vmatprep.subr.bf16.mxu0 0
      %208 = vmatpush1.bf16.msra.mxu0 0
      %209 = vmatprep.subr.bf16.mxu0 0
      %210 = vmatpush1.bf16.msra.mxu0 0
      %211 = vmatprep.subr.bf16.mxu0 0
      %212 = vmatpush1.bf16.msra.mxu0 0
      %213 = vmatprep.subr.bf16.mxu0 0
      %214 = vmatpush1.bf16.msra.mxu0 0
      %215 = vmatprep.subr.bf16.mxu0 0
      %216 = vmatpush1.bf16.msra.mxu0 0
      %217 = vmatprep.subr.bf16.mxu0 0
      %218 = vmatpush1.bf16.msra.mxu0 0
      %219 = vmatprep.subr.bf16.mxu0 0
      %220 = vmatpush1.bf16.msra.mxu0 0
      %221 = vmatprep.subr.bf16.mxu0 0
      %222 = vmatpush1.bf16.msra.mxu0 0
      %223 = vmatprep.subr.bf16.mxu0 0
      %224 = vmatpush1.bf16.msra.mxu0 0
      %225 = vmatprep.subr.bf16.mxu0 0
      %226 = vmatpush1.bf16.msra.mxu0 0
      %227 = vmatprep.subr.bf16.mxu0 0
      %228 = vmatpush1.bf16.msra.mxu0 0
      %229 = vmatprep.subr.bf16.mxu0 0
      %230 = vmatpush1.bf16.msra.mxu0 0
      %231 = vmatprep.subr.bf16.mxu0 0
      %232 = vmatpush1.bf16.msra.mxu0 0
      %233 = vmatprep.mubr.bf16.mxu0 0
      %234 = vmatmul.mubr.bf16.gmra.mrb[0].mxu0 %v186
      %v235 = vpop.f32.mrb[0].mxu0
      %v236 = vadd.f32 0.0, %v235
      %v237 = vpop.f32.mrb[0].mxu0
      %v238 = vpop.f32.mrb[0].mxu0
      %v239 = vadd.f32 0.0, %v238
      %v240 = vpop.f32.mrb[0].mxu0
      %241 = vmatprep.mubr.bf16.mxu0 0
      %242 = vmatmul.mubr.bf16.gmra.mrb[0].mxu0 %v189
      %v243 = vpop.f32.mrb[0].mxu0
      %v244 = vadd.f32 0.0, %v243
      %v245 = vpop.f32.mrb[0].mxu0
      %v246 = vpop.f32.mrb[0].mxu0
      %v247 = vadd.f32 0.0, %v246
      %v248 = vpop.f32.mrb[0].mxu0
      %249 = vmatprep.mubr.bf16.mxu0 0
      %250 = vmatmul.mubr.bf16.gmra.mrb[0].mxu0 %v192
      %v251 = vpop.f32.mrb[0].mxu0
      %v252 = vadd.f32 0.0, %v251
      %v253 = vpop.f32.mrb[0].mxu0
      %v254 = vpop.f32.mrb[0].mxu0
      %v255 = vadd.f32 0.0, %v254
      %v256 = vpop.f32.mrb[0].mxu0
      %257 = vmatprep.mubr.bf16.mxu0 0
      %258 = vmatmul.mubr.bf16.gmra.mrb[0].mxu0 %v195
      %v259 = vpop.f32.mrb[0].mxu0
      %v260 = vadd.f32 0.0, %v259
      %v261 = vpop.f32.mrb[0].mxu0
      %v262 = vpop.f32.mrb[0].mxu0
      %v263 = vadd.f32 0.0, %v262
      %v264 = vpop.f32.mrb[0].mxu0
      %265 = vdwg.mxu0
      %v268 = vunpack.c.l.b16 %v143
      %v269 = vunpack.c.l.b16 %v144
      %v270 = vpack.c.b16 %v269, %v268
      %v272 = vsel %vm184, %v270, 0
      %v275 = vsel %vm197, %v161, 0
      %277 = vmatprep.subr.bf16.mxu0 0
      %278 = vmatpush1.bf16.msra.mxu0 %v275
      %279 = vmatprep.subr.bf16.mxu0 0
      %280 = vmatpush1.bf16.msra.mxu0 0
      %281 = vmatprep.subr.bf16.mxu0 0
      %282 = vmatpush1.bf16.msra.mxu0 0
      %283 = vmatprep.subr.bf16.mxu0 0
      %284 = vmatpush1.bf16.msra.mxu0 0
      %285 = vmatprep.subr.bf16.mxu0 0
      %286 = vmatpush1.bf16.msra.mxu0 0
      %287 = vmatprep.subr.bf16.mxu0 0
      %288 = vmatpush1.bf16.msra.mxu0 0
      %289 = vmatprep.subr.bf16.mxu0 0
      %290 = vmatpush1.bf16.msra.mxu0 0
      %291 = vmatprep.subr.bf16.mxu0 0
      %292 = vmatpush1.bf16.msra.mxu0 0
      %293 = vmatprep.subr.bf16.mxu0 0
      %294 = vmatpush1.bf16.msra.mxu0 0
      %295 = vmatprep.subr.bf16.mxu0 0
      %296 = vmatpush1.bf16.msra.mxu0 0
      %297 = vmatprep.subr.bf16.mxu0 0
      %298 = vmatpush1.bf16.msra.mxu0 0
      %299 = vmatprep.subr.bf16.mxu0 0
      %300 = vmatpush1.bf16.msra.mxu0 0
      %301 = vmatprep.subr.bf16.mxu0 0
      %302 = vmatpush1.bf16.msra.mxu0 0
      %303 = vmatprep.subr.bf16.mxu0 0
      %304 = vmatpush1.bf16.msra.mxu0 0
      %305 = vmatprep.subr.bf16.mxu0 0
      %306 = vmatpush1.bf16.msra.mxu0 0
      %307 = vmatprep.subr.bf16.mxu0 0
      %308 = vmatpush1.bf16.msra.mxu0 0
      %309 = vmatprep.mubr.bf16.mxu0 0
      %310 = vmatmul.mubr.bf16.gmra.mrb[0].mxu0 %v272
      %v311 = vpop.f32.mrb[0].mxu0
      %v312 = vadd.f32 %v236, %v311
      %v313 = vpop.f32.mrb[0].mxu0
      %v314 = vpop.f32.mrb[0].mxu0
      %v315 = vadd.f32 %v239, %v314
      %v316 = vpop.f32.mrb[0].mxu0
      %317 = vmatprep.mubr.bf16.mxu0 0
      %318 = vmatmul.mubr.bf16.gmra.mrb[0].mxu0 %v186
      %v319 = vpop.f32.mrb[0].mxu0
      %v320 = vadd.f32 %v244, %v319
      %v321 = vpop.f32.mrb[0].mxu0
      %v322 = vpop.f32.mrb[0].mxu0
      %v323 = vadd.f32 %v247, %v322
      %v324 = vpop.f32.mrb[0].mxu0
      %325 = vmatprep.mubr.bf16.mxu0 0
      %326 = vmatmul.mubr.bf16.gmra.mrb[0].mxu0 %v189
      %v327 = vpop.f32.mrb[0].mxu0
      %v328 = vadd.f32 %v252, %v327
      %v329 = vpop.f32.mrb[0].mxu0
      %v330 = vpop.f32.mrb[0].mxu0
      %v331 = vadd.f32 %v255, %v330
      %v332 = vpop.f32.mrb[0].mxu0
      %333 = vmatprep.mubr.bf16.mxu0 0
      %334 = vmatmul.mubr.bf16.gmra.mrb[0].mxu0 %v192
      %v335 = vpop.f32.mrb[0].mxu0
      %v336 = vadd.f32 %v260, %v335
      %v337 = vpop.f32.mrb[0].mxu0
      %v338 = vpop.f32.mrb[0].mxu0
      %v339 = vadd.f32 %v263, %v338
      %v340 = vpop.f32.mrb[0].mxu0
      %341 = vdwg.mxu0
      %s342 = scalar_lea.vmem %s1, 12
      %v343 = vld [vmem:[%s342] sm:$0x3]
      %v346 = vunpack.c.l.b16 %v158
      %v347 = vunpack.c.l.b16 %v159
      %v348 = vpack.c.b16 %v347, %v346
      %v350 = vsel %vm184, %v348, 0
      %v353 = vsel %vm197, %v343, 0
      %355 = vmatprep.subr.bf16.mxu0 0
      %356 = vmatpush1.bf16.msra.mxu0 %v353
      %357 = vmatprep.subr.bf16.mxu0 0
      %358 = vmatpush1.bf16.msra.mxu0 0
      %359 = vmatprep.subr.bf16.mxu0 0
      %360 = vmatpush1.bf16.msra.mxu0 0
      %361 = vmatprep.subr.bf16.mxu0 0
      %362 = vmatpush1.bf16.msra.mxu0 0
      %363 = vmatprep.subr.bf16.mxu0 0
      %364 = vmatpush1.bf16.msra.mxu0 0
      %365 = vmatprep.subr.bf16.mxu0 0
      %366 = vmatpush1.bf16.msra.mxu0 0
      %367 = vmatprep.subr.bf16.mxu0 0
      %368 = vmatpush1.bf16.msra.mxu0 0
      %369 = vmatprep.subr.bf16.mxu0 0
      %370 = vmatpush1.bf16.msra.mxu0 0
      %371 = vmatprep.subr.bf16.mxu0 0
      %372 = vmatpush1.bf16.msra.mxu0 0
      %373 = vmatprep.subr.bf16.mxu0 0
      %374 = vmatpush1.bf16.msra.mxu0 0
      %375 = vmatprep.subr.bf16.mxu0 0
      %376 = vmatpush1.bf16.msra.mxu0 0
      %377 = vmatprep.subr.bf16.mxu0 0
      %378 = vmatpush1.bf16.msra.mxu0 0
      %379 = vmatprep.subr.bf16.mxu0 0
      %380 = vmatpush1.bf16.msra.mxu0 0
      %381 = vmatprep.subr.bf16.mxu0 0
      %382 = vmatpush1.bf16.msra.mxu0 0
      %383 = vmatprep.subr.bf16.mxu0 0
      %384 = vmatpush1.bf16.msra.mxu0 0
      %385 = vmatprep.subr.bf16.mxu0 0
      %386 = vmatpush1.bf16.msra.mxu0 0
      %387 = vmatprep.mubr.bf16.mxu0 0
      %388 = vmatmul.mubr.bf16.gmra.mrb[0].mxu0 %v189
      %v389 = vpop.f32.mrb[0].mxu0
      %v390 = vadd.f32 0.0, %v389
      %v391 = vpop.f32.mrb[0].mxu0
      %v392 = vpop.f32.mrb[0].mxu0
      %v393 = vadd.f32 0.0, %v392
      %v394 = vpop.f32.mrb[0].mxu0
      %395 = vmatprep.mubr.bf16.mxu0 0
      %396 = vmatmul.mubr.bf16.gmra.mrb[0].mxu0 %v192
      %v397 = vpop.f32.mrb[0].mxu0
      %v398 = vadd.f32 0.0, %v397
      %v399 = vpop.f32.mrb[0].mxu0
      %v400 = vpop.f32.mrb[0].mxu0
      %v401 = vadd.f32 0.0, %v400
      %v402 = vpop.f32.mrb[0].mxu0
      %403 = vmatprep.mubr.bf16.mxu0 0
      %404 = vmatmul.mubr.bf16.gmra.mrb[0].mxu0 %v195
      %v405 = vpop.f32.mrb[0].mxu0
      %v406 = vadd.f32 0.0, %v405
      %v407 = vpop.f32.mrb[0].mxu0
      %v408 = vpop.f32.mrb[0].mxu0
      %v409 = vadd.f32 0.0, %v408
      %v410 = vpop.f32.mrb[0].mxu0
      %411 = vmatprep.mubr.bf16.mxu0 0
      %412 = vmatmul.mubr.bf16.gmra.mrb[0].mxu0 %v350
      %v413 = vpop.f32.mrb[0].mxu0
      %v414 = vadd.f32 0.0, %v413
      %v415 = vpop.f32.mrb[0].mxu0
      %v416 = vpop.f32.mrb[0].mxu0
      %v417 = vadd.f32 0.0, %v416
      %v418 = vpop.f32.mrb[0].mxu0
      %419 = vdwg.mxu0
      %v420 = vadd.f32 %v312, %v390
      %v421 = vadd.f32 %v315, %v393
      %v422 = vadd.f32 %v320, %v398
      %v423 = vadd.f32 %v323, %v401
      %v424 = vadd.f32 %v328, %v406
      %v425 = vadd.f32 %v331, %v409
      %v426 = vadd.f32 %v336, %v414
      %v427 = vadd.f32 %v339, %v417
      %vm428 = vsmask.f32 3328
      %vm429 = vsmask.f32 7440
      %vm430 = vmor %vm428, %vm429
      %v432 = vshrl.u32 %v143, 16
      %v434 = vrot.slane %v432, 4
      %v435 = vshll.u32 %v143, 16
      %v437 = vrot.slane %v435, 5
      %v438 = vor.u32 %v434, %v437
      %v439 = vrot.slane %v438, 4
      %v441 = vshll.u32 %v144, 16
      %v443 = vrot.slane %v441, 5
      %v444 = vsel %vm430, %v439, %v443
      %v445 = vshrl.u32 %v144, 16
      %v447 = vrot.slane %v445, 4
      %v448 = vor.u32 %v447, %v443
      %v449 = vrot.slane %v448, 4
      %v451 = vshll.u32 %v145, 16
      %v453 = vrot.slane %v451, 5
      %v454 = vsel %vm430, %v449, %v453
      %v456 = vshrl.u32 %v146, 16
      %v458 = vrot.slane %v456, 4
      %v459 = vshll.u32 %v146, 16
      %v461 = vrot.slane %v459, 5
      %v462 = vor.u32 %v458, %v461
      %v463 = vrot.slane %v462, 4
      %v465 = vshll.u32 %v147, 16
      %v467 = vrot.slane %v465, 5
      %v468 = vsel %vm430, %v463, %v467
      %v469 = vshrl.u32 %v147, 16
      %v471 = vrot.slane %v469, 4
      %v472 = vor.u32 %v471, %v467
      %v473 = vrot.slane %v472, 4
      %v475 = vshll.u32 %v148, 16
      %v477 = vrot.slane %v475, 5
      %v478 = vsel %vm430, %v473, %v477
      %v480 = vshrl.u32 %v149, 16
      %v482 = vrot.slane %v480, 4
      %v483 = vshll.u32 %v149, 16
      %v485 = vrot.slane %v483, 5
      %v486 = vor.u32 %v482, %v485
      %v487 = vrot.slane %v486, 4
      %v489 = vshll.u32 %v150, 16
      %v491 = vrot.slane %v489, 5
      %v492 = vsel %vm430, %v487, %v491
      %v493 = vshrl.u32 %v150, 16
      %v495 = vrot.slane %v493, 4
      %v496 = vor.u32 %v495, %v491
      %v497 = vrot.slane %v496, 4
      %v499 = vshll.u32 %v151, 16
      %v501 = vrot.slane %v499, 5
      %v502 = vsel %vm430, %v497, %v501
      %v504 = vshrl.u32 %v152, 16
      %v506 = vrot.slane %v504, 4
      %v507 = vshll.u32 %v152, 16
      %v509 = vrot.slane %v507, 5
      %v510 = vor.u32 %v506, %v509
      %v511 = vrot.slane %v510, 4
      %v513 = vshll.u32 %v153, 16
      %v515 = vrot.slane %v513, 5
      %v516 = vsel %vm430, %v511, %v515
      %v517 = vshrl.u32 %v153, 16
      %v519 = vrot.slane %v517, 4
      %v520 = vor.u32 %v519, %v515
      %v521 = vrot.slane %v520, 4
      %v523 = vshll.u32 %v154, 16
      %v525 = vrot.slane %v523, 5
      %v526 = vsel %vm430, %v521, %v525
      %s527 = scalar_lea.vmem %s1, 2
      %v528 = vld [vmem:[%s527] sm:$0x3]
      %v529 = vunpack.c.l.b16 %v444
      %v530 = vunpack.c.l.b16 %v454
      %v531 = vunpack.c.l.b16 %v468
      %v532 = vunpack.c.l.b16 %v478
      %v533 = vunpack.c.l.b16 %v492
      %v534 = vunpack.c.l.b16 %v502
      %v535 = vunpack.c.l.b16 %v516
      %v536 = vunpack.c.l.b16 %v526
      %v537 = vpack.c.b16 %v530, %v529
      %v538 = vpack.c.b16 %v532, %v531
      %v539 = vpack.c.b16 %v534, %v533
      %v540 = vpack.c.b16 %v536, %v535
      %v542 = vsel %vm184, %v537, 0
      %v545 = vsel %vm184, %v538, 0
      %v548 = vsel %vm184, %v539, 0
      %v551 = vsel %vm184, %v540, 0
      %v554 = vsel %vm197, %v528, 0
      %556 = vmatprep.subr.bf16.mxu0 0
      %557 = vmatpush1.bf16.msra.mxu0 %v554
      %558 = vmatprep.subr.bf16.mxu0 0
      %559 = vmatpush1.bf16.msra.mxu0 0
      %560 = vmatprep.subr.bf16.mxu0 0
      %561 = vmatpush1.bf16.msra.mxu0 0
      %562 = vmatprep.subr.bf16.mxu0 0
      %563 = vmatpush1.bf16.msra.mxu0 0
      %564 = vmatprep.subr.bf16.mxu0 0
      %565 = vmatpush1.bf16.msra.mxu0 0
      %566 = vmatprep.subr.bf16.mxu0 0
      %567 = vmatpush1.bf16.msra.mxu0 0
      %568 = vmatprep.subr.bf16.mxu0 0
      %569 = vmatpush1.bf16.msra.mxu0 0
      %570 = vmatprep.subr.bf16.mxu0 0
      %571 = vmatpush1.bf16.msra.mxu0 0
      %572 = vmatprep.subr.bf16.mxu0 0
      %573 = vmatpush1.bf16.msra.mxu0 0
      %574 = vmatprep.subr.bf16.mxu0 0
      %575 = vmatpush1.bf16.msra.mxu0 0
      %576 = vmatprep.subr.bf16.mxu0 0
      %577 = vmatpush1.bf16.msra.mxu0 0
      %578 = vmatprep.subr.bf16.mxu0 0
      %579 = vmatpush1.bf16.msra.mxu0 0
      %580 = vmatprep.subr.bf16.mxu0 0
      %581 = vmatpush1.bf16.msra.mxu0 0
      %582 = vmatprep.subr.bf16.mxu0 0
      %583 = vmatpush1.bf16.msra.mxu0 0
      %584 = vmatprep.subr.bf16.mxu0 0
      %585 = vmatpush1.bf16.msra.mxu0 0
      %586 = vmatprep.subr.bf16.mxu0 0
      %587 = vmatpush1.bf16.msra.mxu0 0
      %588 = vmatprep.mubr.bf16.mxu0 0
      %589 = vmatmul.mubr.bf16.gmra.mrb[0].mxu0 %v542
      %v590 = vpop.f32.mrb[0].mxu0
      %v591 = vadd.f32 0.0, %v590
      %v592 = vpop.f32.mrb[0].mxu0
      %v593 = vpop.f32.mrb[0].mxu0
      %v594 = vadd.f32 0.0, %v593
      %v595 = vpop.f32.mrb[0].mxu0
      %596 = vmatprep.mubr.bf16.mxu0 0
      %597 = vmatmul.mubr.bf16.gmra.mrb[0].mxu0 %v545
      %v598 = vpop.f32.mrb[0].mxu0
      %v599 = vadd.f32 0.0, %v598
      %v600 = vpop.f32.mrb[0].mxu0
      %v601 = vpop.f32.mrb[0].mxu0
      %v602 = vadd.f32 0.0, %v601
      %v603 = vpop.f32.mrb[0].mxu0
      %604 = vmatprep.mubr.bf16.mxu0 0
      %605 = vmatmul.mubr.bf16.gmra.mrb[0].mxu0 %v548
      %v606 = vpop.f32.mrb[0].mxu0
      %v607 = vadd.f32 0.0, %v606
      %v608 = vpop.f32.mrb[0].mxu0
      %v609 = vpop.f32.mrb[0].mxu0
      %v610 = vadd.f32 0.0, %v609
      %v611 = vpop.f32.mrb[0].mxu0
      %612 = vmatprep.mubr.bf16.mxu0 0
      %613 = vmatmul.mubr.bf16.gmra.mrb[0].mxu0 %v551
      %v614 = vpop.f32.mrb[0].mxu0
      %v615 = vadd.f32 0.0, %v614
      %v616 = vpop.f32.mrb[0].mxu0
      %v617 = vpop.f32.mrb[0].mxu0
      %v618 = vadd.f32 0.0, %v617
      %v619 = vpop.f32.mrb[0].mxu0
      %620 = vdwg.mxu0
      %v621 = vadd.f32 %v420, %v591
      %v622 = vadd.f32 %v421, %v594
      %v623 = vadd.f32 %v422, %v599
      %v624 = vadd.f32 %v423, %v602
      %v625 = vadd.f32 %v424, %v607
      %v626 = vadd.f32 %v425, %v610
      %v627 = vadd.f32 %v426, %v615
      %v628 = vadd.f32 %v427, %v618
      %v630 = vshrl.u32 %v155, 16
      %v632 = vrot.slane %v630, 4
      %v633 = vshll.u32 %v155, 16
      %v635 = vrot.slane %v633, 5
      %v636 = vor.u32 %v632, %v635
      %v637 = vrot.slane %v636, 4
      %v639 = vshll.u32 %v156, 16
      %v641 = vrot.slane %v639, 5
      %v642 = vsel %vm430, %v637, %v641
      %v643 = vshrl.u32 %v156, 16
      %v645 = vrot.slane %v643, 4
      %v646 = vor.u32 %v645, %v641
      %v647 = vrot.slane %v646, 4
      %v649 = vshll.u32 %v157, 16
      %v651 = vrot.slane %v649, 5
      %v652 = vsel %vm430, %v647, %v651
      %s653 = scalar_lea.vmem %s1, 8
      %v654 = vld [vmem:[%s653] sm:$0x3]
      %v655 = vunpack.c.l.b16 %v642
      %v656 = vunpack.c.l.b16 %v652
      %v657 = vpack.c.b16 %v656, %v655
      %v659 = vsel %vm184, %v657, 0
      %v662 = vsel %vm197, %v654, 0
      %664 = vmatprep.subr.bf16.mxu0 0
      %665 = vmatpush1.bf16.msra.mxu0 %v662
      %666 = vmatprep.subr.bf16.mxu0 0
      %667 = vmatpush1.bf16.msra.mxu0 0
      %668 = vmatprep.subr.bf16.mxu0 0
      %669 = vmatpush1.bf16.msra.mxu0 0
      %670 = vmatprep.subr.bf16.mxu0 0
      %671 = vmatpush1.bf16.msra.mxu0 0
      %672 = vmatprep.subr.bf16.mxu0 0
      %673 = vmatpush1.bf16.msra.mxu0 0
      %674 = vmatprep.subr.bf16.mxu0 0
      %675 = vmatpush1.bf16.msra.mxu0 0
      %676 = vmatprep.subr.bf16.mxu0 0
      %677 = vmatpush1.bf16.msra.mxu0 0
      %678 = vmatprep.subr.bf16.mxu0 0
      %679 = vmatpush1.bf16.msra.mxu0 0
      %680 = vmatprep.subr.bf16.mxu0 0
      %681 = vmatpush1.bf16.msra.mxu0 0
      %682 = vmatprep.subr.bf16.mxu0 0
      %683 = vmatpush1.bf16.msra.mxu0 0
      %684 = vmatprep.subr.bf16.mxu0 0
      %685 = vmatpush1.bf16.msra.mxu0 0
      %686 = vmatprep.subr.bf16.mxu0 0
      %687 = vmatpush1.bf16.msra.mxu0 0
      %688 = vmatprep.subr.bf16.mxu0 0
      %689 = vmatpush1.bf16.msra.mxu0 0
      %690 = vmatprep.subr.bf16.mxu0 0
      %691 = vmatpush1.bf16.msra.mxu0 0
      %692 = vmatprep.subr.bf16.mxu0 0
      %693 = vmatpush1.bf16.msra.mxu0 0
      %694 = vmatprep.subr.bf16.mxu0 0
      %695 = vmatpush1.bf16.msra.mxu0 0
      %696 = vmatprep.mubr.bf16.mxu0 0
      %697 = vmatmul.mubr.bf16.gmra.mrb[0].mxu0 %v545
      %v698 = vpop.f32.mrb[0].mxu0
      %v699 = vadd.f32 0.0, %v698
      %v700 = vpop.f32.mrb[0].mxu0
      %v701 = vpop.f32.mrb[0].mxu0
      %v702 = vadd.f32 0.0, %v701
      %v703 = vpop.f32.mrb[0].mxu0
      %704 = vmatprep.mubr.bf16.mxu0 0
      %705 = vmatmul.mubr.bf16.gmra.mrb[0].mxu0 %v548
      %v706 = vpop.f32.mrb[0].mxu0
      %v707 = vadd.f32 0.0, %v706
      %v708 = vpop.f32.mrb[0].mxu0
      %v709 = vpop.f32.mrb[0].mxu0
      %v710 = vadd.f32 0.0, %v709
      %v711 = vpop.f32.mrb[0].mxu0
      %712 = vmatprep.mubr.bf16.mxu0 0
      %713 = vmatmul.mubr.bf16.gmra.mrb[0].mxu0 %v551
      %v714 = vpop.f32.mrb[0].mxu0
      %v715 = vadd.f32 0.0, %v714
      %v716 = vpop.f32.mrb[0].mxu0
      %v717 = vpop.f32.mrb[0].mxu0
      %v718 = vadd.f32 0.0, %v717
      %v719 = vpop.f32.mrb[0].mxu0
      %720 = vmatprep.mubr.bf16.mxu0 0
      %721 = vmatmul.mubr.bf16.gmra.mrb[0].mxu0 %v659
      %v722 = vpop.f32.mrb[0].mxu0
      %v723 = vadd.f32 0.0, %v722
      %v724 = vpop.f32.mrb[0].mxu0
      %v725 = vpop.f32.mrb[0].mxu0
      %v726 = vadd.f32 0.0, %v725
      %v727 = vpop.f32.mrb[0].mxu0
      %728 = vdwg.mxu0
      %v729 = vadd.f32 %v621, %v699
      %v730 = vadd.f32 %v622, %v702
      %v731 = vadd.f32 %v623, %v707
      %v732 = vadd.f32 %v624, %v710
      %v733 = vadd.f32 %v625, %v715
      %v734 = vadd.f32 %v626, %v718
      %v735 = vadd.f32 %v627, %v723
      %v736 = vadd.f32 %v628, %v726
      %v738 = vshrl.u32 %v158, 16
      %v740 = vrot.slane %v738, 4
      %v741 = vshll.u32 %v158, 16
      %v743 = vrot.slane %v741, 5
      %v744 = vor.u32 %v740, %v743
      %v745 = vrot.slane %v744, 4
      %v747 = vshll.u32 %v159, 16
      %v749 = vrot.slane %v747, 5
      %v750 = vsel %vm430, %v745, %v749
      %v751 = vshrl.u32 %v159, 16
      %v753 = vrot.slane %v751, 4
      %v754 = vor.u32 %v753, %v749
      %v755 = vrot.slane %v754, 4
      %v757 = vshll.u32 %v160, 16
      %v759 = vrot.slane %v757, 5
      %v760 = vsel %vm430, %v755, %v759
      %s761 = scalar_lea.vmem %s1, 14
      %v762 = vld [vmem:[%s761] sm:$0x3]
      %v763 = vunpack.c.l.b16 %v750
      %v764 = vunpack.c.l.b16 %v760
      %v765 = vpack.c.b16 %v764, %v763
      %v767 = vsel %vm184, %v765, 0
      %v770 = vsel %vm197, %v762, 0
      %772 = vmatprep.subr.bf16.mxu0 0
      %773 = vmatpush1.bf16.msra.mxu0 %v770
      %774 = vmatprep.subr.bf16.mxu0 0
      %775 = vmatpush1.bf16.msra.mxu0 0
      %776 = vmatprep.subr.bf16.mxu0 0
      %777 = vmatpush1.bf16.msra.mxu0 0
      %778 = vmatprep.subr.bf16.mxu0 0
      %779 = vmatpush1.bf16.msra.mxu0 0
      %780 = vmatprep.subr.bf16.mxu0 0
      %781 = vmatpush1.bf16.msra.mxu0 0
      %782 = vmatprep.subr.bf16.mxu0 0
      %783 = vmatpush1.bf16.msra.mxu0 0
      %784 = vmatprep.subr.bf16.mxu0 0
      %785 = vmatpush1.bf16.msra.mxu0 0
      %786 = vmatprep.subr.bf16.mxu0 0
      %787 = vmatpush1.bf16.msra.mxu0 0
      %788 = vmatprep.subr.bf16.mxu0 0
      %789 = vmatpush1.bf16.msra.mxu0 0
      %790 = vmatprep.subr.bf16.mxu0 0
      %791 = vmatpush1.bf16.msra.mxu0 0
      %792 = vmatprep.subr.bf16.mxu0 0
      %793 = vmatpush1.bf16.msra.mxu0 0
      %794 = vmatprep.subr.bf16.mxu0 0
      %795 = vmatpush1.bf16.msra.mxu0 0
      %796 = vmatprep.subr.bf16.mxu0 0
      %797 = vmatpush1.bf16.msra.mxu0 0
      %798 = vmatprep.subr.bf16.mxu0 0
      %799 = vmatpush1.bf16.msra.mxu0 0
      %800 = vmatprep.subr.bf16.mxu0 0
      %801 = vmatpush1.bf16.msra.mxu0 0
      %802 = vmatprep.subr.bf16.mxu0 0
      %803 = vmatpush1.bf16.msra.mxu0 0
      %804 = vmatprep.mubr.bf16.mxu0 0
      %805 = vmatmul.mubr.bf16.gmra.mrb[0].mxu0 %v548
      %v806 = vpop.f32.mrb[0].mxu0
      %v807 = vadd.f32 0.0, %v806
      %v808 = vpop.f32.mrb[0].mxu0
      %v809 = vpop.f32.mrb[0].mxu0
      %v810 = vadd.f32 0.0, %v809
      %v811 = vpop.f32.mrb[0].mxu0
      %812 = vmatprep.mubr.bf16.mxu0 0
      %813 = vmatmul.mubr.bf16.gmra.mrb[0].mxu0 %v551
      %v814 = vpop.f32.mrb[0].mxu0
      %v815 = vadd.f32 0.0, %v814
      %v816 = vpop.f32.mrb[0].mxu0
      %v817 = vpop.f32.mrb[0].mxu0
      %v818 = vadd.f32 0.0, %v817
      %v819 = vpop.f32.mrb[0].mxu0
      %820 = vmatprep.mubr.bf16.mxu0 0
      %821 = vmatmul.mubr.bf16.gmra.mrb[0].mxu0 %v659
      %v822 = vpop.f32.mrb[0].mxu0
      %v823 = vadd.f32 0.0, %v822
      %v824 = vpop.f32.mrb[0].mxu0
      %v825 = vpop.f32.mrb[0].mxu0
      %v826 = vadd.f32 0.0, %v825
      %v827 = vpop.f32.mrb[0].mxu0
      %828 = vmatprep.mubr.bf16.mxu0 0
      %829 = vmatmul.mubr.bf16.gmra.mrb[0].mxu0 %v767
      %v830 = vpop.f32.mrb[0].mxu0
      %v831 = vadd.f32 0.0, %v830
      %v832 = vpop.f32.mrb[0].mxu0
      %v833 = vpop.f32.mrb[0].mxu0
      %v834 = vadd.f32 0.0, %v833
      %v835 = vpop.f32.mrb[0].mxu0
      %836 = vdwg.mxu0
      %v837 = vadd.f32 %v729, %v807
      %v838 = vadd.f32 %v730, %v810
      %v839 = vadd.f32 %v731, %v815
      %v840 = vadd.f32 %v732, %v818
      %v841 = vadd.f32 %v733, %v823
      %v842 = vadd.f32 %v734, %v826
      %v843 = vadd.f32 %v735, %v831
      %v844 = vadd.f32 %v736, %v834
      %vm849 = vcmask 1042432
      %vm850 = vcmask 1046532
      %vm851 = vmor %vm849, %vm850
      %v852 = vrot.slane %v143, 5
      %v853 = vrot.slane %v852, 4
      %v854 = vrot.slane %v144, 5
      %v855 = vsel %vm851, %v853, %v854
      %v856 = vrot.slane %v854, 4
      %v857 = vrot.slane %v145, 5
      %v858 = vsel %vm851, %v856, %v857
      %v859 = vrot.slane %v146, 5
      %v860 = vrot.slane %v859, 4
      %v861 = vrot.slane %v147, 5
      %v862 = vsel %vm851, %v860, %v861
      %v863 = vrot.slane %v861, 4
      %v864 = vrot.slane %v148, 5
      %v865 = vsel %vm851, %v863, %v864
      %v866 = vrot.slane %v149, 5
      %v867 = vrot.slane %v866, 4
      %v868 = vrot.slane %v150, 5
      %v869 = vsel %vm851, %v867, %v868
      %v870 = vrot.slane %v868, 4
      %v871 = vrot.slane %v151, 5
      %v872 = vsel %vm851, %v870, %v871
      %v873 = vrot.slane %v152, 5
      %v874 = vrot.slane %v873, 4
      %v875 = vrot.slane %v153, 5
      %v876 = vsel %vm851, %v874, %v875
      %v877 = vrot.slane %v875, 4
      %v878 = vrot.slane %v154, 5
      %v879 = vsel %vm851, %v877, %v878
      %s880 = scalar_lea.vmem %s1, 4
      %v881 = vld [vmem:[%s880] sm:$0x3]
      %v882 = vunpack.c.l.b16 %v855
      %v883 = vunpack.c.l.b16 %v858
      %v884 = vunpack.c.l.b16 %v862
      %v885 = vunpack.c.l.b16 %v865
      %v886 = vunpack.c.l.b16 %v869
      %v887 = vunpack.c.l.b16 %v872
      %v888 = vunpack.c.l.b16 %v876
      %v889 = vunpack.c.l.b16 %v879
      %v890 = vpack.c.b16 %v883, %v882
      %v891 = vpack.c.b16 %v885, %v884
      %v892 = vpack.c.b16 %v887, %v886
      %v893 = vpack.c.b16 %v889, %v888
      %v895 = vsel %vm184, %v890, 0
      %v898 = vsel %vm184, %v891, 0
      %v901 = vsel %vm184, %v892, 0
      %v904 = vsel %vm184, %v893, 0
      %v907 = vsel %vm197, %v881, 0
      %909 = vmatprep.subr.bf16.mxu0 0
      %910 = vmatpush1.bf16.msra.mxu0 %v907
      %911 = vmatprep.subr.bf16.mxu0 0
      %912 = vmatpush1.bf16.msra.mxu0 0
      %913 = vmatprep.subr.bf16.mxu0 0
      %914 = vmatpush1.bf16.msra.mxu0 0
      %915 = vmatprep.subr.bf16.mxu0 0
      %916 = vmatpush1.bf16.msra.mxu0 0
      %917 = vmatprep.subr.bf16.mxu0 0
      %918 = vmatpush1.bf16.msra.mxu0 0
      %919 = vmatprep.subr.bf16.mxu0 0
      %920 = vmatpush1.bf16.msra.mxu0 0
      %921 = vmatprep.subr.bf16.mxu0 0
      %922 = vmatpush1.bf16.msra.mxu0 0
      %923 = vmatprep.subr.bf16.mxu0 0
      %924 = vmatpush1.bf16.msra.mxu0 0
      %925 = vmatprep.subr.bf16.mxu0 0
      %926 = vmatpush1.bf16.msra.mxu0 0
      %927 = vmatprep.subr.bf16.mxu0 0
      %928 = vmatpush1.bf16.msra.mxu0 0
      %929 = vmatprep.subr.bf16.mxu0 0
      %930 = vmatpush1.bf16.msra.mxu0 0
      %931 = vmatprep.subr.bf16.mxu0 0
      %932 = vmatpush1.bf16.msra.mxu0 0
      %933 = vmatprep.subr.bf16.mxu0 0
      %934 = vmatpush1.bf16.msra.mxu0 0
      %935 = vmatprep.subr.bf16.mxu0 0
      %936 = vmatpush1.bf16.msra.mxu0 0
      %937 = vmatprep.subr.bf16.mxu0 0
      %938 = vmatpush1.bf16.msra.mxu0 0
      %939 = vmatprep.subr.bf16.mxu0 0
      %940 = vmatpush1.bf16.msra.mxu0 0
      %941 = vmatprep.mubr.bf16.mxu0 0
      %942 = vmatmul.mubr.bf16.gmra.mrb[0].mxu0 %v895
      %v943 = vpop.f32.mrb[0].mxu0
      %v944 = vadd.f32 0.0, %v943
      %v945 = vpop.f32.mrb[0].mxu0
      %v946 = vpop.f32.mrb[0].mxu0
      %v947 = vadd.f32 0.0, %v946
      %v948 = vpop.f32.mrb[0].mxu0
      %949 = vmatprep.mubr.bf16.mxu0 0
      %950 = vmatmul.mubr.bf16.gmra.mrb[0].mxu0 %v898
      %v951 = vpop.f32.mrb[0].mxu0
      %v952 = vadd.f32 0.0, %v951
      %v953 = vpop.f32.mrb[0].mxu0
      %v954 = vpop.f32.mrb[0].mxu0
      %v955 = vadd.f32 0.0, %v954
      %v956 = vpop.f32.mrb[0].mxu0
      %957 = vmatprep.mubr.bf16.mxu0 0
      %958 = vmatmul.mubr.bf16.gmra.mrb[0].mxu0 %v901
      %v959 = vpop.f32.mrb[0].mxu0
      %v960 = vadd.f32 0.0, %v959
      %v961 = vpop.f32.mrb[0].mxu0
      %v962 = vpop.f32.mrb[0].mxu0
      %v963 = vadd.f32 0.0, %v962
      %v964 = vpop.f32.mrb[0].mxu0
      %965 = vmatprep.mubr.bf16.mxu0 0
      %966 = vmatmul.mubr.bf16.gmra.mrb[0].mxu0 %v904
      %v967 = vpop.f32.mrb[0].mxu0
      %v968 = vadd.f32 0.0, %v967
      %v969 = vpop.f32.mrb[0].mxu0
      %v970 = vpop.f32.mrb[0].mxu0
      %v971 = vadd.f32 0.0, %v970
      %v972 = vpop.f32.mrb[0].mxu0
      %973 = vdwg.mxu0
      %v974 = vadd.f32 %v837, %v944
      %v975 = vadd.f32 %v838, %v947
      %v976 = vadd.f32 %v839, %v952
      %v977 = vadd.f32 %v840, %v955
      %v978 = vadd.f32 %v841, %v960
      %v979 = vadd.f32 %v842, %v963
      %v980 = vadd.f32 %v843, %v968
      %v981 = vadd.f32 %v844, %v971
      %v983 = vrot.slane %v155, 5
      %v984 = vrot.slane %v983, 4
      %v985 = vrot.slane %v156, 5
      %v986 = vsel %vm851, %v984, %v985
      %v987 = vrot.slane %v985, 4
      %v988 = vrot.slane %v157, 5
      %v989 = vsel %vm851, %v987, %v988
      %s990 = scalar_lea.vmem %s1, 10
      %v991 = vld [vmem:[%s990] sm:$0x3]
      %v992 = vunpack.c.l.b16 %v986
      %v993 = vunpack.c.l.b16 %v989
      %v994 = vpack.c.b16 %v993, %v992
      %v996 = vsel %vm184, %v994, 0
      %v999 = vsel %vm197, %v991, 0
      %1001 = vmatprep.subr.bf16.mxu0 0
      %1002 = vmatpush1.bf16.msra.mxu0 %v999
      %1003 = vmatprep.subr.bf16.mxu0 0
      %1004 = vmatpush1.bf16.msra.mxu0 0
      %1005 = vmatprep.subr.bf16.mxu0 0
      %1006 = vmatpush1.bf16.msra.mxu0 0
      %1007 = vmatprep.subr.bf16.mxu0 0
      %1008 = vmatpush1.bf16.msra.mxu0 0
      %1009 = vmatprep.subr.bf16.mxu0 0
      %1010 = vmatpush1.bf16.msra.mxu0 0
      %1011 = vmatprep.subr.bf16.mxu0 0
      %1012 = vmatpush1.bf16.msra.mxu0 0
      %1013 = vmatprep.subr.bf16.mxu0 0
      %1014 = vmatpush1.bf16.msra.mxu0 0
      %1015 = vmatprep.subr.bf16.mxu0 0
      %1016 = vmatpush1.bf16.msra.mxu0 0
      %1017 = vmatprep.subr.bf16.mxu0 0
      %1018 = vmatpush1.bf16.msra.mxu0 0
      %1019 = vmatprep.subr.bf16.mxu0 0
      %1020 = vmatpush1.bf16.msra.mxu0 0
      %1021 = vmatprep.subr.bf16.mxu0 0
      %1022 = vmatpush1.bf16.msra.mxu0 0
      %1023 = vmatprep.subr.bf16.mxu0 0
      %1024 = vmatpush1.bf16.msra.mxu0 0
      %1025 = vmatprep.subr.bf16.mxu0 0
      %1026 = vmatpush1.bf16.msra.mxu0 0
      %1027 = vmatprep.subr.bf16.mxu0 0
      %1028 = vmatpush1.bf16.msra.mxu0 0
      %1029 = vmatprep.subr.bf16.mxu0 0
      %1030 = vmatpush1.bf16.msra.mxu0 0
      %1031 = vmatprep.subr.bf16.mxu0 0
      %1032 = vmatpush1.bf16.msra.mxu0 0
      %1033 = vmatprep.mubr.bf16.mxu0 0
      %1034 = vmatmul.mubr.bf16.gmra.mrb[0].mxu0 %v898
      %v1035 = vpop.f32.mrb[0].mxu0
      %v1036 = vadd.f32 0.0, %v1035
      %v1037 = vpop.f32.mrb[0].mxu0
      %v1038 = vpop.f32.mrb[0].mxu0
      %v1039 = vadd.f32 0.0, %v1038
      %v1040 = vpop.f32.mrb[0].mxu0
      %1041 = vmatprep.mubr.bf16.mxu0 0
      %1042 = vmatmul.mubr.bf16.gmra.mrb[0].mxu0 %v901
      %v1043 = vpop.f32.mrb[0].mxu0
      %v1044 = vadd.f32 0.0, %v1043
      %v1045 = vpop.f32.mrb[0].mxu0
      %v1046 = vpop.f32.mrb[0].mxu0
      %v1047 = vadd.f32 0.0, %v1046
      %v1048 = vpop.f32.mrb[0].mxu0
      %1049 = vmatprep.mubr.bf16.mxu0 0
      %1050 = vmatmul.mubr.bf16.gmra.mrb[0].mxu0 %v904
      %v1051 = vpop.f32.mrb[0].mxu0
      %v1052 = vadd.f32 0.0, %v1051
      %v1053 = vpop.f32.mrb[0].mxu0
      %v1054 = vpop.f32.mrb[0].mxu0
      %v1055 = vadd.f32 0.0, %v1054
      %v1056 = vpop.f32.mrb[0].mxu0
      %1057 = vmatprep.mubr.bf16.mxu0 0
      %1058 = vmatmul.mubr.bf16.gmra.mrb[0].mxu0 %v996
      %v1059 = vpop.f32.mrb[0].mxu0
      %v1060 = vadd.f32 0.0, %v1059
      %v1061 = vpop.f32.mrb[0].mxu0
      %v1062 = vpop.f32.mrb[0].mxu0
      %v1063 = vadd.f32 0.0, %v1062
      %v1064 = vpop.f32.mrb[0].mxu0
      %1065 = vdwg.mxu0
      %v1066 = vadd.f32 %v974, %v1036
      %v1067 = vadd.f32 %v975, %v1039
      %v1068 = vadd.f32 %v976, %v1044
      %v1069 = vadd.f32 %v977, %v1047
      %v1070 = vadd.f32 %v978, %v1052
      %v1071 = vadd.f32 %v979, %v1055
      %v1072 = vadd.f32 %v980, %v1060
      %v1073 = vadd.f32 %v981, %v1063
      %v1075 = vrot.slane %v158, 5
      %v1076 = vrot.slane %v1075, 4
      %v1077 = vrot.slane %v159, 5
      %v1078 = vsel %vm851, %v1076, %v1077
      %v1079 = vrot.slane %v1077, 4
      %v1080 = vrot.slane %v160, 5
      %v1081 = vsel %vm851, %v1079, %v1080
      %s1082 = scalar_lea.vmem %s1, 16
      %v1083 = vld [vmem:[%s1082] sm:$0x3]
      %v1084 = vunpack.c.l.b16 %v1078
      %v1085 = vunpack.c.l.b16 %v1081
      %v1086 = vpack.c.b16 %v1085, %v1084
      %v1088 = vsel %vm184, %v1086, 0
      %v1091 = vsel %vm197, %v1083, 0
      %1093 = vmatprep.subr.bf16.mxu0 0
      %1094 = vmatpush1.bf16.msra.mxu0 %v1091
      %1095 = vmatprep.subr.bf16.mxu0 0
      %1096 = vmatpush1.bf16.msra.mxu0 0
      %1097 = vmatprep.subr.bf16.mxu0 0
      %1098 = vmatpush1.bf16.msra.mxu0 0
      %1099 = vmatprep.subr.bf16.mxu0 0
      %1100 = vmatpush1.bf16.msra.mxu0 0
      %1101 = vmatprep.subr.bf16.mxu0 0
      %1102 = vmatpush1.bf16.msra.mxu0 0
      %1103 = vmatprep.subr.bf16.mxu0 0
      %1104 = vmatpush1.bf16.msra.mxu0 0
      %1105 = vmatprep.subr.bf16.mxu0 0
      %1106 = vmatpush1.bf16.msra.mxu0 0
      %1107 = vmatprep.subr.bf16.mxu0 0
      %1108 = vmatpush1.bf16.msra.mxu0 0
      %1109 = vmatprep.subr.bf16.mxu0 0
      %1110 = vmatpush1.bf16.msra.mxu0 0
      %1111 = vmatprep.subr.bf16.mxu0 0
      %1112 = vmatpush1.bf16.msra.mxu0 0
      %1113 = vmatprep.subr.bf16.mxu0 0
      %1114 = vmatpush1.bf16.msra.mxu0 0
      %1115 = vmatprep.subr.bf16.mxu0 0
      %1116 = vmatpush1.bf16.msra.mxu0 0
      %1117 = vmatprep.subr.bf16.mxu0 0
      %1118 = vmatpush1.bf16.msra.mxu0 0
      %1119 = vmatprep.subr.bf16.mxu0 0
      %1120 = vmatpush1.bf16.msra.mxu0 0
      %1121 = vmatprep.subr.bf16.mxu0 0
      %1122 = vmatpush1.bf16.msra.mxu0 0
      %1123 = vmatprep.subr.bf16.mxu0 0
      %1124 = vmatpush1.bf16.msra.mxu0 0
      %1125 = vmatprep.mubr.bf16.mxu0 0
      %1126 = vmatmul.mubr.bf16.gmra.mrb[0].mxu0 %v901
      %v1127 = vpop.f32.mrb[0].mxu0
      %v1128 = vadd.f32 0.0, %v1127
      %v1129 = vpop.f32.mrb[0].mxu0
      %v1130 = vpop.f32.mrb[0].mxu0
      %v1131 = vadd.f32 0.0, %v1130
      %v1132 = vpop.f32.mrb[0].mxu0
      %1133 = vmatprep.mubr.bf16.mxu0 0
      %1134 = vmatmul.mubr.bf16.gmra.mrb[0].mxu0 %v904
      %v1135 = vpop.f32.mrb[0].mxu0
      %v1136 = vadd.f32 0.0, %v1135
      %v1137 = vpop.f32.mrb[0].mxu0
      %v1138 = vpop.f32.mrb[0].mxu0
      %v1139 = vadd.f32 0.0, %v1138
      %v1140 = vpop.f32.mrb[0].mxu0
      %1141 = vmatprep.mubr.bf16.mxu0 0
      %1142 = vmatmul.mubr.bf16.gmra.mrb[0].mxu0 %v996
      %v1143 = vpop.f32.mrb[0].mxu0
      %v1144 = vadd.f32 0.0, %v1143
      %v1145 = vpop.f32.mrb[0].mxu0
      %v1146 = vpop.f32.mrb[0].mxu0
      %v1147 = vadd.f32 0.0, %v1146
      %v1148 = vpop.f32.mrb[0].mxu0
      %1149 = vmatprep.mubr.bf16.mxu0 0
      %1150 = vmatmul.mubr.bf16.gmra.mrb[0].mxu0 %v1088
      %v1151 = vpop.f32.mrb[0].mxu0
      %v1152 = vadd.f32 0.0, %v1151
      %v1153 = vpop.f32.mrb[0].mxu0
      %v1154 = vpop.f32.mrb[0].mxu0
      %v1155 = vadd.f32 0.0, %v1154
      %v1156 = vpop.f32.mrb[0].mxu0
      %1157 = vdwg.mxu0
      %v1158 = vadd.f32 %v1066, %v1128
      %v1159 = vadd.f32 %v1067, %v1131
      %v1160 = vadd.f32 %v1068, %v1136
      %v1161 = vadd.f32 %v1069, %v1139
      %v1162 = vadd.f32 %v1070, %v1144
      %v1163 = vadd.f32 %v1071, %v1147
      %v1164 = vadd.f32 %v1072, %v1152
      %v1165 = vadd.f32 %v1073, %v1155
      %vm1166 = vcmask 261120
      %v1167 = vsel %vm1166, %v1158, 0.0
      %v1168 = vsel %vm1166, %v1159, 0.0
      %v1169 = vadd.f32 %v1167, %v1168
      %v1170 = vsel %vm1166, %v1160, 0.0
      %v1171 = vadd.f32 %v1169, %v1170
      %v1172 = vsel %vm1166, %v1161, 0.0
      %v1173 = vadd.f32 %v1171, %v1172
      %v1174 = vsel %vm1166, %v1162, 0.0
      %v1175 = vadd.f32 %v1173, %v1174
      %v1176 = vsel %vm1166, %v1163, 0.0
      %v1177 = vadd.f32 %v1175, %v1176
      %v1178 = vsel %vm1166, %v1164, 0.0
      %v1179 = vadd.f32 %v1177, %v1178
      %v1180 = vsel %vm1166, %v1165, 0.0
      %v1181 = vadd.f32 %v1179, %v1180
      %v1182 = vrot.slane %v1181, 4
      %v1183 = vadd.f32 %v1181, %v1182
      %v1184 = vrot.slane %v1183, 2
      %v1185 = vadd.f32 %v1183, %v1184
      %v1186 = vrot.slane %v1185, 1
      %v1187 = vadd.f32 %v1185, %v1186
      %v1188 = vmul.f32 %v1158, %v1158
      %v1189 = vmul.f32 %v1159, %v1159
      %v1190 = vmul.f32 %v1160, %v1160
      %v1191 = vmul.f32 %v1161, %v1161
      %v1192 = vmul.f32 %v1162, %v1162
      %v1193 = vmul.f32 %v1163, %v1163
      %v1194 = vmul.f32 %v1164, %v1164
      %v1195 = vmul.f32 %v1165, %v1165
      %v1196 = vsel %vm1166, %v1188, 0.0
      %v1197 = vsel %vm1166, %v1189, 0.0
      %v1198 = vadd.f32 %v1196, %v1197
      %v1199 = vsel %vm1166, %v1190, 0.0
      %v1200 = vadd.f32 %v1198, %v1199
      %v1201 = vsel %vm1166, %v1191, 0.0
      %v1202 = vadd.f32 %v1200, %v1201
      %v1203 = vsel %vm1166, %v1192, 0.0
      %v1204 = vadd.f32 %v1202, %v1203
      %v1205 = vsel %vm1166, %v1193, 0.0
      %v1206 = vadd.f32 %v1204, %v1205
      %v1207 = vsel %vm1166, %v1194, 0.0
      %v1208 = vadd.f32 %v1206, %v1207
      %v1209 = vsel %vm1166, %v1195, 0.0
      %v1210 = vadd.f32 %v1208, %v1209
      %v1211 = vrot.slane %v1210, 4
      %v1212 = vadd.f32 %v1210, %v1211
      %v1213 = vrot.slane %v1212, 2
      %v1214 = vadd.f32 %v1212, %v1213
      %v1215 = vrot.slane %v1214, 1
      %v1216 = vadd.f32 %v1214, %v1215
      %vm1217 = vcmask 1040384
      %v1218 = vsel %vm1217, %v1187, %v1216
      %vm1219 = vcmask 254976
      %1220 = vst.msk [vmem:[%s141] sm:$0x3] %vm1219, %v1218
      %p1221 = scmp.lt.s32.totalorder %s13, 7
      %s1222 = scalar_select %p1221, %s13, 7
      %s1223 = smul.addr %s1222, 2
      %s1224 = scalar_lea.vmem %s2, %s1223
      // Predicated region
      $region29: #{residual_deconv_block.3} parent=27 // pred_check
        %p1225 = pneg %p78
      $region30: #{residual_deconv_block.3} parent=27 // pred_check_branch
        %1227 = sbr.rel (%p1225) target = $region32
      $region31: #{residual_deconv_block.3} parent=27 // pred_region
        _
      $region32: #{residual_deconv_block.3} parent=27 // pred_fallthru
        _
    $region28: #{residual_deconv_block.3} parent=5 // pred_fallthru
      _
    %p1228 = scmp.le.s32.totalorder 2, %s8
    // Predicated region
    $region33: #{residual_deconv_block.3} parent=5 // pred_check
      %p1229 = pneg %p1228
    $region34: #{residual_deconv_block.3} parent=5 // pred_check_branch
      %1231 = sbr.rel (%p1229) target = $region36
    $region35: #{residual_deconv_block.3} parent=5 // pred_region
      %s1232 = ssub.s32 %s8, 2
      // Predicated region
      $region37: #{residual_deconv_block.3} parent=35 // pred_check
        %p1233 = pneg %p84
      $region38: #{residual_deconv_block.3} parent=35 // pred_check_branch
        %1235 = sbr.rel (%p1233) target = $region40
      $region39: #{residual_deconv_block.3} parent=35 // pred_region
        %p1236 = scmp.lt.s32.totalorder %s14, 7
        %s1237 = scalar_select %p1236, %s14, 7
        %s1238 = smul.addr %s1237, 2
        %s1239 = scalar_lea.vmem %s2, %s1238
      $region40: #{residual_deconv_block.3} parent=35 // pred_fallthru
        _
    $region36: #{residual_deconv_block.3} parent=5 // pred_fallthru
      _
  $region6: #{residual_deconv_block.3} parent=0 // loop_footer
    %s12 = sadd.s32 1, %s8
  $region7: #{residual_deconv_block.3} parent=0 // loop_footer_branch
    %7 = sbr.rel target = $region3
  $region8: #{residual_deconv_block.3} parent=0 // loop_exit
    _

// kernel: residual_deconv_block.4
$region0: #{residual_deconv_block.4}
  #allocation0 [shape = 'u32[]', space=smem, size = 0x4, offset = 0x4, fixed_abs, tag = 'smem constant byte address 0x4 - core index']
  #allocation1 [shape = 'u32[144,128]{1,0:T(1,128)}', space=vmem, size = 0x12000, scoped, tag = 'internal scratch']
  %s0 = inlined_call_operand.vmem [shape: bf16[8,6,18,4], index: 0, kind: input, shape index: {}]
  %s1 = inlined_call_operand.vmem [shape: bf16[9,4,32], index: 1, kind: input, shape index: {}]
  %s2 = inlined_call_operand.vmem [shape: f32[1,32], index: 2, kind: input, shape index: {}]
  %s3 = inlined_call_operand.vmem [shape: f32[1,32], index: 3, kind: input, shape index: {}]
  %s4 = inlined_call_operand.vmem [shape: f32[8,2,32], index: 4, kind: output, shape index: {}]
  %s5 = sld [smem:[#allocation0]]
  $region49: #{residual_deconv_block.4} parent=0
    _
  %s7 = ssub.s32 1, %s5
  %s8 = scalar_select 0, %s7, %s5
  loop: start=0, step=1, limit=10
  $region2: #{residual_deconv_block.4} parent=0 // loop_pre_header
    _
  $region3: #{residual_deconv_block.4} parent=0 // loop_header
    %s10 = sphi 0, %s14
    %p11 = scmp.ge.s32.totalorder %s10, 10
    %s20 = sphi 0, %s22
    %s23 = sphi 0, %s20
    %s24 = sphi 0, %s23
    %s40 = sphi 0, %s24
    %s44 = sphi 0, %s44
    %s46 = sphi 0, %s44
    %s47 = sphi 0, %s46
    %s61 = sphi 0, %s47
    %s65 = sphi 0, %s65
    %s67 = sphi 0, %s65
    %s68 = sphi 0, %s67
    %s82 = sphi 0, %s68
    %s86 = sphi 0, %s86
    %s88 = sphi 0, %s86
    %s89 = sphi 0, %s88
    %s103 = sphi 0, %s89
    %s109 = sphi 0, %s111
    %s112 = sphi 0, %s109
    %s113 = sphi 0, %s112
    %s129 = sphi 0, %s113
  $region4: #{residual_deconv_block.4} parent=0 // loop_header_branch
    %13 = sbr.rel (%p11) target = $region8
  $region5: #{residual_deconv_block.4} parent=0 // loop_body
    %s15 = ssub.s32 %s10, 1
    %s16 = ssub.s32 %s10, 2
    %s17 = sadd.s32 %s10, 1
    %s18 = ssub.s32 %s10, %s17
    %p19 = scmp.eq.s32.totalorder %s18, 0
    %s21 = sadd.s32 %s20, 1
    %s22 = scalar_select %p19, %s20, %s21
    %p25 = pneg %p19
    %p26 = scmp.eq.s32.totalorder %s10, 7
    %p27 = por %p25, %p26
    %p28 = scmp.ne.s32.totalorder %s20, %s23
    %p29 = scmp.eq.s32.totalorder %s10, 0
    %p30 = por %p28, %p29
    %p31 = scmp.ne.s32.totalorder %s20, %s23
    %p32 = scmp.eq.s32.totalorder %s15, 7
    %p33 = por %p31, %p32
    %p34 = scmp.ne.s32.totalorder %s23, %s24
    %p35 = scmp.eq.s32.totalorder %s15, 0
    %p36 = por %p34, %p35
    %p37 = scmp.ne.s32.totalorder %s23, %s24
    %p38 = scmp.eq.s32.totalorder %s16, 7
    %p39 = por %p37, %p38
    %p41 = scmp.ne.s32.totalorder %s24, %s40
    %p42 = scmp.eq.s32.totalorder %s16, 0
    %p43 = por %p41, %p42
    %s45 = sadd.s32 %s44, 1
    %p48 = scmp.eq.s32.totalorder %s10, 7
    %p49 = scmp.ne.s32.totalorder %s44, %s46
    %p50 = scmp.eq.s32.totalorder %s10, 0
    %p51 = por %p49, %p50
    %p52 = scmp.ne.s32.totalorder %s44, %s46
    %p53 = scmp.eq.s32.totalorder %s15, 7
    %p54 = por %p52, %p53
    %p55 = scmp.ne.s32.totalorder %s46, %s47
    %p56 = scmp.eq.s32.totalorder %s15, 0
    %p57 = por %p55, %p56
    %p58 = scmp.ne.s32.totalorder %s46, %s47
    %p59 = scmp.eq.s32.totalorder %s16, 7
    %p60 = por %p58, %p59
    %p62 = scmp.ne.s32.totalorder %s47, %s61
    %p63 = scmp.eq.s32.totalorder %s16, 0
    %p64 = por %p62, %p63
    %s66 = sadd.s32 %s65, 1
    %p69 = scmp.eq.s32.totalorder %s10, 7
    %p70 = scmp.ne.s32.totalorder %s65, %s67
    %p71 = scmp.eq.s32.totalorder %s10, 0
    %p72 = por %p70, %p71
    %p73 = scmp.ne.s32.totalorder %s65, %s67
    %p74 = scmp.eq.s32.totalorder %s15, 7
    %p75 = por %p73, %p74
    %p76 = scmp.ne.s32.totalorder %s67, %s68
    %p77 = scmp.eq.s32.totalorder %s15, 0
    %p78 = por %p76, %p77
    %p79 = scmp.ne.s32.totalorder %s67, %s68
    %p80 = scmp.eq.s32.totalorder %s16, 7
    %p81 = por %p79, %p80
    %p83 = scmp.ne.s32.totalorder %s68, %s82
    %p84 = scmp.eq.s32.totalorder %s16, 0
    %p85 = por %p83, %p84
    %s87 = sadd.s32 %s86, 1
    %p90 = scmp.eq.s32.totalorder %s10, 7
    %p91 = scmp.ne.s32.totalorder %s86, %s88
    %p92 = scmp.eq.s32.totalorder %s10, 0
    %p93 = por %p91, %p92
    %p94 = scmp.ne.s32.totalorder %s86, %s88
    %p95 = scmp.eq.s32.totalorder %s15, 7
    %p96 = por %p94, %p95
    %p97 = scmp.ne.s32.totalorder %s88, %s89
    %p98 = scmp.eq.s32.totalorder %s15, 0
    %p99 = por %p97, %p98
    %p100 = scmp.ne.s32.totalorder %s88, %s89
    %p101 = scmp.eq.s32.totalorder %s16, 7
    %p102 = por %p100, %p101
    %p104 = scmp.ne.s32.totalorder %s89, %s103
    %p105 = scmp.eq.s32.totalorder %s16, 0
    %p106 = por %p104, %p105
    %s107 = ssub.s32 %s10, %s17
    %p108 = scmp.eq.s32.totalorder %s107, 0
    %s110 = sadd.s32 %s109, 1
    %s111 = scalar_select %p108, %s109, %s110
    %p114 = pneg %p108
    %p115 = scmp.eq.s32.totalorder %s10, 7
    %p116 = por %p114, %p115
    %p117 = scmp.ne.s32.totalorder %s109, %s112
    %p118 = scmp.eq.s32.totalorder %s10, 0
    %p119 = por %p117, %p118
    %p120 = scmp.ne.s32.totalorder %s109, %s112
    %p121 = scmp.eq.s32.totalorder %s15, 7
    %p122 = por %p120, %p121
    %p123 = scmp.ne.s32.totalorder %s112, %s113
    %p124 = scmp.eq.s32.totalorder %s15, 0
    %p125 = por %p123, %p124
    %p126 = scmp.ne.s32.totalorder %s112, %s113
    %p127 = scmp.eq.s32.totalorder %s16, 7
    %p128 = por %p126, %p127
    %p130 = scmp.ne.s32.totalorder %s113, %s129
    %p131 = scmp.eq.s32.totalorder %s16, 0
    %p132 = por %p130, %p131
    %p133 = scmp.le.s32.totalorder 1, %s10
    %p134 = scmp.lt.s32.totalorder %s10, 9
    %p135 = pnand %p133, %p134
    %p136 = pneg %p135
    // Predicated region
    $region9: #{residual_deconv_block.4} parent=5 // pred_check
      _
    $region10: #{residual_deconv_block.4} parent=5 // pred_check_branch
      %138 = sbr.rel (%p135) target = $region12
    $region11: #{residual_deconv_block.4} parent=5 // pred_region
      %s139 = ssub.s32 %s10, 1
      // Predicated region
      $region13: #{residual_deconv_block.4} parent=11 // pred_check
        %p140 = pneg %p57
      $region14: #{residual_deconv_block.4} parent=11 // pred_check_branch
        %142 = sbr.rel (%p140) target = $region16
      $region15: #{residual_deconv_block.4} parent=11 // pred_region
        _
      $region16: #{residual_deconv_block.4} parent=11 // pred_fallthru
        _
      // Predicated region
      $region17: #{residual_deconv_block.4} parent=11 // pred_check
        %p143 = pneg %p78
      $region18: #{residual_deconv_block.4} parent=11 // pred_check_branch
        %145 = sbr.rel (%p143) target = $region20
      $region19: #{residual_deconv_block.4} parent=11 // pred_region
        _
      $region20: #{residual_deconv_block.4} parent=11 // pred_fallthru
        _
      // Predicated region
      $region21: #{residual_deconv_block.4} parent=11 // pred_check
        %p146 = pneg %p99
      $region22: #{residual_deconv_block.4} parent=11 // pred_check_branch
        %148 = sbr.rel (%p146) target = $region24
      $region23: #{residual_deconv_block.4} parent=11 // pred_region
        _
      $region24: #{residual_deconv_block.4} parent=11 // pred_fallthru
        _
    $region12: #{residual_deconv_block.4} parent=5 // pred_fallthru
      _
    %p149 = scmp.lt.s32.totalorder %s10, 8
    // Predicated region
    $region25: #{residual_deconv_block.4} parent=5 // pred_check
      %p150 = pneg %p149
    $region26: #{residual_deconv_block.4} parent=5 // pred_check_branch
      %152 = sbr.rel (%p150) target = $region28
    $region27: #{residual_deconv_block.4} parent=5 // pred_region
      // Predicated region
      $region29: #{residual_deconv_block.4} parent=27 // pred_check
        %p153 = pneg %p30
      $region30: #{residual_deconv_block.4} parent=27 // pred_check_branch
        %155 = sbr.rel (%p153) target = $region32
      $region31: #{residual_deconv_block.4} parent=27 // pred_region
        %p156 = scmp.lt.s32.totalorder %s10, 7
        %s157 = scalar_select %p156, %s10, 7
        %s158 = smul.addr %s157, 18
        %s159 = smul.addr %s158, 4
        %s160 = scalar_lea.vmem %s0, %s159
      $region32: #{residual_deconv_block.4} parent=27 // pred_fallthru
        _
    $region28: #{residual_deconv_block.4} parent=5 // pred_fallthru
      _
    %p161 = scmp.le.s32.totalorder 1, %s10
    %p162 = scmp.lt.s32.totalorder %s10, 9
    %p163 = pnand %p161, %p162
    %p164 = pneg %p163
    // Predicated region
    $region33: #{residual_deconv_block.4} parent=5 // pred_check
      _
    $region34: #{residual_deconv_block.4} parent=5 // pred_check_branch
      %166 = sbr.rel (%p163) target = $region36
    $region35: #{residual_deconv_block.4} parent=5 // pred_region
      %s167 = ssub.s32 %s10, 1
      %p168 = scmp.lt.s32.totalorder %s15, 7
      %s169 = scalar_select %p168, %s15, 7
      %s170 = smul.addr %s169, 18
      %s171 = smul.addr %s170, 4
      %s172 = scalar_lea.vmem %s0, %s171
      %p173 = pneg %p36
      %p174 = pneg %p33
      %p175 = pneg %p57
      %p176 = pneg %p54
      %p177 = pneg %p78
      %p178 = pneg %p75
      %p179 = pneg %p99
      %p180 = pneg %p96
      %p181 = pneg %p125
      %p182 = pneg %p122
      %p183 = scmp.lt.s32.totalorder %s15, 7
      %s184 = scalar_select %p183, %s15, 7
      %s185 = smul.addr %s184, 2
      %s186 = scalar_lea.vmem %s4, %s185
      %p187 = scmp.lt.s32.totalorder %s15, 7
      %s188 = scalar_select %p187, %s15, 7
      %s189 = smul.addr %s188, 18
      %s190 = smul.addr %s189, 4
      %s191 = scalar_lea.vmem %s0, %s190
      %p192 = scmp.lt.s32.totalorder %s15, 7
      %s193 = scalar_select %p192, %s15, 7
      %s194 = smul.addr %s193, 2
      %s195 = scalar_lea.vmem %s4, %s194
      %v197 = vld [vmem:[%s191] sm:$0xf]
      %v198 = vld [vmem:[%s191 + $0x4] sm:$0xf]
      %v199 = vld [vmem:[%s191 + $0x8] sm:$0x1]
      %v200 = vld [vmem:[%s191 + $0xc] sm:$0xf]
      %v201 = vld [vmem:[%s191 + $0x10] sm:$0xf]
      %v202 = vld [vmem:[%s191 + $0x14] sm:$0x1]
      %v203 = vld [vmem:[%s191 + $0x18] sm:$0xf]
      %v204 = vld [vmem:[%s191 + $0x1c] sm:$0xf]
      %v205 = vld [vmem:[%s191 + $0x20] sm:$0x1]
      %v206 = vld [vmem:[%s191 + $0x24] sm:$0xf]
      %v207 = vld [vmem:[%s191 + $0x28] sm:$0xf]
      %v208 = vld [vmem:[%s191 + $0x2c] sm:$0x1]
      %v209 = vld [vmem:[%s191 + $0x30] sm:$0xf]
      %v210 = vld [vmem:[%s191 + $0x34] sm:$0xf]
      %v211 = vld [vmem:[%s191 + $0x38] sm:$0x1]
      %v212 = vld [vmem:[%s191 + $0x3c] sm:$0xf]
      %v213 = vld [vmem:[%s191 + $0x40] sm:$0xf]
      %v214 = vld [vmem:[%s191 + $0x44] sm:$0x1]
      %v215 = vld [vmem:[%s1] sm:$0x3]
      %s216 = scalar_lea.vmem %s1, 6
      %v217 = vld [vmem:[%s216] sm:$0x3]
      %v226 = vunpack.c.l.b16 %v200
      %v227 = vunpack.c.l.b16 %v201
      %v228 = vunpack.c.l.b16 %v203
      %v229 = vunpack.c.l.b16 %v204
      %v230 = vunpack.c.l.b16 %v206
      %v231 = vunpack.c.l.b16 %v207
      %v232 = vunpack.c.l.b16 %v209
      %v233 = vunpack.c.l.b16 %v210
      %v234 = vpack.c.b16 %v227, %v226
      %v235 = vpack.c.b16 %v229, %v228
      %v236 = vpack.c.b16 %v231, %v230
      %v237 = vpack.c.b16 %v233, %v232
      %vm238 = vcmask 31744
      %v240 = vsel %vm238, %v234, 0
      %v243 = vsel %vm238, %v235, 0
      %v246 = vsel %vm238, %v236, 0
      %v249 = vsel %vm238, %v237, 0
      %vm251 = vcmask 1041408
      %v253 = vsel %vm251, %v217, 0
      %255 = vmatprep.subr.bf16.mxu0 0
      %256 = vmatpush1.bf16.msra.mxu0 %v253
      %257 = vmatprep.subr.bf16.mxu0 0
      %258 = vmatpush1.bf16.msra.mxu0 0
      %259 = vmatprep.subr.bf16.mxu0 0
      %260 = vmatpush1.bf16.msra.mxu0 0
      %261 = vmatprep.subr.bf16.mxu0 0
      %262 = vmatpush1.bf16.msra.mxu0 0
      %263 = vmatprep.subr.bf16.mxu0 0
      %264 = vmatpush1.bf16.msra.mxu0 0
      %265 = vmatprep.subr.bf16.mxu0 0
      %266 = vmatpush1.bf16.msra.mxu0 0
      %267 = vmatprep.subr.bf16.mxu0 0
      %268 = vmatpush1.bf16.msra.mxu0 0
      %269 = vmatprep.subr.bf16.mxu0 0
      %270 = vmatpush1.bf16.msra.mxu0 0
      %271 = vmatprep.subr.bf16.mxu0 0
      %272 = vmatpush1.bf16.msra.mxu0 0
      %273 = vmatprep.subr.bf16.mxu0 0
      %274 = vmatpush1.bf16.msra.mxu0 0
      %275 = vmatprep.subr.bf16.mxu0 0
      %276 = vmatpush1.bf16.msra.mxu0 0
      %277 = vmatprep.subr.bf16.mxu0 0
      %278 = vmatpush1.bf16.msra.mxu0 0
      %279 = vmatprep.subr.bf16.mxu0 0
      %280 = vmatpush1.bf16.msra.mxu0 0
      %281 = vmatprep.subr.bf16.mxu0 0
      %282 = vmatpush1.bf16.msra.mxu0 0
      %283 = vmatprep.subr.bf16.mxu0 0
      %284 = vmatpush1.bf16.msra.mxu0 0
      %285 = vmatprep.subr.bf16.mxu0 0
      %286 = vmatpush1.bf16.msra.mxu0 0
      %287 = vmatprep.mubr.bf16.mxu0 0
      %288 = vmatmul.mubr.bf16.gmra.mrb[0].mxu0 %v240
      %v289 = vpop.f32.mrb[0].mxu0
      %v290 = vadd.f32 0.0, %v289
      %v291 = vpop.f32.mrb[0].mxu0
      %v292 = vpop.f32.mrb[0].mxu0
      %v293 = vadd.f32 0.0, %v292
      %v294 = vpop.f32.mrb[0].mxu0
      %295 = vmatprep.mubr.bf16.mxu0 0
      %296 = vmatmul.mubr.bf16.gmra.mrb[0].mxu0 %v243
      %v297 = vpop.f32.mrb[0].mxu0
      %v298 = vadd.f32 0.0, %v297
      %v299 = vpop.f32.mrb[0].mxu0
      %v300 = vpop.f32.mrb[0].mxu0
      %v301 = vadd.f32 0.0, %v300
      %v302 = vpop.f32.mrb[0].mxu0
      %303 = vmatprep.mubr.bf16.mxu0 0
      %304 = vmatmul.mubr.bf16.gmra.mrb[0].mxu0 %v246
      %v305 = vpop.f32.mrb[0].mxu0
      %v306 = vadd.f32 0.0, %v305
      %v307 = vpop.f32.mrb[0].mxu0
      %v308 = vpop.f32.mrb[0].mxu0
      %v309 = vadd.f32 0.0, %v308
      %v310 = vpop.f32.mrb[0].mxu0
      %311 = vmatprep.mubr.bf16.mxu0 0
      %312 = vmatmul.mubr.bf16.gmra.mrb[0].mxu0 %v249
      %v313 = vpop.f32.mrb[0].mxu0
      %v314 = vadd.f32 0.0, %v313
      %v315 = vpop.f32.mrb[0].mxu0
      %v316 = vpop.f32.mrb[0].mxu0
      %v317 = vadd.f32 0.0, %v316
      %v318 = vpop.f32.mrb[0].mxu0
      %319 = vdwg.mxu0
      %v322 = vunpack.c.l.b16 %v197
      %v323 = vunpack.c.l.b16 %v198
      %v324 = vpack.c.b16 %v323, %v322
      %v326 = vsel %vm238, %v324, 0
      %v329 = vsel %vm251, %v215, 0
      %331 = vmatprep.subr.bf16.mxu0 0
      %332 = vmatpush1.bf16.msra.mxu0 %v329
      %333 = vmatprep.subr.bf16.mxu0 0
      %334 = vmatpush1.bf16.msra.mxu0 0
      %335 = vmatprep.subr.bf16.mxu0 0
      %336 = vmatpush1.bf16.msra.mxu0 0
      %337 = vmatprep.subr.bf16.mxu0 0
      %338 = vmatpush1.bf16.msra.mxu0 0
      %339 = vmatprep.subr.bf16.mxu0 0
      %340 = vmatpush1.bf16.msra.mxu0 0
      %341 = vmatprep.subr.bf16.mxu0 0
      %342 = vmatpush1.bf16.msra.mxu0 0
      %343 = vmatprep.subr.bf16.mxu0 0
      %344 = vmatpush1.bf16.msra.mxu0 0
      %345 = vmatprep.subr.bf16.mxu0 0
      %346 = vmatpush1.bf16.msra.mxu0 0
      %347 = vmatprep.subr.bf16.mxu0 0
      %348 = vmatpush1.bf16.msra.mxu0 0
      %349 = vmatprep.subr.bf16.mxu0 0
      %350 = vmatpush1.bf16.msra.mxu0 0
      %351 = vmatprep.subr.bf16.mxu0 0
      %352 = vmatpush1.bf16.msra.mxu0 0
      %353 = vmatprep.subr.bf16.mxu0 0
      %354 = vmatpush1.bf16.msra.mxu0 0
      %355 = vmatprep.subr.bf16.mxu0 0
      %356 = vmatpush1.bf16.msra.mxu0 0
      %357 = vmatprep.subr.bf16.mxu0 0
      %358 = vmatpush1.bf16.msra.mxu0 0
      %359 = vmatprep.subr.bf16.mxu0 0
      %360 = vmatpush1.bf16.msra.mxu0 0
      %361 = vmatprep.subr.bf16.mxu0 0
      %362 = vmatpush1.bf16.msra.mxu0 0
      %363 = vmatprep.mubr.bf16.mxu0 0
      %364 = vmatmul.mubr.bf16.gmra.mrb[0].mxu0 %v326
      %v365 = vpop.f32.mrb[0].mxu0
      %v366 = vadd.f32 %v290, %v365
      %v367 = vpop.f32.mrb[0].mxu0
      %v368 = vpop.f32.mrb[0].mxu0
      %v369 = vadd.f32 %v293, %v368
      %v370 = vpop.f32.mrb[0].mxu0
      %371 = vmatprep.mubr.bf16.mxu0 0
      %372 = vmatmul.mubr.bf16.gmra.mrb[0].mxu0 %v240
      %v373 = vpop.f32.mrb[0].mxu0
      %v374 = vadd.f32 %v298, %v373
      %v375 = vpop.f32.mrb[0].mxu0
      %v376 = vpop.f32.mrb[0].mxu0
      %v377 = vadd.f32 %v301, %v376
      %v378 = vpop.f32.mrb[0].mxu0
      %379 = vmatprep.mubr.bf16.mxu0 0
      %380 = vmatmul.mubr.bf16.gmra.mrb[0].mxu0 %v243
      %v381 = vpop.f32.mrb[0].mxu0
      %v382 = vadd.f32 %v306, %v381
      %v383 = vpop.f32.mrb[0].mxu0
      %v384 = vpop.f32.mrb[0].mxu0
      %v385 = vadd.f32 %v309, %v384
      %v386 = vpop.f32.mrb[0].mxu0
      %387 = vmatprep.mubr.bf16.mxu0 0
      %388 = vmatmul.mubr.bf16.gmra.mrb[0].mxu0 %v246
      %v389 = vpop.f32.mrb[0].mxu0
      %v390 = vadd.f32 %v314, %v389
      %v391 = vpop.f32.mrb[0].mxu0
      %v392 = vpop.f32.mrb[0].mxu0
      %v393 = vadd.f32 %v317, %v392
      %v394 = vpop.f32.mrb[0].mxu0
      %395 = vdwg.mxu0
      %s396 = scalar_lea.vmem %s1, 12
      %v397 = vld [vmem:[%s396] sm:$0x3]
      %v400 = vunpack.c.l.b16 %v212
      %v401 = vunpack.c.l.b16 %v213
      %v402 = vpack.c.b16 %v401, %v400
      %v404 = vsel %vm238, %v402, 0
      %v407 = vsel %vm251, %v397, 0
      %409 = vmatprep.subr.bf16.mxu0 0
      %410 = vmatpush1.bf16.msra.mxu0 %v407
      %411 = vmatprep.subr.bf16.mxu0 0
      %412 = vmatpush1.bf16.msra.mxu0 0
      %413 = vmatprep.subr.bf16.mxu0 0
      %414 = vmatpush1.bf16.msra.mxu0 0
      %415 = vmatprep.subr.bf16.mxu0 0
      %416 = vmatpush1.bf16.msra.mxu0 0
      %417 = vmatprep.subr.bf16.mxu0 0
      %418 = vmatpush1.bf16.msra.mxu0 0
      %419 = vmatprep.subr.bf16.mxu0 0
      %420 = vmatpush1.bf16.msra.mxu0 0
      %421 = vmatprep.subr.bf16.mxu0 0
      %422 = vmatpush1.bf16.msra.mxu0 0
      %423 = vmatprep.subr.bf16.mxu0 0
      %424 = vmatpush1.bf16.msra.mxu0 0
      %425 = vmatprep.subr.bf16.mxu0 0
      %426 = vmatpush1.bf16.msra.mxu0 0
      %427 = vmatprep.subr.bf16.mxu0 0
      %428 = vmatpush1.bf16.msra.mxu0 0
      %429 = vmatprep.subr.bf16.mxu0 0
      %430 = vmatpush1.bf16.msra.mxu0 0
      %431 = vmatprep.subr.bf16.mxu0 0
      %432 = vmatpush1.bf16.msra.mxu0 0
      %433 = vmatprep.subr.bf16.mxu0 0
      %434 = vmatpush1.bf16.msra.mxu0 0
      %435 = vmatprep.subr.bf16.mxu0 0
      %436 = vmatpush1.bf16.msra.mxu0 0
      %437 = vmatprep.subr.bf16.mxu0 0
      %438 = vmatpush1.bf16.msra.mxu0 0
      %439 = vmatprep.subr.bf16.mxu0 0
      %440 = vmatpush1.bf16.msra.mxu0 0
      %441 = vmatprep.mubr.bf16.mxu0 0
      %442 = vmatmul.mubr.bf16.gmra.mrb[0].mxu0 %v243
      %v443 = vpop.f32.mrb[0].mxu0
      %v444 = vadd.f32 0.0, %v443
      %v445 = vpop.f32.mrb[0].mxu0
      %v446 = vpop.f32.mrb[0].mxu0
      %v447 = vadd.f32 0.0, %v446
      %v448 = vpop.f32.mrb[0].mxu0
      %449 = vmatprep.mubr.bf16.mxu0 0
      %450 = vmatmul.mubr.bf16.gmra.mrb[0].mxu0 %v246
      %v451 = vpop.f32.mrb[0].mxu0
      %v452 = vadd.f32 0.0, %v451
      %v453 = vpop.f32.mrb[0].mxu0
      %v454 = vpop.f32.mrb[0].mxu0
      %v455 = vadd.f32 0.0, %v454
      %v456 = vpop.f32.mrb[0].mxu0
      %457 = vmatprep.mubr.bf16.mxu0 0
      %458 = vmatmul.mubr.bf16.gmra.mrb[0].mxu0 %v249
      %v459 = vpop.f32.mrb[0].mxu0
      %v460 = vadd.f32 0.0, %v459
      %v461 = vpop.f32.mrb[0].mxu0
      %v462 = vpop.f32.mrb[0].mxu0
      %v463 = vadd.f32 0.0, %v462
      %v464 = vpop.f32.mrb[0].mxu0
      %465 = vmatprep.mubr.bf16.mxu0 0
      %466 = vmatmul.mubr.bf16.gmra.mrb[0].mxu0 %v404
      %v467 = vpop.f32.mrb[0].mxu0
      %v468 = vadd.f32 0.0, %v467
      %v469 = vpop.f32.mrb[0].mxu0
      %v470 = vpop.f32.mrb[0].mxu0
      %v471 = vadd.f32 0.0, %v470
      %v472 = vpop.f32.mrb[0].mxu0
      %473 = vdwg.mxu0
      %v474 = vadd.f32 %v366, %v444
      %v475 = vadd.f32 %v369, %v447
      %v476 = vadd.f32 %v374, %v452
      %v477 = vadd.f32 %v377, %v455
      %v478 = vadd.f32 %v382, %v460
      %v479 = vadd.f32 %v385, %v463
      %v480 = vadd.f32 %v390, %v468
      %v481 = vadd.f32 %v393, %v471
      %vm482 = vsmask.f32 3328
      %vm483 = vsmask.f32 7440
      %vm484 = vmor %vm482, %vm483
      %v486 = vshrl.u32 %v197, 16
      %v488 = vrot.slane %v486, 4
      %v489 = vshll.u32 %v197, 16
      %v491 = vrot.slane %v489, 5
      %v492 = vor.u32 %v488, %v491
      %v493 = vrot.slane %v492, 4
      %v495 = vshll.u32 %v198, 16
      %v497 = vrot.slane %v495, 5
      %v498 = vsel %vm484, %v493, %v497
      %v499 = vshrl.u32 %v198, 16
      %v501 = vrot.slane %v499, 4
      %v502 = vor.u32 %v501, %v497
      %v503 = vrot.slane %v502, 4
      %v505 = vshll.u32 %v199, 16
      %v507 = vrot.slane %v505, 5
      %v508 = vsel %vm484, %v503, %v507
      %v510 = vshrl.u32 %v200, 16
      %v512 = vrot.slane %v510, 4
      %v513 = vshll.u32 %v200, 16
      %v515 = vrot.slane %v513, 5
      %v516 = vor.u32 %v512, %v515
      %v517 = vrot.slane %v516, 4
      %v519 = vshll.u32 %v201, 16
      %v521 = vrot.slane %v519, 5
      %v522 = vsel %vm484, %v517, %v521
      %v523 = vshrl.u32 %v201, 16
      %v525 = vrot.slane %v523, 4
      %v526 = vor.u32 %v525, %v521
      %v527 = vrot.slane %v526, 4
      %v529 = vshll.u32 %v202, 16
      %v531 = vrot.slane %v529, 5
      %v532 = vsel %vm484, %v527, %v531
      %v534 = vshrl.u32 %v203, 16
      %v536 = vrot.slane %v534, 4
      %v537 = vshll.u32 %v203, 16
      %v539 = vrot.slane %v537, 5
      %v540 = vor.u32 %v536, %v539
      %v541 = vrot.slane %v540, 4
      %v543 = vshll.u32 %v204, 16
      %v545 = vrot.slane %v543, 5
      %v546 = vsel %vm484, %v541, %v545
      %v547 = vshrl.u32 %v204, 16
      %v549 = vrot.slane %v547, 4
      %v550 = vor.u32 %v549, %v545
      %v551 = vrot.slane %v550, 4
      %v553 = vshll.u32 %v205, 16
      %v555 = vrot.slane %v553, 5
      %v556 = vsel %vm484, %v551, %v555
      %v558 = vshrl.u32 %v206, 16
      %v560 = vrot.slane %v558, 4
      %v561 = vshll.u32 %v206, 16
      %v563 = vrot.slane %v561, 5
      %v564 = vor.u32 %v560, %v563
      %v565 = vrot.slane %v564, 4
      %v567 = vshll.u32 %v207, 16
      %v569 = vrot.slane %v567, 5
      %v570 = vsel %vm484, %v565, %v569
      %v571 = vshrl.u32 %v207, 16
      %v573 = vrot.slane %v571, 4
      %v574 = vor.u32 %v573, %v569
      %v575 = vrot.slane %v574, 4
      %v577 = vshll.u32 %v208, 16
      %v579 = vrot.slane %v577, 5
      %v580 = vsel %vm484, %v575, %v579
      %s581 = scalar_lea.vmem %s1, 2
      %v582 = vld [vmem:[%s581] sm:$0x3]
      %v583 = vunpack.c.l.b16 %v498
      %v584 = vunpack.c.l.b16 %v508
      %v585 = vunpack.c.l.b16 %v522
      %v586 = vunpack.c.l.b16 %v532
      %v587 = vunpack.c.l.b16 %v546
      %v588 = vunpack.c.l.b16 %v556
      %v589 = vunpack.c.l.b16 %v570
      %v590 = vunpack.c.l.b16 %v580
      %v591 = vpack.c.b16 %v584, %v583
      %v592 = vpack.c.b16 %v586, %v585
      %v593 = vpack.c.b16 %v588, %v587
      %v594 = vpack.c.b16 %v590, %v589
      %v596 = vsel %vm238, %v591, 0
      %v599 = vsel %vm238, %v592, 0
      %v602 = vsel %vm238, %v593, 0
      %v605 = vsel %vm238, %v594, 0
      %v608 = vsel %vm251, %v582, 0
      %610 = vmatprep.subr.bf16.mxu0 0
      %611 = vmatpush1.bf16.msra.mxu0 %v608
      %612 = vmatprep.subr.bf16.mxu0 0
      %613 = vmatpush1.bf16.msra.mxu0 0
      %614 = vmatprep.subr.bf16.mxu0 0
      %615 = vmatpush1.bf16.msra.mxu0 0
      %616 = vmatprep.subr.bf16.mxu0 0
      %617 = vmatpush1.bf16.msra.mxu0 0
      %618 = vmatprep.subr.bf16.mxu0 0
      %619 = vmatpush1.bf16.msra.mxu0 0
      %620 = vmatprep.subr.bf16.mxu0 0
      %621 = vmatpush1.bf16.msra.mxu0 0
      %622 = vmatprep.subr.bf16.mxu0 0
      %623 = vmatpush1.bf16.msra.mxu0 0
      %624 = vmatprep.subr.bf16.mxu0 0
      %625 = vmatpush1.bf16.msra.mxu0 0
      %626 = vmatprep.subr.bf16.mxu0 0
      %627 = vmatpush1.bf16.msra.mxu0 0
      %628 = vmatprep.subr.bf16.mxu0 0
      %629 = vmatpush1.bf16.msra.mxu0 0
      %630 = vmatprep.subr.bf16.mxu0 0
      %631 = vmatpush1.bf16.msra.mxu0 0
      %632 = vmatprep.subr.bf16.mxu0 0
      %633 = vmatpush1.bf16.msra.mxu0 0
      %634 = vmatprep.subr.bf16.mxu0 0
      %635 = vmatpush1.bf16.msra.mxu0 0
      %636 = vmatprep.subr.bf16.mxu0 0
      %637 = vmatpush1.bf16.msra.mxu0 0
      %638 = vmatprep.subr.bf16.mxu0 0
      %639 = vmatpush1.bf16.msra.mxu0 0
      %640 = vmatprep.subr.bf16.mxu0 0
      %641 = vmatpush1.bf16.msra.mxu0 0
      %642 = vmatprep.mubr.bf16.mxu0 0
      %643 = vmatmul.mubr.bf16.gmra.mrb[0].mxu0 %v596
      %v644 = vpop.f32.mrb[0].mxu0
      %v645 = vadd.f32 0.0, %v644
      %v646 = vpop.f32.mrb[0].mxu0
      %v647 = vpop.f32.mrb[0].mxu0
      %v648 = vadd.f32 0.0, %v647
      %v649 = vpop.f32.mrb[0].mxu0
      %650 = vmatprep.mubr.bf16.mxu0 0
      %651 = vmatmul.mubr.bf16.gmra.mrb[0].mxu0 %v599
      %v652 = vpop.f32.mrb[0].mxu0
      %v653 = vadd.f32 0.0, %v652
      %v654 = vpop.f32.mrb[0].mxu0
      %v655 = vpop.f32.mrb[0].mxu0
      %v656 = vadd.f32 0.0, %v655
      %v657 = vpop.f32.mrb[0].mxu0
      %658 = vmatprep.mubr.bf16.mxu0 0
      %659 = vmatmul.mubr.bf16.gmra.mrb[0].mxu0 %v602
      %v660 = vpop.f32.mrb[0].mxu0
      %v661 = vadd.f32 0.0, %v660
      %v662 = vpop.f32.mrb[0].mxu0
      %v663 = vpop.f32.mrb[0].mxu0
      %v664 = vadd.f32 0.0, %v663
      %v665 = vpop.f32.mrb[0].mxu0
      %666 = vmatprep.mubr.bf16.mxu0 0
      %667 = vmatmul.mubr.bf16.gmra.mrb[0].mxu0 %v605
      %v668 = vpop.f32.mrb[0].mxu0
      %v669 = vadd.f32 0.0, %v668
      %v670 = vpop.f32.mrb[0].mxu0
      %v671 = vpop.f32.mrb[0].mxu0
      %v672 = vadd.f32 0.0, %v671
      %v673 = vpop.f32.mrb[0].mxu0
      %674 = vdwg.mxu0
      %v675 = vadd.f32 %v474, %v645
      %v676 = vadd.f32 %v475, %v648
      %v677 = vadd.f32 %v476, %v653
      %v678 = vadd.f32 %v477, %v656
      %v679 = vadd.f32 %v478, %v661
      %v680 = vadd.f32 %v479, %v664
      %v681 = vadd.f32 %v480, %v669
      %v682 = vadd.f32 %v481, %v672
      %v684 = vshrl.u32 %v209, 16
      %v686 = vrot.slane %v684, 4
      %v687 = vshll.u32 %v209, 16
      %v689 = vrot.slane %v687, 5
      %v690 = vor.u32 %v686, %v689
      %v691 = vrot.slane %v690, 4
      %v693 = vshll.u32 %v210, 16
      %v695 = vrot.slane %v693, 5
      %v696 = vsel %vm484, %v691, %v695
      %v697 = vshrl.u32 %v210, 16
      %v699 = vrot.slane %v697, 4
      %v700 = vor.u32 %v699, %v695
      %v701 = vrot.slane %v700, 4
      %v703 = vshll.u32 %v211, 16
      %v705 = vrot.slane %v703, 5
      %v706 = vsel %vm484, %v701, %v705
      %s707 = scalar_lea.vmem %s1, 8
      %v708 = vld [vmem:[%s707] sm:$0x3]
      %v709 = vunpack.c.l.b16 %v696
      %v710 = vunpack.c.l.b16 %v706
      %v711 = vpack.c.b16 %v710, %v709
      %v713 = vsel %vm238, %v711, 0
      %v716 = vsel %vm251, %v708, 0
      %718 = vmatprep.subr.bf16.mxu0 0
      %719 = vmatpush1.bf16.msra.mxu0 %v716
      %720 = vmatprep.subr.bf16.mxu0 0
      %721 = vmatpush1.bf16.msra.mxu0 0
      %722 = vmatprep.subr.bf16.mxu0 0
      %723 = vmatpush1.bf16.msra.mxu0 0
      %724 = vmatprep.subr.bf16.mxu0 0
      %725 = vmatpush1.bf16.msra.mxu0 0
      %726 = vmatprep.subr.bf16.mxu0 0
      %727 = vmatpush1.bf16.msra.mxu0 0
      %728 = vmatprep.subr.bf16.mxu0 0
      %729 = vmatpush1.bf16.msra.mxu0 0
      %730 = vmatprep.subr.bf16.mxu0 0
      %731 = vmatpush1.bf16.msra.mxu0 0
      %732 = vmatprep.subr.bf16.mxu0 0
      %733 = vmatpush1.bf16.msra.mxu0 0
      %734 = vmatprep.subr.bf16.mxu0 0
      %735 = vmatpush1.bf16.msra.mxu0 0
      %736 = vmatprep.subr.bf16.mxu0 0
      %737 = vmatpush1.bf16.msra.mxu0 0
      %738 = vmatprep.subr.bf16.mxu0 0
      %739 = vmatpush1.bf16.msra.mxu0 0
      %740 = vmatprep.subr.bf16.mxu0 0
      %741 = vmatpush1.bf16.msra.mxu0 0
      %742 = vmatprep.subr.bf16.mxu0 0
      %743 = vmatpush1.bf16.msra.mxu0 0
      %744 = vmatprep.subr.bf16.mxu0 0
      %745 = vmatpush1.bf16.msra.mxu0 0
      %746 = vmatprep.subr.bf16.mxu0 0
      %747 = vmatpush1.bf16.msra.mxu0 0
      %748 = vmatprep.subr.bf16.mxu0 0
      %749 = vmatpush1.bf16.msra.mxu0 0
      %750 = vmatprep.mubr.bf16.mxu0 0
      %751 = vmatmul.mubr.bf16.gmra.mrb[0].mxu0 %v599
      %v752 = vpop.f32.mrb[0].mxu0
      %v753 = vadd.f32 0.0, %v752
      %v754 = vpop.f32.mrb[0].mxu0
      %v755 = vpop.f32.mrb[0].mxu0
      %v756 = vadd.f32 0.0, %v755
      %v757 = vpop.f32.mrb[0].mxu0
      %758 = vmatprep.mubr.bf16.mxu0 0
      %759 = vmatmul.mubr.bf16.gmra.mrb[0].mxu0 %v602
      %v760 = vpop.f32.mrb[0].mxu0
      %v761 = vadd.f32 0.0, %v760
      %v762 = vpop.f32.mrb[0].mxu0
      %v763 = vpop.f32.mrb[0].mxu0
      %v764 = vadd.f32 0.0, %v763
      %v765 = vpop.f32.mrb[0].mxu0
      %766 = vmatprep.mubr.bf16.mxu0 0
      %767 = vmatmul.mubr.bf16.gmra.mrb[0].mxu0 %v605
      %v768 = vpop.f32.mrb[0].mxu0
      %v769 = vadd.f32 0.0, %v768
      %v770 = vpop.f32.mrb[0].mxu0
      %v771 = vpop.f32.mrb[0].mxu0
      %v772 = vadd.f32 0.0, %v771
      %v773 = vpop.f32.mrb[0].mxu0
      %774 = vmatprep.mubr.bf16.mxu0 0
      %775 = vmatmul.mubr.bf16.gmra.mrb[0].mxu0 %v713
      %v776 = vpop.f32.mrb[0].mxu0
      %v777 = vadd.f32 0.0, %v776
      %v778 = vpop.f32.mrb[0].mxu0
      %v779 = vpop.f32.mrb[0].mxu0
      %v780 = vadd.f32 0.0, %v779
      %v781 = vpop.f32.mrb[0].mxu0
      %782 = vdwg.mxu0
      %v783 = vadd.f32 %v675, %v753
      %v784 = vadd.f32 %v676, %v756
      %v785 = vadd.f32 %v677, %v761
      %v786 = vadd.f32 %v678, %v764
      %v787 = vadd.f32 %v679, %v769
      %v788 = vadd.f32 %v680, %v772
      %v789 = vadd.f32 %v681, %v777
      %v790 = vadd.f32 %v682, %v780
      %v792 = vshrl.u32 %v212, 16
      %v794 = vrot.slane %v792, 4
      %v795 = vshll.u32 %v212, 16
      %v797 = vrot.slane %v795, 5
      %v798 = vor.u32 %v794, %v797
      %v799 = vrot.slane %v798, 4
      %v801 = vshll.u32 %v213, 16
      %v803 = vrot.slane %v801, 5
      %v804 = vsel %vm484, %v799, %v803
      %v805 = vshrl.u32 %v213, 16
      %v807 = vrot.slane %v805, 4
      %v808 = vor.u32 %v807, %v803
      %v809 = vrot.slane %v808, 4
      %v811 = vshll.u32 %v214, 16
      %v813 = vrot.slane %v811, 5
      %v814 = vsel %vm484, %v809, %v813
      %s815 = scalar_lea.vmem %s1, 14
      %v816 = vld [vmem:[%s815] sm:$0x3]
      %v817 = vunpack.c.l.b16 %v804
      %v818 = vunpack.c.l.b16 %v814
      %v819 = vpack.c.b16 %v818, %v817
      %v821 = vsel %vm238, %v819, 0
      %v824 = vsel %vm251, %v816, 0
      %826 = vmatprep.subr.bf16.mxu0 0
      %827 = vmatpush1.bf16.msra.mxu0 %v824
      %828 = vmatprep.subr.bf16.mxu0 0
      %829 = vmatpush1.bf16.msra.mxu0 0
      %830 = vmatprep.subr.bf16.mxu0 0
      %831 = vmatpush1.bf16.msra.mxu0 0
      %832 = vmatprep.subr.bf16.mxu0 0
      %833 = vmatpush1.bf16.msra.mxu0 0
      %834 = vmatprep.subr.bf16.mxu0 0
      %835 = vmatpush1.bf16.msra.mxu0 0
      %836 = vmatprep.subr.bf16.mxu0 0
      %837 = vmatpush1.bf16.msra.mxu0 0
      %838 = vmatprep.subr.bf16.mxu0 0
      %839 = vmatpush1.bf16.msra.mxu0 0
      %840 = vmatprep.subr.bf16.mxu0 0
      %841 = vmatpush1.bf16.msra.mxu0 0
      %842 = vmatprep.subr.bf16.mxu0 0
      %843 = vmatpush1.bf16.msra.mxu0 0
      %844 = vmatprep.subr.bf16.mxu0 0
      %845 = vmatpush1.bf16.msra.mxu0 0
      %846 = vmatprep.subr.bf16.mxu0 0
      %847 = vmatpush1.bf16.msra.mxu0 0
      %848 = vmatprep.subr.bf16.mxu0 0
      %849 = vmatpush1.bf16.msra.mxu0 0
      %850 = vmatprep.subr.bf16.mxu0 0
      %851 = vmatpush1.bf16.msra.mxu0 0
      %852 = vmatprep.subr.bf16.mxu0 0
      %853 = vmatpush1.bf16.msra.mxu0 0
      %854 = vmatprep.subr.bf16.mxu0 0
      %855 = vmatpush1.bf16.msra.mxu0 0
      %856 = vmatprep.subr.bf16.mxu0 0
      %857 = vmatpush1.bf16.msra.mxu0 0
      %858 = vmatprep.mubr.bf16.mxu0 0
      %859 = vmatmul.mubr.bf16.gmra.mrb[0].mxu0 %v602
      %v860 = vpop.f32.mrb[0].mxu0
      %v861 = vadd.f32 0.0, %v860
      %v862 = vpop.f32.mrb[0].mxu0
      %v863 = vpop.f32.mrb[0].mxu0
      %v864 = vadd.f32 0.0, %v863
      %v865 = vpop.f32.mrb[0].mxu0
      %866 = vmatprep.mubr.bf16.mxu0 0
      %867 = vmatmul.mubr.bf16.gmra.mrb[0].mxu0 %v605
      %v868 = vpop.f32.mrb[0].mxu0
      %v869 = vadd.f32 0.0, %v868
      %v870 = vpop.f32.mrb[0].mxu0
      %v871 = vpop.f32.mrb[0].mxu0
      %v872 = vadd.f32 0.0, %v871
      %v873 = vpop.f32.mrb[0].mxu0
      %874 = vmatprep.mubr.bf16.mxu0 0
      %875 = vmatmul.mubr.bf16.gmra.mrb[0].mxu0 %v713
      %v876 = vpop.f32.mrb[0].mxu0
      %v877 = vadd.f32 0.0, %v876
      %v878 = vpop.f32.mrb[0].mxu0
      %v879 = vpop.f32.mrb[0].mxu0
      %v880 = vadd.f32 0.0, %v879
      %v881 = vpop.f32.mrb[0].mxu0
      %882 = vmatprep.mubr.bf16.mxu0 0
      %883 = vmatmul.mubr.bf16.gmra.mrb[0].mxu0 %v821
      %v884 = vpop.f32.mrb[0].mxu0
      %v885 = vadd.f32 0.0, %v884
      %v886 = vpop.f32.mrb[0].mxu0
      %v887 = vpop.f32.mrb[0].mxu0
      %v888 = vadd.f32 0.0, %v887
      %v889 = vpop.f32.mrb[0].mxu0
      %890 = vdwg.mxu0
      %v891 = vadd.f32 %v783, %v861
      %v892 = vadd.f32 %v784, %v864
      %v893 = vadd.f32 %v785, %v869
      %v894 = vadd.f32 %v786, %v872
      %v895 = vadd.f32 %v787, %v877
      %v896 = vadd.f32 %v788, %v880
      %v897 = vadd.f32 %v789, %v885
      %v898 = vadd.f32 %v790, %v888
      %vm903 = vcmask 1042432
      %vm904 = vcmask 1046532
      %vm905 = vmor %vm903, %vm904
      %v906 = vrot.slane %v197, 5
      %v907 = vrot.slane %v906, 4
      %v908 = vrot.slane %v198, 5
      %v909 = vsel %vm905, %v907, %v908
      %v910 = vrot.slane %v908, 4
      %v911 = vrot.slane %v199, 5
      %v912 = vsel %vm905, %v910, %v911
      %v913 = vrot.slane %v200, 5
      %v914 = vrot.slane %v913, 4
      %v915 = vrot.slane %v201, 5
      %v916 = vsel %vm905, %v914, %v915
      %v917 = vrot.slane %v915, 4
      %v918 = vrot.slane %v202, 5
      %v919 = vsel %vm905, %v917, %v918
      %v920 = vrot.slane %v203, 5
      %v921 = vrot.slane %v920, 4
      %v922 = vrot.slane %v204, 5
      %v923 = vsel %vm905, %v921, %v922
      %v924 = vrot.slane %v922, 4
      %v925 = vrot.slane %v205, 5
      %v926 = vsel %vm905, %v924, %v925
      %v927 = vrot.slane %v206, 5
      %v928 = vrot.slane %v927, 4
      %v929 = vrot.slane %v207, 5
      %v930 = vsel %vm905, %v928, %v929
      %v931 = vrot.slane %v929, 4
      %v932 = vrot.slane %v208, 5
      %v933 = vsel %vm905, %v931, %v932
      %s934 = scalar_lea.vmem %s1, 4
      %v935 = vld [vmem:[%s934] sm:$0x3]
      %v936 = vunpack.c.l.b16 %v909
      %v937 = vunpack.c.l.b16 %v912
      %v938 = vunpack.c.l.b16 %v916
      %v939 = vunpack.c.l.b16 %v919
      %v940 = vunpack.c.l.b16 %v923
      %v941 = vunpack.c.l.b16 %v926
      %v942 = vunpack.c.l.b16 %v930
      %v943 = vunpack.c.l.b16 %v933
      %v944 = vpack.c.b16 %v937, %v936
      %v945 = vpack.c.b16 %v939, %v938
      %v946 = vpack.c.b16 %v941, %v940
      %v947 = vpack.c.b16 %v943, %v942
      %v949 = vsel %vm238, %v944, 0
      %v952 = vsel %vm238, %v945, 0
      %v955 = vsel %vm238, %v946, 0
      %v958 = vsel %vm238, %v947, 0
      %v961 = vsel %vm251, %v935, 0
      %963 = vmatprep.subr.bf16.mxu0 0
      %964 = vmatpush1.bf16.msra.mxu0 %v961
      %965 = vmatprep.subr.bf16.mxu0 0
      %966 = vmatpush1.bf16.msra.mxu0 0
      %967 = vmatprep.subr.bf16.mxu0 0
      %968 = vmatpush1.bf16.msra.mxu0 0
      %969 = vmatprep.subr.bf16.mxu0 0
      %970 = vmatpush1.bf16.msra.mxu0 0
      %971 = vmatprep.subr.bf16.mxu0 0
      %972 = vmatpush1.bf16.msra.mxu0 0
      %973 = vmatprep.subr.bf16.mxu0 0
      %974 = vmatpush1.bf16.msra.mxu0 0
      %975 = vmatprep.subr.bf16.mxu0 0
      %976 = vmatpush1.bf16.msra.mxu0 0
      %977 = vmatprep.subr.bf16.mxu0 0
      %978 = vmatpush1.bf16.msra.mxu0 0
      %979 = vmatprep.subr.bf16.mxu0 0
      %980 = vmatpush1.bf16.msra.mxu0 0
      %981 = vmatprep.subr.bf16.mxu0 0
      %982 = vmatpush1.bf16.msra.mxu0 0
      %983 = vmatprep.subr.bf16.mxu0 0
      %984 = vmatpush1.bf16.msra.mxu0 0
      %985 = vmatprep.subr.bf16.mxu0 0
      %986 = vmatpush1.bf16.msra.mxu0 0
      %987 = vmatprep.subr.bf16.mxu0 0
      %988 = vmatpush1.bf16.msra.mxu0 0
      %989 = vmatprep.subr.bf16.mxu0 0
      %990 = vmatpush1.bf16.msra.mxu0 0
      %991 = vmatprep.subr.bf16.mxu0 0
      %992 = vmatpush1.bf16.msra.mxu0 0
      %993 = vmatprep.subr.bf16.mxu0 0
      %994 = vmatpush1.bf16.msra.mxu0 0
      %995 = vmatprep.mubr.bf16.mxu0 0
      %996 = vmatmul.mubr.bf16.gmra.mrb[0].mxu0 %v949
      %v997 = vpop.f32.mrb[0].mxu0
      %v998 = vadd.f32 0.0, %v997
      %v999 = vpop.f32.mrb[0].mxu0
      %v1000 = vpop.f32.mrb[0].mxu0
      %v1001 = vadd.f32 0.0, %v1000
      %v1002 = vpop.f32.mrb[0].mxu0
      %1003 = vmatprep.mubr.bf16.mxu0 0
      %1004 = vmatmul.mubr.bf16.gmra.mrb[0].mxu0 %v952
      %v1005 = vpop.f32.mrb[0].mxu0
      %v1006 = vadd.f32 0.0, %v1005
      %v1007 = vpop.f32.mrb[0].mxu0
      %v1008 = vpop.f32.mrb[0].mxu0
      %v1009 = vadd.f32 0.0, %v1008
      %v1010 = vpop.f32.mrb[0].mxu0
      %1011 = vmatprep.mubr.bf16.mxu0 0
      %1012 = vmatmul.mubr.bf16.gmra.mrb[0].mxu0 %v955
      %v1013 = vpop.f32.mrb[0].mxu0
      %v1014 = vadd.f32 0.0, %v1013
      %v1015 = vpop.f32.mrb[0].mxu0
      %v1016 = vpop.f32.mrb[0].mxu0
      %v1017 = vadd.f32 0.0, %v1016
      %v1018 = vpop.f32.mrb[0].mxu0
      %1019 = vmatprep.mubr.bf16.mxu0 0
      %1020 = vmatmul.mubr.bf16.gmra.mrb[0].mxu0 %v958
      %v1021 = vpop.f32.mrb[0].mxu0
      %v1022 = vadd.f32 0.0, %v1021
      %v1023 = vpop.f32.mrb[0].mxu0
      %v1024 = vpop.f32.mrb[0].mxu0
      %v1025 = vadd.f32 0.0, %v1024
      %v1026 = vpop.f32.mrb[0].mxu0
      %1027 = vdwg.mxu0
      %v1028 = vadd.f32 %v891, %v998
      %v1029 = vadd.f32 %v892, %v1001
      %v1030 = vadd.f32 %v893, %v1006
      %v1031 = vadd.f32 %v894, %v1009
      %v1032 = vadd.f32 %v895, %v1014
      %v1033 = vadd.f32 %v896, %v1017
      %v1034 = vadd.f32 %v897, %v1022
      %v1035 = vadd.f32 %v898, %v1025
      %v1037 = vrot.slane %v209, 5
      %v1038 = vrot.slane %v1037, 4
      %v1039 = vrot.slane %v210, 5
      %v1040 = vsel %vm905, %v1038, %v1039
      %v1041 = vrot.slane %v1039, 4
      %v1042 = vrot.slane %v211, 5
      %v1043 = vsel %vm905, %v1041, %v1042
      %s1044 = scalar_lea.vmem %s1, 10
      %v1045 = vld [vmem:[%s1044] sm:$0x3]
      %v1046 = vunpack.c.l.b16 %v1040
      %v1047 = vunpack.c.l.b16 %v1043
      %v1048 = vpack.c.b16 %v1047, %v1046
      %v1050 = vsel %vm238, %v1048, 0
      %v1053 = vsel %vm251, %v1045, 0
      %1055 = vmatprep.subr.bf16.mxu0 0
      %1056 = vmatpush1.bf16.msra.mxu0 %v1053
      %1057 = vmatprep.subr.bf16.mxu0 0
      %1058 = vmatpush1.bf16.msra.mxu0 0
      %1059 = vmatprep.subr.bf16.mxu0 0
      %1060 = vmatpush1.bf16.msra.mxu0 0
      %1061 = vmatprep.subr.bf16.mxu0 0
      %1062 = vmatpush1.bf16.msra.mxu0 0
      %1063 = vmatprep.subr.bf16.mxu0 0
      %1064 = vmatpush1.bf16.msra.mxu0 0
      %1065 = vmatprep.subr.bf16.mxu0 0
      %1066 = vmatpush1.bf16.msra.mxu0 0
      %1067 = vmatprep.subr.bf16.mxu0 0
      %1068 = vmatpush1.bf16.msra.mxu0 0
      %1069 = vmatprep.subr.bf16.mxu0 0
      %1070 = vmatpush1.bf16.msra.mxu0 0
      %1071 = vmatprep.subr.bf16.mxu0 0
      %1072 = vmatpush1.bf16.msra.mxu0 0
      %1073 = vmatprep.subr.bf16.mxu0 0
      %1074 = vmatpush1.bf16.msra.mxu0 0
      %1075 = vmatprep.subr.bf16.mxu0 0
      %1076 = vmatpush1.bf16.msra.mxu0 0
      %1077 = vmatprep.subr.bf16.mxu0 0
      %1078 = vmatpush1.bf16.msra.mxu0 0
      %1079 = vmatprep.subr.bf16.mxu0 0
      %1080 = vmatpush1.bf16.msra.mxu0 0
      %1081 = vmatprep.subr.bf16.mxu0 0
      %1082 = vmatpush1.bf16.msra.mxu0 0
      %1083 = vmatprep.subr.bf16.mxu0 0
      %1084 = vmatpush1.bf16.msra.mxu0 0
      %1085 = vmatprep.subr.bf16.mxu0 0
      %1086 = vmatpush1.bf16.msra.mxu0 0
      %1087 = vmatprep.mubr.bf16.mxu0 0
      %1088 = vmatmul.mubr.bf16.gmra.mrb[0].mxu0 %v952
      %v1089 = vpop.f32.mrb[0].mxu0
      %v1090 = vadd.f32 0.0, %v1089
      %v1091 = vpop.f32.mrb[0].mxu0
      %v1092 = vpop.f32.mrb[0].mxu0
      %v1093 = vadd.f32 0.0, %v1092
      %v1094 = vpop.f32.mrb[0].mxu0
      %1095 = vmatprep.mubr.bf16.mxu0 0
      %1096 = vmatmul.mubr.bf16.gmra.mrb[0].mxu0 %v955
      %v1097 = vpop.f32.mrb[0].mxu0
      %v1098 = vadd.f32 0.0, %v1097
      %v1099 = vpop.f32.mrb[0].mxu0
      %v1100 = vpop.f32.mrb[0].mxu0
      %v1101 = vadd.f32 0.0, %v1100
      %v1102 = vpop.f32.mrb[0].mxu0
      %1103 = vmatprep.mubr.bf16.mxu0 0
      %1104 = vmatmul.mubr.bf16.gmra.mrb[0].mxu0 %v958
      %v1105 = vpop.f32.mrb[0].mxu0
      %v1106 = vadd.f32 0.0, %v1105
      %v1107 = vpop.f32.mrb[0].mxu0
      %v1108 = vpop.f32.mrb[0].mxu0
      %v1109 = vadd.f32 0.0, %v1108
      %v1110 = vpop.f32.mrb[0].mxu0
      %1111 = vmatprep.mubr.bf16.mxu0 0
      %1112 = vmatmul.mubr.bf16.gmra.mrb[0].mxu0 %v1050
      %v1113 = vpop.f32.mrb[0].mxu0
      %v1114 = vadd.f32 0.0, %v1113
      %v1115 = vpop.f32.mrb[0].mxu0
      %v1116 = vpop.f32.mrb[0].mxu0
      %v1117 = vadd.f32 0.0, %v1116
      %v1118 = vpop.f32.mrb[0].mxu0
      %1119 = vdwg.mxu0
      %v1120 = vadd.f32 %v1028, %v1090
      %v1121 = vadd.f32 %v1029, %v1093
      %v1122 = vadd.f32 %v1030, %v1098
      %v1123 = vadd.f32 %v1031, %v1101
      %v1124 = vadd.f32 %v1032, %v1106
      %v1125 = vadd.f32 %v1033, %v1109
      %v1126 = vadd.f32 %v1034, %v1114
      %v1127 = vadd.f32 %v1035, %v1117
      %v1129 = vrot.slane %v212, 5
      %v1130 = vrot.slane %v1129, 4
      %v1131 = vrot.slane %v213, 5
      %v1132 = vsel %vm905, %v1130, %v1131
      %v1133 = vrot.slane %v1131, 4
      %v1134 = vrot.slane %v214, 5
      %v1135 = vsel %vm905, %v1133, %v1134
      %s1136 = scalar_lea.vmem %s1, 16
      %v1137 = vld [vmem:[%s1136] sm:$0x3]
      %v1138 = vunpack.c.l.b16 %v1132
      %v1139 = vunpack.c.l.b16 %v1135
      %v1140 = vpack.c.b16 %v1139, %v1138
      %v1142 = vsel %vm238, %v1140, 0
      %v1145 = vsel %vm251, %v1137, 0
      %1147 = vmatprep.subr.bf16.mxu0 0
      %1148 = vmatpush1.bf16.msra.mxu0 %v1145
      %1149 = vmatprep.subr.bf16.mxu0 0
      %1150 = vmatpush1.bf16.msra.mxu0 0
      %1151 = vmatprep.subr.bf16.mxu0 0
      %1152 = vmatpush1.bf16.msra.mxu0 0
      %1153 = vmatprep.subr.bf16.mxu0 0
      %1154 = vmatpush1.bf16.msra.mxu0 0
      %1155 = vmatprep.subr.bf16.mxu0 0
      %1156 = vmatpush1.bf16.msra.mxu0 0
      %1157 = vmatprep.subr.bf16.mxu0 0
      %1158 = vmatpush1.bf16.msra.mxu0 0
      %1159 = vmatprep.subr.bf16.mxu0 0
      %1160 = vmatpush1.bf16.msra.mxu0 0
      %1161 = vmatprep.subr.bf16.mxu0 0
      %1162 = vmatpush1.bf16.msra.mxu0 0
      %1163 = vmatprep.subr.bf16.mxu0 0
      %1164 = vmatpush1.bf16.msra.mxu0 0
      %1165 = vmatprep.subr.bf16.mxu0 0
      %1166 = vmatpush1.bf16.msra.mxu0 0
      %1167 = vmatprep.subr.bf16.mxu0 0
      %1168 = vmatpush1.bf16.msra.mxu0 0
      %1169 = vmatprep.subr.bf16.mxu0 0
      %1170 = vmatpush1.bf16.msra.mxu0 0
      %1171 = vmatprep.subr.bf16.mxu0 0
      %1172 = vmatpush1.bf16.msra.mxu0 0
      %1173 = vmatprep.subr.bf16.mxu0 0
      %1174 = vmatpush1.bf16.msra.mxu0 0
      %1175 = vmatprep.subr.bf16.mxu0 0
      %1176 = vmatpush1.bf16.msra.mxu0 0
      %1177 = vmatprep.subr.bf16.mxu0 0
      %1178 = vmatpush1.bf16.msra.mxu0 0
      %1179 = vmatprep.mubr.bf16.mxu0 0
      %1180 = vmatmul.mubr.bf16.gmra.mrb[0].mxu0 %v955
      %v1181 = vpop.f32.mrb[0].mxu0
      %v1182 = vadd.f32 0.0, %v1181
      %v1183 = vpop.f32.mrb[0].mxu0
      %v1184 = vpop.f32.mrb[0].mxu0
      %v1185 = vadd.f32 0.0, %v1184
      %v1186 = vpop.f32.mrb[0].mxu0
      %1187 = vmatprep.mubr.bf16.mxu0 0
      %1188 = vmatmul.mubr.bf16.gmra.mrb[0].mxu0 %v958
      %v1189 = vpop.f32.mrb[0].mxu0
      %v1190 = vadd.f32 0.0, %v1189
      %v1191 = vpop.f32.mrb[0].mxu0
      %v1192 = vpop.f32.mrb[0].mxu0
      %v1193 = vadd.f32 0.0, %v1192
      %v1194 = vpop.f32.mrb[0].mxu0
      %1195 = vmatprep.mubr.bf16.mxu0 0
      %1196 = vmatmul.mubr.bf16.gmra.mrb[0].mxu0 %v1050
      %v1197 = vpop.f32.mrb[0].mxu0
      %v1198 = vadd.f32 0.0, %v1197
      %v1199 = vpop.f32.mrb[0].mxu0
      %v1200 = vpop.f32.mrb[0].mxu0
      %v1201 = vadd.f32 0.0, %v1200
      %v1202 = vpop.f32.mrb[0].mxu0
      %1203 = vmatprep.mubr.bf16.mxu0 0
      %1204 = vmatmul.mubr.bf16.gmra.mrb[0].mxu0 %v1142
      %v1205 = vpop.f32.mrb[0].mxu0
      %v1206 = vadd.f32 0.0, %v1205
      %v1207 = vpop.f32.mrb[0].mxu0
      %v1208 = vpop.f32.mrb[0].mxu0
      %v1209 = vadd.f32 0.0, %v1208
      %v1210 = vpop.f32.mrb[0].mxu0
      %1211 = vdwg.mxu0
      %v1212 = vadd.f32 %v1120, %v1182
      %v1213 = vadd.f32 %v1121, %v1185
      %v1214 = vadd.f32 %v1122, %v1190
      %v1215 = vadd.f32 %v1123, %v1193
      %v1216 = vadd.f32 %v1124, %v1198
      %v1217 = vadd.f32 %v1125, %v1201
      %v1218 = vadd.f32 %v1126, %v1206
      %v1219 = vadd.f32 %v1127, %v1209
      %v1220 = vld [vmem:[%s2] sm:$0x1]
      %v1222 = vlaneseq
      %v1223 = vshrl.u32 %v1222, 7
      %v1224 = vsub.s32 0, %v1223
      %v1225 = vrot.slane %v1220, %v1224
      %v1227 = vmul.f32 %v1212, %v1225
      %v1228 = vmul.f32 %v1213, %v1225
      %v1229 = vmul.f32 %v1214, %v1225
      %v1230 = vmul.f32 %v1215, %v1225
      %v1231 = vmul.f32 %v1216, %v1225
      %v1232 = vmul.f32 %v1217, %v1225
      %v1233 = vmul.f32 %v1218, %v1225
      %v1234 = vmul.f32 %v1219, %v1225
      %v1235 = vld [vmem:[%s3] sm:$0x1]
      %v1237 = vlaneseq
      %v1238 = vshrl.u32 %v1237, 7
      %v1239 = vsub.s32 0, %v1238
      %v1240 = vrot.slane %v1235, %v1239
      %v1242 = vadd.f32 %v1227, %v1240
      %v1243 = vadd.f32 %v1228, %v1240
      %v1244 = vadd.f32 %v1229, %v1240
      %v1245 = vadd.f32 %v1230, %v1240
      %v1246 = vadd.f32 %v1231, %v1240
      %v1247 = vadd.f32 %v1232, %v1240
      %v1248 = vadd.f32 %v1233, %v1240
      %v1249 = vadd.f32 %v1234, %v1240
      %vm1250 = vcmp.ge.f32.partialorder %v1242, 0.0
      %vm1251 = vcmp.ge.f32.partialorder %v1243, 0.0
      %vm1252 = vcmp.ge.f32.partialorder %v1244, 0.0
      %vm1253 = vcmp.ge.f32.partialorder %v1245, 0.0
      %vm1254 = vcmp.ge.f32.partialorder %v1246, 0.0
      %vm1255 = vcmp.ge.f32.partialorder %v1247, 0.0
      %vm1256 = vcmp.ge.f32.partialorder %v1248, 0.0
      %vm1257 = vcmp.ge.f32.partialorder %v1249, 0.0
      %v1258 = vmul.f32 %v1242, 0.05
      %v1259 = vmul.f32 %v1243, 0.05
      %v1260 = vmul.f32 %v1244, 0.05
      %v1261 = vmul.f32 %v1245, 0.05
      %v1262 = vmul.f32 %v1246, 0.05
      %v1263 = vmul.f32 %v1247, 0.05
      %v1264 = vmul.f32 %v1248, 0.05
      %v1265 = vmul.f32 %v1249, 0.05
      %v1266 = vsel %vm1250, %v1242, %v1258
      %v1267 = vsel %vm1251, %v1243, %v1259
      %v1268 = vsel %vm1252, %v1244, %v1260
      %v1269 = vsel %vm1253, %v1245, %v1261
      %v1270 = vsel %vm1254, %v1246, %v1262
      %v1271 = vsel %vm1255, %v1247, %v1263
      %v1272 = vsel %vm1256, %v1248, %v1264
      %v1273 = vsel %vm1257, %v1249, %v1265
      %vm1274 = vcmask 261120
      %v1275 = vsel %vm1274, %v1266, 0.0
      %v1276 = vsel %vm1274, %v1267, 0.0
      %v1277 = vadd.f32 %v1275, %v1276
      %v1278 = vsel %vm1274, %v1268, 0.0
      %v1279 = vadd.f32 %v1277, %v1278
      %v1280 = vsel %vm1274, %v1269, 0.0
      %v1281 = vadd.f32 %v1279, %v1280
      %v1282 = vsel %vm1274, %v1270, 0.0
      %v1283 = vadd.f32 %v1281, %v1282
      %v1284 = vsel %vm1274, %v1271, 0.0
      %v1285 = vadd.f32 %v1283, %v1284
      %v1286 = vsel %vm1274, %v1272, 0.0
      %v1287 = vadd.f32 %v1285, %v1286
      %v1288 = vsel %vm1274, %v1273, 0.0
      %v1289 = vadd.f32 %v1287, %v1288
      %v1290 = vrot.slane %v1289, 4
      %v1291 = vadd.f32 %v1289, %v1290
      %v1292 = vrot.slane %v1291, 2
      %v1293 = vadd.f32 %v1291, %v1292
      %v1294 = vrot.slane %v1293, 1
      %v1295 = vadd.f32 %v1293, %v1294
      %v1296 = vmul.f32 %v1266, %v1266
      %v1297 = vmul.f32 %v1267, %v1267
      %v1298 = vmul.f32 %v1268, %v1268
      %v1299 = vmul.f32 %v1269, %v1269
      %v1300 = vmul.f32 %v1270, %v1270
      %v1301 = vmul.f32 %v1271, %v1271
      %v1302 = vmul.f32 %v1272, %v1272
      %v1303 = vmul.f32 %v1273, %v1273
      %v1304 = vsel %vm1274, %v1296, 0.0
      %v1305 = vsel %vm1274, %v1297, 0.0
      %v1306 = vadd.f32 %v1304, %v1305
      %v1307 = vsel %vm1274, %v1298, 0.0
      %v1308 = vadd.f32 %v1306, %v1307
      %v1309 = vsel %vm1274, %v1299, 0.0
      %v1310 = vadd.f32 %v1308, %v1309
      %v1311 = vsel %vm1274, %v1300, 0.0
      %v1312 = vadd.f32 %v1310, %v1311
      %v1313 = vsel %vm1274, %v1301, 0.0
      %v1314 = vadd.f32 %v1312, %v1313
      %v1315 = vsel %vm1274, %v1302, 0.0
      %v1316 = vadd.f32 %v1314, %v1315
      %v1317 = vsel %vm1274, %v1303, 0.0
      %v1318 = vadd.f32 %v1316, %v1317
      %v1319 = vrot.slane %v1318, 4
      %v1320 = vadd.f32 %v1318, %v1319
      %v1321 = vrot.slane %v1320, 2
      %v1322 = vadd.f32 %v1320, %v1321
      %v1323 = vrot.slane %v1322, 1
      %v1324 = vadd.f32 %v1322, %v1323
      %vm1325 = vcmask 1040384
      %v1326 = vsel %vm1325, %v1295, %v1324
      %vm1327 = vcmask 254976
      %1328 = vst.msk [vmem:[%s195] sm:$0x3] %vm1327, %v1326
      %p1329 = scmp.lt.s32.totalorder %s15, 7
      %s1330 = scalar_select %p1329, %s15, 7
      %s1331 = smul.addr %s1330, 2
      %s1332 = scalar_lea.vmem %s4, %s1331
      // Predicated region
      $region37: #{residual_deconv_block.4} parent=35 // pred_check
        %p1333 = pneg %p122
      $region38: #{residual_deconv_block.4} parent=35 // pred_check_branch
        %1335 = sbr.rel (%p1333) target = $region40
      $region39: #{residual_deconv_block.4} parent=35 // pred_region
        _
      $region40: #{residual_deconv_block.4} parent=35 // pred_fallthru
        _
    $region36: #{residual_deconv_block.4} parent=5 // pred_fallthru
      _
    %p1336 = scmp.le.s32.totalorder 2, %s10
    // Predicated region
    $region41: #{residual_deconv_block.4} parent=5 // pred_check
      %p1337 = pneg %p1336
    $region42: #{residual_deconv_block.4} parent=5 // pred_check_branch
      %1339 = sbr.rel (%p1337) target = $region44
    $region43: #{residual_deconv_block.4} parent=5 // pred_region
      %s1340 = ssub.s32 %s10, 2
      // Predicated region
      $region45: #{residual_deconv_block.4} parent=43 // pred_check
        %p1341 = pneg %p128
      $region46: #{residual_deconv_block.4} parent=43 // pred_check_branch
        %1343 = sbr.rel (%p1341) target = $region48
      $region47: #{residual_deconv_block.4} parent=43 // pred_region
        %p1344 = scmp.lt.s32.totalorder %s16, 7
        %s1345 = scalar_select %p1344, %s16, 7
        %s1346 = smul.addr %s1345, 2
        %s1347 = scalar_lea.vmem %s4, %s1346
      $region48: #{residual_deconv_block.4} parent=43 // pred_fallthru
        _
    $region44: #{residual_deconv_block.4} parent=5 // pred_fallthru
      _
  $region6: #{residual_deconv_block.4} parent=0 // loop_footer
    %s14 = sadd.s32 1, %s10
  $region7: #{residual_deconv_block.4} parent=0 // loop_footer_branch
    %9 = sbr.rel target = $region3
  $region8: #{residual_deconv_block.4} parent=0 // loop_exit
    _

// kernel: residual_deconv_block.5
$region0: #{residual_deconv_block.5}
  #allocation0 [shape = 'u32[]', space=smem, size = 0x4, offset = 0x4, fixed_abs, tag = 'smem constant byte address 0x4 - core index']
  #allocation1 [shape = 'u32[144,128]{1,0:T(1,128)}', space=vmem, size = 0x12000, scoped, tag = 'internal scratch']
  %s0 = inlined_call_operand.vmem [shape: bf16[8,6,18,4], index: 0, kind: input, shape index: {}]
  %s1 = inlined_call_operand.vmem [shape: bf16[8,6,18,4], index: 1, kind: input, shape index: {}]
  %s2 = inlined_call_operand.vmem [shape: bf16[9,4,32], index: 2, kind: input, shape index: {}]
  %s3 = inlined_call_operand.vmem [shape: bf16[9,4,32], index: 3, kind: input, shape index: {}]
  %s4 = inlined_call_operand.vmem [shape: f32[1,32], index: 4, kind: input, shape index: {}]
  %s5 = inlined_call_operand.vmem [shape: f32[1,32], index: 5, kind: input, shape index: {}]
  %s6 = inlined_call_operand.vmem [shape: f32[1,32], index: 6, kind: input, shape index: {}]
  %s7 = inlined_call_operand.vmem [shape: f32[1,32], index: 7, kind: input, shape index: {}]
  %s8 = inlined_call_operand.vmem [shape: f32[8,64,32], index: 8, kind: output, shape index: {}]
  %s9 = sld [smem:[#allocation0]]
  $region65: #{residual_deconv_block.5} parent=0
    _
  %s11 = ssub.s32 1, %s9
  %s12 = scalar_select 0, %s11, %s9
  loop: start=0, step=1, limit=10
  $region2: #{residual_deconv_block.5} parent=0 // loop_pre_header
    _
  $region3: #{residual_deconv_block.5} parent=0 // loop_header
    %s14 = sphi 0, %s18
    %p15 = scmp.ge.s32.totalorder %s14, 10
    %s24 = sphi 0, %s26
    %s27 = sphi 0, %s24
    %s28 = sphi 0, %s27
    %s44 = sphi 0, %s28
    %s50 = sphi 0, %s52
    %s53 = sphi 0, %s50
    %s54 = sphi 0, %s53
    %s70 = sphi 0, %s54
    %s74 = sphi 0, %s74
    %s76 = sphi 0, %s74
    %s77 = sphi 0, %s76
    %s91 = sphi 0, %s77
    %s95 = sphi 0, %s95
    %s97 = sphi 0, %s95
    %s98 = sphi 0, %s97
    %s112 = sphi 0, %s98
    %s116 = sphi 0, %s116
    %s118 = sphi 0, %s116
    %s119 = sphi 0, %s118
    %s133 = sphi 0, %s119
    %s137 = sphi 0, %s137
    %s139 = sphi 0, %s137
    %s140 = sphi 0, %s139
    %s154 = sphi 0, %s140
    %s158 = sphi 0, %s158
    %s160 = sphi 0, %s158
    %s161 = sphi 0, %s160
    %s175 = sphi 0, %s161
    %s179 = sphi 0, %s179
    %s181 = sphi 0, %s179
    %s182 = sphi 0, %s181
    %s196 = sphi 0, %s182
    %s202 = sphi 0, %s204
    %s205 = sphi 0, %s202
    %s206 = sphi 0, %s205
    %s222 = sphi 0, %s206
  $region4: #{residual_deconv_block.5} parent=0 // loop_header_branch
    %17 = sbr.rel (%p15) target = $region8
  $region5: #{residual_deconv_block.5} parent=0 // loop_body
    %s19 = ssub.s32 %s14, 1
    %s20 = ssub.s32 %s14, 2
    %s21 = sadd.s32 %s14, 1
    %s22 = ssub.s32 %s14, %s21
    %p23 = scmp.eq.s32.totalorder %s22, 0
    %s25 = sadd.s32 %s24, 1
    %s26 = scalar_select %p23, %s24, %s25
    %p29 = pneg %p23
    %p30 = scmp.eq.s32.totalorder %s14, 7
    %p31 = por %p29, %p30
    %p32 = scmp.ne.s32.totalorder %s24, %s27
    %p33 = scmp.eq.s32.totalorder %s14, 0
    %p34 = por %p32, %p33
    %p35 = scmp.ne.s32.totalorder %s24, %s27
    %p36 = scmp.eq.s32.totalorder %s19, 7
    %p37 = por %p35, %p36
    %p38 = scmp.ne.s32.totalorder %s27, %s28
    %p39 = scmp.eq.s32.totalorder %s19, 0
    %p40 = por %p38, %p39
    %p41 = scmp.ne.s32.totalorder %s27, %s28
    %p42 = scmp.eq.s32.totalorder %s20, 7
    %p43 = por %p41, %p42
    %p45 = scmp.ne.s32.totalorder %s28, %s44
    %p46 = scmp.eq.s32.totalorder %s20, 0
    %p47 = por %p45, %p46
    %s48 = ssub.s32 %s14, %s21
    %p49 = scmp.eq.s32.totalorder %s48, 0
    %s51 = sadd.s32 %s50, 1
    %s52 = scalar_select %p49, %s50, %s51
    %p55 = pneg %p49
    %p56 = scmp.eq.s32.totalorder %s14, 7
    %p57 = por %p55, %p56
    %p58 = scmp.ne.s32.totalorder %s50, %s53
    %p59 = scmp.eq.s32.totalorder %s14, 0
    %p60 = por %p58, %p59
    %p61 = scmp.ne.s32.totalorder %s50, %s53
    %p62 = scmp.eq.s32.totalorder %s19, 7
    %p63 = por %p61, %p62
    %p64 = scmp.ne.s32.totalorder %s53, %s54
    %p65 = scmp.eq.s32.totalorder %s19, 0
    %p66 = por %p64, %p65
    %p67 = scmp.ne.s32.totalorder %s53, %s54
    %p68 = scmp.eq.s32.totalorder %s20, 7
    %p69 = por %p67, %p68
    %p71 = scmp.ne.s32.totalorder %s54, %s70
    %p72 = scmp.eq.s32.totalorder %s20, 0
    %p73 = por %p71, %p72
    %s75 = sadd.s32 %s74, 1
    %p78 = scmp.eq.s32.totalorder %s14, 7
    %p79 = scmp.ne.s32.totalorder %s74, %s76
    %p80 = scmp.eq.s32.totalorder %s14, 0
    %p81 = por %p79, %p80
    %p82 = scmp.ne.s32.totalorder %s74, %s76
    %p83 = scmp.eq.s32.totalorder %s19, 7
    %p84 = por %p82, %p83
    %p85 = scmp.ne.s32.totalorder %s76, %s77
    %p86 = scmp.eq.s32.totalorder %s19, 0
    %p87 = por %p85, %p86
    %p88 = scmp.ne.s32.totalorder %s76, %s77
    %p89 = scmp.eq.s32.totalorder %s20, 7
    %p90 = por %p88, %p89
    %p92 = scmp.ne.s32.totalorder %s77, %s91
    %p93 = scmp.eq.s32.totalorder %s20, 0
    %p94 = por %p92, %p93
    %s96 = sadd.s32 %s95, 1
    %p99 = scmp.eq.s32.totalorder %s14, 7
    %p100 = scmp.ne.s32.totalorder %s95, %s97
    %p101 = scmp.eq.s32.totalorder %s14, 0
    %p102 = por %p100, %p101
    %p103 = scmp.ne.s32.totalorder %s95, %s97
    %p104 = scmp.eq.s32.totalorder %s19, 7
    %p105 = por %p103, %p104
    %p106 = scmp.ne.s32.totalorder %s97, %s98
    %p107 = scmp.eq.s32.totalorder %s19, 0
    %p108 = por %p106, %p107
    %p109 = scmp.ne.s32.totalorder %s97, %s98
    %p110 = scmp.eq.s32.totalorder %s20, 7
    %p111 = por %p109, %p110
    %p113 = scmp.ne.s32.totalorder %s98, %s112
    %p114 = scmp.eq.s32.totalorder %s20, 0
    %p115 = por %p113, %p114
    %s117 = sadd.s32 %s116, 1
    %p120 = scmp.eq.s32.totalorder %s14, 7
    %p121 = scmp.ne.s32.totalorder %s116, %s118
    %p122 = scmp.eq.s32.totalorder %s14, 0
    %p123 = por %p121, %p122
    %p124 = scmp.ne.s32.totalorder %s116, %s118
    %p125 = scmp.eq.s32.totalorder %s19, 7
    %p126 = por %p124, %p125
    %p127 = scmp.ne.s32.totalorder %s118, %s119
    %p128 = scmp.eq.s32.totalorder %s19, 0
    %p129 = por %p127, %p128
    %p130 = scmp.ne.s32.totalorder %s118, %s119
    %p131 = scmp.eq.s32.totalorder %s20, 7
    %p132 = por %p130, %p131
    %p134 = scmp.ne.s32.totalorder %s119, %s133
    %p135 = scmp.eq.s32.totalorder %s20, 0
    %p136 = por %p134, %p135
    %s138 = sadd.s32 %s137, 1
    %p141 = scmp.eq.s32.totalorder %s14, 7
    %p142 = scmp.ne.s32.totalorder %s137, %s139
    %p143 = scmp.eq.s32.totalorder %s14, 0
    %p144 = por %p142, %p143
    %p145 = scmp.ne.s32.totalorder %s137, %s139
    %p146 = scmp.eq.s32.totalorder %s19, 7
    %p147 = por %p145, %p146
    %p148 = scmp.ne.s32.totalorder %s139, %s140
    %p149 = scmp.eq.s32.totalorder %s19, 0
    %p150 = por %p148, %p149
    %p151 = scmp.ne.s32.totalorder %s139, %s140
    %p152 = scmp.eq.s32.totalorder %s20, 7
    %p153 = por %p151, %p152
    %p155 = scmp.ne.s32.totalorder %s140, %s154
    %p156 = scmp.eq.s32.totalorder %s20, 0
    %p157 = por %p155, %p156
    %s159 = sadd.s32 %s158, 1
    %p162 = scmp.eq.s32.totalorder %s14, 7
    %p163 = scmp.ne.s32.totalorder %s158, %s160
    %p164 = scmp.eq.s32.totalorder %s14, 0
    %p165 = por %p163, %p164
    %p166 = scmp.ne.s32.totalorder %s158, %s160
    %p167 = scmp.eq.s32.totalorder %s19, 7
    %p168 = por %p166, %p167
    %p169 = scmp.ne.s32.totalorder %s160, %s161
    %p170 = scmp.eq.s32.totalorder %s19, 0
    %p171 = por %p169, %p170
    %p172 = scmp.ne.s32.totalorder %s160, %s161
    %p173 = scmp.eq.s32.totalorder %s20, 7
    %p174 = por %p172, %p173
    %p176 = scmp.ne.s32.totalorder %s161, %s175
    %p177 = scmp.eq.s32.totalorder %s20, 0
    %p178 = por %p176, %p177
    %s180 = sadd.s32 %s179, 1
    %p183 = scmp.eq.s32.totalorder %s14, 7
    %p184 = scmp.ne.s32.totalorder %s179, %s181
    %p185 = scmp.eq.s32.totalorder %s14, 0
    %p186 = por %p184, %p185
    %p187 = scmp.ne.s32.totalorder %s179, %s181
    %p188 = scmp.eq.s32.totalorder %s19, 7
    %p189 = por %p187, %p188
    %p190 = scmp.ne.s32.totalorder %s181, %s182
    %p191 = scmp.eq.s32.totalorder %s19, 0
    %p192 = por %p190, %p191
    %p193 = scmp.ne.s32.totalorder %s181, %s182
    %p194 = scmp.eq.s32.totalorder %s20, 7
    %p195 = por %p193, %p194
    %p197 = scmp.ne.s32.totalorder %s182, %s196
    %p198 = scmp.eq.s32.totalorder %s20, 0
    %p199 = por %p197, %p198
    %s200 = ssub.s32 %s14, %s21
    %p201 = scmp.eq.s32.totalorder %s200, 0
    %s203 = sadd.s32 %s202, 1
    %s204 = scalar_select %p201, %s202, %s203
    %p207 = pneg %p201
    %p208 = scmp.eq.s32.totalorder %s14, 7
    %p209 = por %p207, %p208
    %p210 = scmp.ne.s32.totalorder %s202, %s205
    %p211 = scmp.eq.s32.totalorder %s14, 0
    %p212 = por %p210, %p211
    %p213 = scmp.ne.s32.totalorder %s202, %s205
    %p214 = scmp.eq.s32.totalorder %s19, 7
    %p215 = por %p213, %p214
    %p216 = scmp.ne.s32.totalorder %s205, %s206
    %p217 = scmp.eq.s32.totalorder %s19, 0
    %p218 = por %p216, %p217
    %p219 = scmp.ne.s32.totalorder %s205, %s206
    %p220 = scmp.eq.s32.totalorder %s20, 7
    %p221 = por %p219, %p220
    %p223 = scmp.ne.s32.totalorder %s206, %s222
    %p224 = scmp.eq.s32.totalorder %s20, 0
    %p225 = por %p223, %p224
    %p226 = scmp.le.s32.totalorder 1, %s14
    %p227 = scmp.lt.s32.totalorder %s14, 9
    %p228 = pnand %p226, %p227
    %p229 = pneg %p228
    // Predicated region
    $region9: #{residual_deconv_block.5} parent=5 // pred_check
      _
    $region10: #{residual_deconv_block.5} parent=5 // pred_check_branch
      %231 = sbr.rel (%p228) target = $region12
    $region11: #{residual_deconv_block.5} parent=5 // pred_region
      %s232 = ssub.s32 %s14, 1
      // Predicated region
      $region13: #{residual_deconv_block.5} parent=11 // pred_check
        %p233 = pneg %p87
      $region14: #{residual_deconv_block.5} parent=11 // pred_check_branch
        %235 = sbr.rel (%p233) target = $region16
      $region15: #{residual_deconv_block.5} parent=11 // pred_region
        _
      $region16: #{residual_deconv_block.5} parent=11 // pred_fallthru
        _
      // Predicated region
      $region17: #{residual_deconv_block.5} parent=11 // pred_check
        %p236 = pneg %p108
      $region18: #{residual_deconv_block.5} parent=11 // pred_check_branch
        %238 = sbr.rel (%p236) target = $region20
      $region19: #{residual_deconv_block.5} parent=11 // pred_region
        _
      $region20: #{residual_deconv_block.5} parent=11 // pred_fallthru
        _
      // Predicated region
      $region21: #{residual_deconv_block.5} parent=11 // pred_check
        %p239 = pneg %p129
      $region22: #{residual_deconv_block.5} parent=11 // pred_check_branch
        %241 = sbr.rel (%p239) target = $region24
      $region23: #{residual_deconv_block.5} parent=11 // pred_region
        _
      $region24: #{residual_deconv_block.5} parent=11 // pred_fallthru
        _
      // Predicated region
      $region25: #{residual_deconv_block.5} parent=11 // pred_check
        %p242 = pneg %p150
      $region26: #{residual_deconv_block.5} parent=11 // pred_check_branch
        %244 = sbr.rel (%p242) target = $region28
      $region27: #{residual_deconv_block.5} parent=11 // pred_region
        _
      $region28: #{residual_deconv_block.5} parent=11 // pred_fallthru
        _
      // Predicated region
      $region29: #{residual_deconv_block.5} parent=11 // pred_check
        %p245 = pneg %p171
      $region30: #{residual_deconv_block.5} parent=11 // pred_check_branch
        %247 = sbr.rel (%p245) target = $region32
      $region31: #{residual_deconv_block.5} parent=11 // pred_region
        _
      $region32: #{residual_deconv_block.5} parent=11 // pred_fallthru
        _
      // Predicated region
      $region33: #{residual_deconv_block.5} parent=11 // pred_check
        %p248 = pneg %p192
      $region34: #{residual_deconv_block.5} parent=11 // pred_check_branch
        %250 = sbr.rel (%p248) target = $region36
      $region35: #{residual_deconv_block.5} parent=11 // pred_region
        _
      $region36: #{residual_deconv_block.5} parent=11 // pred_fallthru
        _
    $region12: #{residual_deconv_block.5} parent=5 // pred_fallthru
      _
    %p251 = scmp.lt.s32.totalorder %s14, 8
    // Predicated region
    $region37: #{residual_deconv_block.5} parent=5 // pred_check
      %p252 = pneg %p251
    $region38: #{residual_deconv_block.5} parent=5 // pred_check_branch
      %254 = sbr.rel (%p252) target = $region40
    $region39: #{residual_deconv_block.5} parent=5 // pred_region
      // Predicated region
      $region41: #{residual_deconv_block.5} parent=39 // pred_check
        %p255 = pneg %p34
      $region42: #{residual_deconv_block.5} parent=39 // pred_check_branch
        %257 = sbr.rel (%p255) target = $region44
      $region43: #{residual_deconv_block.5} parent=39 // pred_region
        %p258 = scmp.lt.s32.totalorder %s14, 7
        %s259 = scalar_select %p258, %s14, 7
        %s260 = smul.addr %s259, 18
        %s261 = smul.addr %s260, 4
        %s262 = scalar_lea.vmem %s0, %s261
      $region44: #{residual_deconv_block.5} parent=39 // pred_fallthru
        _
      // Predicated region
      $region45: #{residual_deconv_block.5} parent=39 // pred_check
        %p263 = pneg %p60
      $region46: #{residual_deconv_block.5} parent=39 // pred_check_branch
        %265 = sbr.rel (%p263) target = $region48
      $region47: #{residual_deconv_block.5} parent=39 // pred_region
        %p266 = scmp.lt.s32.totalorder %s14, 7
        %s267 = scalar_select %p266, %s14, 7
        %s268 = smul.addr %s267, 18
        %s269 = smul.addr %s268, 4
        %s270 = scalar_lea.vmem %s1, %s269
      $region48: #{residual_deconv_block.5} parent=39 // pred_fallthru
        _
    $region40: #{residual_deconv_block.5} parent=5 // pred_fallthru
      _
    %p271 = scmp.le.s32.totalorder 1, %s14
    %p272 = scmp.lt.s32.totalorder %s14, 9
    %p273 = pnand %p271, %p272
    %p274 = pneg %p273
    // Predicated region
    $region49: #{residual_deconv_block.5} parent=5 // pred_check
      _
    $region50: #{residual_deconv_block.5} parent=5 // pred_check_branch
      %276 = sbr.rel (%p273) target = $region52
    $region51: #{residual_deconv_block.5} parent=5 // pred_region
      %s277 = ssub.s32 %s14, 1
      %p278 = scmp.lt.s32.totalorder %s19, 7
      %s279 = scalar_select %p278, %s19, 7
      %s280 = smul.addr %s279, 18
      %s281 = smul.addr %s280, 4
      %s282 = scalar_lea.vmem %s0, %s281
      %p283 = pneg %p40
      %p284 = pneg %p37
      %p285 = scmp.lt.s32.totalorder %s19, 7
      %s286 = scalar_select %p285, %s19, 7
      %s287 = smul.addr %s286, 18
      %s288 = smul.addr %s287, 4
      %s289 = scalar_lea.vmem %s1, %s288
      %p290 = pneg %p66
      %p291 = pneg %p63
      %p292 = pneg %p87
      %p293 = pneg %p84
      %p294 = pneg %p108
      %p295 = pneg %p105
      %p296 = pneg %p129
      %p297 = pneg %p126
      %p298 = pneg %p150
      %p299 = pneg %p147
      %p300 = pneg %p171
      %p301 = pneg %p168
      %p302 = pneg %p192
      %p303 = pneg %p189
      %p304 = pneg %p218
      %p305 = pneg %p215
      %p306 = scmp.lt.s32.totalorder %s19, 7
      %s307 = scalar_select %p306, %s19, 7
      %s308 = smul.addr %s307, 8
      %s309 = smul.addr %s308, 8
      %s310 = scalar_lea.vmem %s8, %s309
      %p311 = scmp.lt.s32.totalorder %s19, 7
      %s312 = scalar_select %p311, %s19, 7
      %s313 = smul.addr %s312, 18
      %s314 = smul.addr %s313, 4
      %s315 = scalar_lea.vmem %s0, %s314
      %p316 = scmp.lt.s32.totalorder %s19, 7
      %s317 = scalar_select %p316, %s19, 7
      %s318 = smul.addr %s317, 18
      %s319 = smul.addr %s318, 4
      %s320 = scalar_lea.vmem %s1, %s319
      %p321 = scmp.lt.s32.totalorder %s19, 7
      %s322 = scalar_select %p321, %s19, 7
      %s323 = smul.addr %s322, 8
      %s324 = smul.addr %s323, 8
      %s325 = scalar_lea.vmem %s8, %s324
      %v327 = vld [vmem:[%s315] sm:$0xf]
      %v328 = vld [vmem:[%s315 + $0x4] sm:$0xf]
      %v329 = vld [vmem:[%s315 + $0x8] sm:$0x1]
      %v330 = vld [vmem:[%s315 + $0xc] sm:$0xf]
      %v331 = vld [vmem:[%s315 + $0x10] sm:$0xf]
      %v332 = vld [vmem:[%s315 + $0x14] sm:$0x1]
      %v333 = vld [vmem:[%s315 + $0x18] sm:$0xf]
      %v334 = vld [vmem:[%s315 + $0x1c] sm:$0xf]
      %v335 = vld [vmem:[%s315 + $0x20] sm:$0x1]
      %v336 = vld [vmem:[%s315 + $0x24] sm:$0xf]
      %v337 = vld [vmem:[%s315 + $0x28] sm:$0xf]
      %v338 = vld [vmem:[%s315 + $0x2c] sm:$0x1]
      %v339 = vld [vmem:[%s315 + $0x30] sm:$0xf]
      %v340 = vld [vmem:[%s315 + $0x34] sm:$0xf]
      %v341 = vld [vmem:[%s315 + $0x38] sm:$0x1]
      %v342 = vld [vmem:[%s315 + $0x3c] sm:$0xf]
      %v343 = vld [vmem:[%s315 + $0x40] sm:$0xf]
      %v344 = vld [vmem:[%s315 + $0x44] sm:$0x1]
      %v345 = vld [vmem:[%s2] sm:$0x3]
      %s346 = scalar_lea.vmem %s2, 6
      %v347 = vld [vmem:[%s346] sm:$0x3]
      %v356 = vunpack.c.l.b16 %v330
      %v357 = vunpack.c.l.b16 %v331
      %v358 = vunpack.c.l.b16 %v333
      %v359 = vunpack.c.l.b16 %v334
      %v360 = vunpack.c.l.b16 %v336
      %v361 = vunpack.c.l.b16 %v337
      %v362 = vunpack.c.l.b16 %v339
      %v363 = vunpack.c.l.b16 %v340
      %v364 = vpack.c.b16 %v357, %v356
      %v365 = vpack.c.b16 %v359, %v358
      %v366 = vpack.c.b16 %v361, %v360
      %v367 = vpack.c.b16 %v363, %v362
      %vm368 = vcmask 31744
      %v370 = vsel %vm368, %v364, 0
      %v373 = vsel %vm368, %v365, 0
      %v376 = vsel %vm368, %v366, 0
      %v379 = vsel %vm368, %v367, 0
      %vm381 = vcmask 1041408
      %v383 = vsel %vm381, %v347, 0
      %385 = vmatprep.subr.bf16.mxu0 0
      %386 = vmatpush1.bf16.msra.mxu0 %v383
      %387 = vmatprep.subr.bf16.mxu0 0
      %388 = vmatpush1.bf16.msra.mxu0 0
      %389 = vmatprep.subr.bf16.mxu0 0
      %390 = vmatpush1.bf16.msra.mxu0 0
      %391 = vmatprep.subr.bf16.mxu0 0
      %392 = vmatpush1.bf16.msra.mxu0 0
      %393 = vmatprep.subr.bf16.mxu0 0
      %394 = vmatpush1.bf16.msra.mxu0 0
      %395 = vmatprep.subr.bf16.mxu0 0
      %396 = vmatpush1.bf16.msra.mxu0 0
      %397 = vmatprep.subr.bf16.mxu0 0
      %398 = vmatpush1.bf16.msra.mxu0 0
      %399 = vmatprep.subr.bf16.mxu0 0
      %400 = vmatpush1.bf16.msra.mxu0 0
      %401 = vmatprep.subr.bf16.mxu0 0
      %402 = vmatpush1.bf16.msra.mxu0 0
      %403 = vmatprep.subr.bf16.mxu0 0
      %404 = vmatpush1.bf16.msra.mxu0 0
      %405 = vmatprep.subr.bf16.mxu0 0
      %406 = vmatpush1.bf16.msra.mxu0 0
      %407 = vmatprep.subr.bf16.mxu0 0
      %408 = vmatpush1.bf16.msra.mxu0 0
      %409 = vmatprep.subr.bf16.mxu0 0
      %410 = vmatpush1.bf16.msra.mxu0 0
      %411 = vmatprep.subr.bf16.mxu0 0
      %412 = vmatpush1.bf16.msra.mxu0 0
      %413 = vmatprep.subr.bf16.mxu0 0
      %414 = vmatpush1.bf16.msra.mxu0 0
      %415 = vmatprep.subr.bf16.mxu0 0
      %416 = vmatpush1.bf16.msra.mxu0 0
      %417 = vmatprep.mubr.bf16.mxu0 0
      %418 = vmatmul.mubr.bf16.gmra.mrb[0].mxu0 %v370
      %v419 = vpop.f32.mrb[0].mxu0
      %v420 = vadd.f32 0.0, %v419
      %v421 = vpop.f32.mrb[0].mxu0
      %v422 = vpop.f32.mrb[0].mxu0
      %v423 = vadd.f32 0.0, %v422
      %v424 = vpop.f32.mrb[0].mxu0
      %425 = vmatprep.mubr.bf16.mxu0 0
      %426 = vmatmul.mubr.bf16.gmra.mrb[0].mxu0 %v373
      %v427 = vpop.f32.mrb[0].mxu0
      %v428 = vadd.f32 0.0, %v427
      %v429 = vpop.f32.mrb[0].mxu0
      %v430 = vpop.f32.mrb[0].mxu0
      %v431 = vadd.f32 0.0, %v430
      %v432 = vpop.f32.mrb[0].mxu0
      %433 = vmatprep.mubr.bf16.mxu0 0
      %434 = vmatmul.mubr.bf16.gmra.mrb[0].mxu0 %v376
      %v435 = vpop.f32.mrb[0].mxu0
      %v436 = vadd.f32 0.0, %v435
      %v437 = vpop.f32.mrb[0].mxu0
      %v438 = vpop.f32.mrb[0].mxu0
      %v439 = vadd.f32 0.0, %v438
      %v440 = vpop.f32.mrb[0].mxu0
      %441 = vmatprep.mubr.bf16.mxu0 0
      %442 = vmatmul.mubr.bf16.gmra.mrb[0].mxu0 %v379
      %v443 = vpop.f32.mrb[0].mxu0
      %v444 = vadd.f32 0.0, %v443
      %v445 = vpop.f32.mrb[0].mxu0
      %v446 = vpop.f32.mrb[0].mxu0
      %v447 = vadd.f32 0.0, %v446
      %v448 = vpop.f32.mrb[0].mxu0
      %449 = vdwg.mxu0
      %v452 = vunpack.c.l.b16 %v327
      %v453 = vunpack.c.l.b16 %v328
      %v454 = vpack.c.b16 %v453, %v452
      %v456 = vsel %vm368, %v454, 0
      %v459 = vsel %vm381, %v345, 0
      %461 = vmatprep.subr.bf16.mxu0 0
      %462 = vmatpush1.bf16.msra.mxu0 %v459
      %463 = vmatprep.subr.bf16.mxu0 0
      %464 = vmatpush1.bf16.msra.mxu0 0
      %465 = vmatprep.subr.bf16.mxu0 0
      %466 = vmatpush1.bf16.msra.mxu0 0
      %467 = vmatprep.subr.bf16.mxu0 0
      %468 = vmatpush1.bf16.msra.mxu0 0
      %469 = vmatprep.subr.bf16.mxu0 0
      %470 = vmatpush1.bf16.msra.mxu0 0
      %471 = vmatprep.subr.bf16.mxu0 0
      %472 = vmatpush1.bf16.msra.mxu0 0
      %473 = vmatprep.subr.bf16.mxu0 0
      %474 = vmatpush1.bf16.msra.mxu0 0
      %475 = vmatprep.subr.bf16.mxu0 0
      %476 = vmatpush1.bf16.msra.mxu0 0
      %477 = vmatprep.subr.bf16.mxu0 0
      %478 = vmatpush1.bf16.msra.mxu0 0
      %479 = vmatprep.subr.bf16.mxu0 0
      %480 = vmatpush1.bf16.msra.mxu0 0
      %481 = vmatprep.subr.bf16.mxu0 0
      %482 = vmatpush1.bf16.msra.mxu0 0
      %483 = vmatprep.subr.bf16.mxu0 0
      %484 = vmatpush1.bf16.msra.mxu0 0
      %485 = vmatprep.subr.bf16.mxu0 0
      %486 = vmatpush1.bf16.msra.mxu0 0
      %487 = vmatprep.subr.bf16.mxu0 0
      %488 = vmatpush1.bf16.msra.mxu0 0
      %489 = vmatprep.subr.bf16.mxu0 0
      %490 = vmatpush1.bf16.msra.mxu0 0
      %491 = vmatprep.subr.bf16.mxu0 0
      %492 = vmatpush1.bf16.msra.mxu0 0
      %493 = vmatprep.mubr.bf16.mxu0 0
      %494 = vmatmul.mubr.bf16.gmra.mrb[0].mxu0 %v456
      %v495 = vpop.f32.mrb[0].mxu0
      %v496 = vadd.f32 %v420, %v495
      %v497 = vpop.f32.mrb[0].mxu0
      %v498 = vpop.f32.mrb[0].mxu0
      %v499 = vadd.f32 %v423, %v498
      %v500 = vpop.f32.mrb[0].mxu0
      %501 = vmatprep.mubr.bf16.mxu0 0
      %502 = vmatmul.mubr.bf16.gmra.mrb[0].mxu0 %v370
      %v503 = vpop.f32.mrb[0].mxu0
      %v504 = vadd.f32 %v428, %v503
      %v505 = vpop.f32.mrb[0].mxu0
      %v506 = vpop.f32.mrb[0].mxu0
      %v507 = vadd.f32 %v431, %v506
      %v508 = vpop.f32.mrb[0].mxu0
      %509 = vmatprep.mubr.bf16.mxu0 0
      %510 = vmatmul.mubr.bf16.gmra.mrb[0].mxu0 %v373
      %v511 = vpop.f32.mrb[0].mxu0
      %v512 = vadd.f32 %v436, %v511
      %v513 = vpop.f32.mrb[0].mxu0
      %v514 = vpop.f32.mrb[0].mxu0
      %v515 = vadd.f32 %v439, %v514
      %v516 = vpop.f32.mrb[0].mxu0
      %517 = vmatprep.mubr.bf16.mxu0 0
      %518 = vmatmul.mubr.bf16.gmra.mrb[0].mxu0 %v376
      %v519 = vpop.f32.mrb[0].mxu0
      %v520 = vadd.f32 %v444, %v519
      %v521 = vpop.f32.mrb[0].mxu0
      %v522 = vpop.f32.mrb[0].mxu0
      %v523 = vadd.f32 %v447, %v522
      %v524 = vpop.f32.mrb[0].mxu0
      %525 = vdwg.mxu0
      %s526 = scalar_lea.vmem %s2, 12
      %v527 = vld [vmem:[%s526] sm:$0x3]
      %v530 = vunpack.c.l.b16 %v342
      %v531 = vunpack.c.l.b16 %v343
      %v532 = vpack.c.b16 %v531, %v530
      %v534 = vsel %vm368, %v532, 0
      %v537 = vsel %vm381, %v527, 0
      %539 = vmatprep.subr.bf16.mxu0 0
      %540 = vmatpush1.bf16.msra.mxu0 %v537
      %541 = vmatprep.subr.bf16.mxu0 0
      %542 = vmatpush1.bf16.msra.mxu0 0
      %543 = vmatprep.subr.bf16.mxu0 0
      %544 = vmatpush1.bf16.msra.mxu0 0
      %545 = vmatprep.subr.bf16.mxu0 0
      %546 = vmatpush1.bf16.msra.mxu0 0
      %547 = vmatprep.subr.bf16.mxu0 0
      %548 = vmatpush1.bf16.msra.mxu0 0
      %549 = vmatprep.subr.bf16.mxu0 0
      %550 = vmatpush1.bf16.msra.mxu0 0
      %551 = vmatprep.subr.bf16.mxu0 0
      %552 = vmatpush1.bf16.msra.mxu0 0
      %553 = vmatprep.subr.bf16.mxu0 0
      %554 = vmatpush1.bf16.msra.mxu0 0
      %555 = vmatprep.subr.bf16.mxu0 0
      %556 = vmatpush1.bf16.msra.mxu0 0
      %557 = vmatprep.subr.bf16.mxu0 0
      %558 = vmatpush1.bf16.msra.mxu0 0
      %559 = vmatprep.subr.bf16.mxu0 0
      %560 = vmatpush1.bf16.msra.mxu0 0
      %561 = vmatprep.subr.bf16.mxu0 0
      %562 = vmatpush1.bf16.msra.mxu0 0
      %563 = vmatprep.subr.bf16.mxu0 0
      %564 = vmatpush1.bf16.msra.mxu0 0
      %565 = vmatprep.subr.bf16.mxu0 0
      %566 = vmatpush1.bf16.msra.mxu0 0
      %567 = vmatprep.subr.bf16.mxu0 0
      %568 = vmatpush1.bf16.msra.mxu0 0
      %569 = vmatprep.subr.bf16.mxu0 0
      %570 = vmatpush1.bf16.msra.mxu0 0
      %571 = vmatprep.mubr.bf16.mxu0 0
      %572 = vmatmul.mubr.bf16.gmra.mrb[0].mxu0 %v373
      %v573 = vpop.f32.mrb[0].mxu0
      %v574 = vadd.f32 0.0, %v573
      %v575 = vpop.f32.mrb[0].mxu0
      %v576 = vpop.f32.mrb[0].mxu0
      %v577 = vadd.f32 0.0, %v576
      %v578 = vpop.f32.mrb[0].mxu0
      %579 = vmatprep.mubr.bf16.mxu0 0
      %580 = vmatmul.mubr.bf16.gmra.mrb[0].mxu0 %v376
      %v581 = vpop.f32.mrb[0].mxu0
      %v582 = vadd.f32 0.0, %v581
      %v583 = vpop.f32.mrb[0].mxu0
      %v584 = vpop.f32.mrb[0].mxu0
      %v585 = vadd.f32 0.0, %v584
      %v586 = vpop.f32.mrb[0].mxu0
      %587 = vmatprep.mubr.bf16.mxu0 0
      %588 = vmatmul.mubr.bf16.gmra.mrb[0].mxu0 %v379
      %v589 = vpop.f32.mrb[0].mxu0
      %v590 = vadd.f32 0.0, %v589
      %v591 = vpop.f32.mrb[0].mxu0
      %v592 = vpop.f32.mrb[0].mxu0
      %v593 = vadd.f32 0.0, %v592
      %v594 = vpop.f32.mrb[0].mxu0
      %595 = vmatprep.mubr.bf16.mxu0 0
      %596 = vmatmul.mubr.bf16.gmra.mrb[0].mxu0 %v534
      %v597 = vpop.f32.mrb[0].mxu0
      %v598 = vadd.f32 0.0, %v597
      %v599 = vpop.f32.mrb[0].mxu0
      %v600 = vpop.f32.mrb[0].mxu0
      %v601 = vadd.f32 0.0, %v600
      %v602 = vpop.f32.mrb[0].mxu0
      %603 = vdwg.mxu0
      %v604 = vadd.f32 %v496, %v574
      %v605 = vadd.f32 %v499, %v577
      %v606 = vadd.f32 %v504, %v582
      %v607 = vadd.f32 %v507, %v585
      %v608 = vadd.f32 %v512, %v590
      %v609 = vadd.f32 %v515, %v593
      %v610 = vadd.f32 %v520, %v598
      %v611 = vadd.f32 %v523, %v601
      %vm612 = vsmask.f32 3328
      %vm613 = vsmask.f32 7440
      %vm614 = vmor %vm612, %vm613
      %v616 = vshrl.u32 %v327, 16
      %v618 = vrot.slane %v616, 4
      %v619 = vshll.u32 %v327, 16
      %v621 = vrot.slane %v619, 5
      %v622 = vor.u32 %v618, %v621
      %v623 = vrot.slane %v622, 4
      %v625 = vshll.u32 %v328, 16
      %v627 = vrot.slane %v625, 5
      %v628 = vsel %vm614, %v623, %v627
      %v629 = vshrl.u32 %v328, 16
      %v631 = vrot.slane %v629, 4
      %v632 = vor.u32 %v631, %v627
      %v633 = vrot.slane %v632, 4
      %v635 = vshll.u32 %v329, 16
      %v637 = vrot.slane %v635, 5
      %v638 = vsel %vm614, %v633, %v637
      %v640 = vshrl.u32 %v330, 16
      %v642 = vrot.slane %v640, 4
      %v643 = vshll.u32 %v330, 16
      %v645 = vrot.slane %v643, 5
      %v646 = vor.u32 %v642, %v645
      %v647 = vrot.slane %v646, 4
      %v649 = vshll.u32 %v331, 16
      %v651 = vrot.slane %v649, 5
      %v652 = vsel %vm614, %v647, %v651
      %v653 = vshrl.u32 %v331, 16
      %v655 = vrot.slane %v653, 4
      %v656 = vor.u32 %v655, %v651
      %v657 = vrot.slane %v656, 4
      %v659 = vshll.u32 %v332, 16
      %v661 = vrot.slane %v659, 5
      %v662 = vsel %vm614, %v657, %v661
      %v664 = vshrl.u32 %v333, 16
      %v666 = vrot.slane %v664, 4
      %v667 = vshll.u32 %v333, 16
      %v669 = vrot.slane %v667, 5
      %v670 = vor.u32 %v666, %v669
      %v671 = vrot.slane %v670, 4
      %v673 = vshll.u32 %v334, 16
      %v675 = vrot.slane %v673, 5
      %v676 = vsel %vm614, %v671, %v675
      %v677 = vshrl.u32 %v334, 16
      %v679 = vrot.slane %v677, 4
      %v680 = vor.u32 %v679, %v675
      %v681 = vrot.slane %v680, 4
      %v683 = vshll.u32 %v335, 16
      %v685 = vrot.slane %v683, 5
      %v686 = vsel %vm614, %v681, %v685
      %v688 = vshrl.u32 %v336, 16
      %v690 = vrot.slane %v688, 4
      %v691 = vshll.u32 %v336, 16
      %v693 = vrot.slane %v691, 5
      %v694 = vor.u32 %v690, %v693
      %v695 = vrot.slane %v694, 4
      %v697 = vshll.u32 %v337, 16
      %v699 = vrot.slane %v697, 5
      %v700 = vsel %vm614, %v695, %v699
      %v701 = vshrl.u32 %v337, 16
      %v703 = vrot.slane %v701, 4
      %v704 = vor.u32 %v703, %v699
      %v705 = vrot.slane %v704, 4
      %v707 = vshll.u32 %v338, 16
      %v709 = vrot.slane %v707, 5
      %v710 = vsel %vm614, %v705, %v709
      %s711 = scalar_lea.vmem %s2, 2
      %v712 = vld [vmem:[%s711] sm:$0x3]
      %v713 = vunpack.c.l.b16 %v628
      %v714 = vunpack.c.l.b16 %v638
      %v715 = vunpack.c.l.b16 %v652
      %v716 = vunpack.c.l.b16 %v662
      %v717 = vunpack.c.l.b16 %v676
      %v718 = vunpack.c.l.b16 %v686
      %v719 = vunpack.c.l.b16 %v700
      %v720 = vunpack.c.l.b16 %v710
      %v721 = vpack.c.b16 %v714, %v713
      %v722 = vpack.c.b16 %v716, %v715
      %v723 = vpack.c.b16 %v718, %v717
      %v724 = vpack.c.b16 %v720, %v719
      %v726 = vsel %vm368, %v721, 0
      %v729 = vsel %vm368, %v722, 0
      %v732 = vsel %vm368, %v723, 0
      %v735 = vsel %vm368, %v724, 0
      %v738 = vsel %vm381, %v712, 0
      %740 = vmatprep.subr.bf16.mxu0 0
      %741 = vmatpush1.bf16.msra.mxu0 %v738
      %742 = vmatprep.subr.bf16.mxu0 0
      %743 = vmatpush1.bf16.msra.mxu0 0
      %744 = vmatprep.subr.bf16.mxu0 0
      %745 = vmatpush1.bf16.msra.mxu0 0
      %746 = vmatprep.subr.bf16.mxu0 0
      %747 = vmatpush1.bf16.msra.mxu0 0
      %748 = vmatprep.subr.bf16.mxu0 0
      %749 = vmatpush1.bf16.msra.mxu0 0
      %750 = vmatprep.subr.bf16.mxu0 0
      %751 = vmatpush1.bf16.msra.mxu0 0
      %752 = vmatprep.subr.bf16.mxu0 0
      %753 = vmatpush1.bf16.msra.mxu0 0
      %754 = vmatprep.subr.bf16.mxu0 0
      %755 = vmatpush1.bf16.msra.mxu0 0
      %756 = vmatprep.subr.bf16.mxu0 0
      %757 = vmatpush1.bf16.msra.mxu0 0
      %758 = vmatprep.subr.bf16.mxu0 0
      %759 = vmatpush1.bf16.msra.mxu0 0
      %760 = vmatprep.subr.bf16.mxu0 0
      %761 = vmatpush1.bf16.msra.mxu0 0
      %762 = vmatprep.subr.bf16.mxu0 0
      %763 = vmatpush1.bf16.msra.mxu0 0
      %764 = vmatprep.subr.bf16.mxu0 0
      %765 = vmatpush1.bf16.msra.mxu0 0
      %766 = vmatprep.subr.bf16.mxu0 0
      %767 = vmatpush1.bf16.msra.mxu0 0
      %768 = vmatprep.subr.bf16.mxu0 0
      %769 = vmatpush1.bf16.msra.mxu0 0
      %770 = vmatprep.subr.bf16.mxu0 0
      %771 = vmatpush1.bf16.msra.mxu0 0
      %772 = vmatprep.mubr.bf16.mxu0 0
      %773 = vmatmul.mubr.bf16.gmra.mrb[0].mxu0 %v726
      %v774 = vpop.f32.mrb[0].mxu0
      %v775 = vadd.f32 0.0, %v774
      %v776 = vpop.f32.mrb[0].mxu0
      %v777 = vpop.f32.mrb[0].mxu0
      %v778 = vadd.f32 0.0, %v777
      %v779 = vpop.f32.mrb[0].mxu0
      %780 = vmatprep.mubr.bf16.mxu0 0
      %781 = vmatmul.mubr.bf16.gmra.mrb[0].mxu0 %v729
      %v782 = vpop.f32.mrb[0].mxu0
      %v783 = vadd.f32 0.0, %v782
      %v784 = vpop.f32.mrb[0].mxu0
      %v785 = vpop.f32.mrb[0].mxu0
      %v786 = vadd.f32 0.0, %v785
      %v787 = vpop.f32.mrb[0].mxu0
      %788 = vmatprep.mubr.bf16.mxu0 0
      %789 = vmatmul.mubr.bf16.gmra.mrb[0].mxu0 %v732
      %v790 = vpop.f32.mrb[0].mxu0
      %v791 = vadd.f32 0.0, %v790
      %v792 = vpop.f32.mrb[0].mxu0
      %v793 = vpop.f32.mrb[0].mxu0
      %v794 = vadd.f32 0.0, %v793
      %v795 = vpop.f32.mrb[0].mxu0
      %796 = vmatprep.mubr.bf16.mxu0 0
      %797 = vmatmul.mubr.bf16.gmra.mrb[0].mxu0 %v735
      %v798 = vpop.f32.mrb[0].mxu0
      %v799 = vadd.f32 0.0, %v798
      %v800 = vpop.f32.mrb[0].mxu0
      %v801 = vpop.f32.mrb[0].mxu0
      %v802 = vadd.f32 0.0, %v801
      %v803 = vpop.f32.mrb[0].mxu0
      %804 = vdwg.mxu0
      %v805 = vadd.f32 %v604, %v775
      %v806 = vadd.f32 %v605, %v778
      %v807 = vadd.f32 %v606, %v783
      %v808 = vadd.f32 %v607, %v786
      %v809 = vadd.f32 %v608, %v791
      %v810 = vadd.f32 %v609, %v794
      %v811 = vadd.f32 %v610, %v799
      %v812 = vadd.f32 %v611, %v802
      %v814 = vshrl.u32 %v339, 16
      %v816 = vrot.slane %v814, 4
      %v817 = vshll.u32 %v339, 16
      %v819 = vrot.slane %v817, 5
      %v820 = vor.u32 %v816, %v819
      %v821 = vrot.slane %v820, 4
      %v823 = vshll.u32 %v340, 16
      %v825 = vrot.slane %v823, 5
      %v826 = vsel %vm614, %v821, %v825
      %v827 = vshrl.u32 %v340, 16
      %v829 = vrot.slane %v827, 4
      %v830 = vor.u32 %v829, %v825
      %v831 = vrot.slane %v830, 4
      %v833 = vshll.u32 %v341, 16
      %v835 = vrot.slane %v833, 5
      %v836 = vsel %vm614, %v831, %v835
      %s837 = scalar_lea.vmem %s2, 8
      %v838 = vld [vmem:[%s837] sm:$0x3]
      %v839 = vunpack.c.l.b16 %v826
      %v840 = vunpack.c.l.b16 %v836
      %v841 = vpack.c.b16 %v840, %v839
      %v843 = vsel %vm368, %v841, 0
      %v846 = vsel %vm381, %v838, 0
      %848 = vmatprep.subr.bf16.mxu0 0
      %849 = vmatpush1.bf16.msra.mxu0 %v846
      %850 = vmatprep.subr.bf16.mxu0 0
      %851 = vmatpush1.bf16.msra.mxu0 0
      %852 = vmatprep.subr.bf16.mxu0 0
      %853 = vmatpush1.bf16.msra.mxu0 0
      %854 = vmatprep.subr.bf16.mxu0 0
      %855 = vmatpush1.bf16.msra.mxu0 0
      %856 = vmatprep.subr.bf16.mxu0 0
      %857 = vmatpush1.bf16.msra.mxu0 0
      %858 = vmatprep.subr.bf16.mxu0 0
      %859 = vmatpush1.bf16.msra.mxu0 0
      %860 = vmatprep.subr.bf16.mxu0 0
      %861 = vmatpush1.bf16.msra.mxu0 0
      %862 = vmatprep.subr.bf16.mxu0 0
      %863 = vmatpush1.bf16.msra.mxu0 0
      %864 = vmatprep.subr.bf16.mxu0 0
      %865 = vmatpush1.bf16.msra.mxu0 0
      %866 = vmatprep.subr.bf16.mxu0 0
      %867 = vmatpush1.bf16.msra.mxu0 0
      %868 = vmatprep.subr.bf16.mxu0 0
      %869 = vmatpush1.bf16.msra.mxu0 0
      %870 = vmatprep.subr.bf16.mxu0 0
      %871 = vmatpush1.bf16.msra.mxu0 0
      %872 = vmatprep.subr.bf16.mxu0 0
      %873 = vmatpush1.bf16.msra.mxu0 0
      %874 = vmatprep.subr.bf16.mxu0 0
      %875 = vmatpush1.bf16.msra.mxu0 0
      %876 = vmatprep.subr.bf16.mxu0 0
      %877 = vmatpush1.bf16.msra.mxu0 0
      %878 = vmatprep.subr.bf16.mxu0 0
      %879 = vmatpush1.bf16.msra.mxu0 0
      %880 = vmatprep.mubr.bf16.mxu0 0
      %881 = vmatmul.mubr.bf16.gmra.mrb[0].mxu0 %v729
      %v882 = vpop.f32.mrb[0].mxu0
      %v883 = vadd.f32 0.0, %v882
      %v884 = vpop.f32.mrb[0].mxu0
      %v885 = vpop.f32.mrb[0].mxu0
      %v886 = vadd.f32 0.0, %v885
      %v887 = vpop.f32.mrb[0].mxu0
      %888 = vmatprep.mubr.bf16.mxu0 0
      %889 = vmatmul.mubr.bf16.gmra.mrb[0].mxu0 %v732
      %v890 = vpop.f32.mrb[0].mxu0
      %v891 = vadd.f32 0.0, %v890
      %v892 = vpop.f32.mrb[0].mxu0
      %v893 = vpop.f32.mrb[0].mxu0
      %v894 = vadd.f32 0.0, %v893
      %v895 = vpop.f32.mrb[0].mxu0
      %896 = vmatprep.mubr.bf16.mxu0 0
      %897 = vmatmul.mubr.bf16.gmra.mrb[0].mxu0 %v735
      %v898 = vpop.f32.mrb[0].mxu0
      %v899 = vadd.f32 0.0, %v898
      %v900 = vpop.f32.mrb[0].mxu0
      %v901 = vpop.f32.mrb[0].mxu0
      %v902 = vadd.f32 0.0, %v901
      %v903 = vpop.f32.mrb[0].mxu0
      %904 = vmatprep.mubr.bf16.mxu0 0
      %905 = vmatmul.mubr.bf16.gmra.mrb[0].mxu0 %v843
      %v906 = vpop.f32.mrb[0].mxu0
      %v907 = vadd.f32 0.0, %v906
      %v908 = vpop.f32.mrb[0].mxu0
      %v909 = vpop.f32.mrb[0].mxu0
      %v910 = vadd.f32 0.0, %v909
      %v911 = vpop.f32.mrb[0].mxu0
      %912 = vdwg.mxu0
      %v913 = vadd.f32 %v805, %v883
      %v914 = vadd.f32 %v806, %v886
      %v915 = vadd.f32 %v807, %v891
      %v916 = vadd.f32 %v808, %v894
      %v917 = vadd.f32 %v809, %v899
      %v918 = vadd.f32 %v810, %v902
      %v919 = vadd.f32 %v811, %v907
      %v920 = vadd.f32 %v812, %v910
      %v922 = vshrl.u32 %v342, 16
      %v924 = vrot.slane %v922, 4
      %v925 = vshll.u32 %v342, 16
      %v927 = vrot.slane %v925, 5
      %v928 = vor.u32 %v924, %v927
      %v929 = vrot.slane %v928, 4
      %v931 = vshll.u32 %v343, 16
      %v933 = vrot.slane %v931, 5
      %v934 = vsel %vm614, %v929, %v933
      %v935 = vshrl.u32 %v343, 16
      %v937 = vrot.slane %v935, 4
      %v938 = vor.u32 %v937, %v933
      %v939 = vrot.slane %v938, 4
      %v941 = vshll.u32 %v344, 16
      %v943 = vrot.slane %v941, 5
      %v944 = vsel %vm614, %v939, %v943
      %s945 = scalar_lea.vmem %s2, 14
      %v946 = vld [vmem:[%s945] sm:$0x3]
      %v947 = vunpack.c.l.b16 %v934
      %v948 = vunpack.c.l.b16 %v944
      %v949 = vpack.c.b16 %v948, %v947
      %v951 = vsel %vm368, %v949, 0
      %v954 = vsel %vm381, %v946, 0
      %956 = vmatprep.subr.bf16.mxu0 0
      %957 = vmatpush1.bf16.msra.mxu0 %v954
      %958 = vmatprep.subr.bf16.mxu0 0
      %959 = vmatpush1.bf16.msra.mxu0 0
      %960 = vmatprep.subr.bf16.mxu0 0
      %961 = vmatpush1.bf16.msra.mxu0 0
      %962 = vmatprep.subr.bf16.mxu0 0
      %963 = vmatpush1.bf16.msra.mxu0 0
      %964 = vmatprep.subr.bf16.mxu0 0
      %965 = vmatpush1.bf16.msra.mxu0 0
      %966 = vmatprep.subr.bf16.mxu0 0
      %967 = vmatpush1.bf16.msra.mxu0 0
      %968 = vmatprep.subr.bf16.mxu0 0
      %969 = vmatpush1.bf16.msra.mxu0 0
      %970 = vmatprep.subr.bf16.mxu0 0
      %971 = vmatpush1.bf16.msra.mxu0 0
      %972 = vmatprep.subr.bf16.mxu0 0
      %973 = vmatpush1.bf16.msra.mxu0 0
      %974 = vmatprep.subr.bf16.mxu0 0
      %975 = vmatpush1.bf16.msra.mxu0 0
      %976 = vmatprep.subr.bf16.mxu0 0
      %977 = vmatpush1.bf16.msra.mxu0 0
      %978 = vmatprep.subr.bf16.mxu0 0
      %979 = vmatpush1.bf16.msra.mxu0 0
      %980 = vmatprep.subr.bf16.mxu0 0
      %981 = vmatpush1.bf16.msra.mxu0 0
      %982 = vmatprep.subr.bf16.mxu0 0
      %983 = vmatpush1.bf16.msra.mxu0 0
      %984 = vmatprep.subr.bf16.mxu0 0
      %985 = vmatpush1.bf16.msra.mxu0 0
      %986 = vmatprep.subr.bf16.mxu0 0
      %987 = vmatpush1.bf16.msra.mxu0 0
      %988 = vmatprep.mubr.bf16.mxu0 0
      %989 = vmatmul.mubr.bf16.gmra.mrb[0].mxu0 %v732
      %v990 = vpop.f32.mrb[0].mxu0
      %v991 = vadd.f32 0.0, %v990
      %v992 = vpop.f32.mrb[0].mxu0
      %v993 = vpop.f32.mrb[0].mxu0
      %v994 = vadd.f32 0.0, %v993
      %v995 = vpop.f32.mrb[0].mxu0
      %996 = vmatprep.mubr.bf16.mxu0 0
      %997 = vmatmul.mubr.bf16.gmra.mrb[0].mxu0 %v735
      %v998 = vpop.f32.mrb[0].mxu0
      %v999 = vadd.f32 0.0, %v998
      %v1000 = vpop.f32.mrb[0].mxu0
      %v1001 = vpop.f32.mrb[0].mxu0
      %v1002 = vadd.f32 0.0, %v1001
      %v1003 = vpop.f32.mrb[0].mxu0
      %1004 = vmatprep.mubr.bf16.mxu0 0
      %1005 = vmatmul.mubr.bf16.gmra.mrb[0].mxu0 %v843
      %v1006 = vpop.f32.mrb[0].mxu0
      %v1007 = vadd.f32 0.0, %v1006
      %v1008 = vpop.f32.mrb[0].mxu0
      %v1009 = vpop.f32.mrb[0].mxu0
      %v1010 = vadd.f32 0.0, %v1009
      %v1011 = vpop.f32.mrb[0].mxu0
      %1012 = vmatprep.mubr.bf16.mxu0 0
      %1013 = vmatmul.mubr.bf16.gmra.mrb[0].mxu0 %v951
      %v1014 = vpop.f32.mrb[0].mxu0
      %v1015 = vadd.f32 0.0, %v1014
      %v1016 = vpop.f32.mrb[0].mxu0
      %v1017 = vpop.f32.mrb[0].mxu0
      %v1018 = vadd.f32 0.0, %v1017
      %v1019 = vpop.f32.mrb[0].mxu0
      %1020 = vdwg.mxu0
      %v1021 = vadd.f32 %v913, %v991
      %v1022 = vadd.f32 %v914, %v994
      %v1023 = vadd.f32 %v915, %v999
      %v1024 = vadd.f32 %v916, %v1002
      %v1025 = vadd.f32 %v917, %v1007
      %v1026 = vadd.f32 %v918, %v1010
      %v1027 = vadd.f32 %v919, %v1015
      %v1028 = vadd.f32 %v920, %v1018
      %vm1033 = vcmask 1042432
      %vm1034 = vcmask 1046532
      %vm1035 = vmor %vm1033, %vm1034
      %v1036 = vrot.slane %v327, 5
      %v1037 = vrot.slane %v1036, 4
      %v1038 = vrot.slane %v328, 5
      %v1039 = vsel %vm1035, %v1037, %v1038
      %v1040 = vrot.slane %v1038, 4
      %v1041 = vrot.slane %v329, 5
      %v1042 = vsel %vm1035, %v1040, %v1041
      %v1043 = vrot.slane %v330, 5
      %v1044 = vrot.slane %v1043, 4
      %v1045 = vrot.slane %v331, 5
      %v1046 = vsel %vm1035, %v1044, %v1045
      %v1047 = vrot.slane %v1045, 4
      %v1048 = vrot.slane %v332, 5
      %v1049 = vsel %vm1035, %v1047, %v1048
      %v1050 = vrot.slane %v333, 5
      %v1051 = vrot.slane %v1050, 4
      %v1052 = vrot.slane %v334, 5
      %v1053 = vsel %vm1035, %v1051, %v1052
      %v1054 = vrot.slane %v1052, 4
      %v1055 = vrot.slane %v335, 5
      %v1056 = vsel %vm1035, %v1054, %v1055
      %v1057 = vrot.slane %v336, 5
      %v1058 = vrot.slane %v1057, 4
      %v1059 = vrot.slane %v337, 5
      %v1060 = vsel %vm1035, %v1058, %v1059
      %v1061 = vrot.slane %v1059, 4
      %v1062 = vrot.slane %v338, 5
      %v1063 = vsel %vm1035, %v1061, %v1062
      %s1064 = scalar_lea.vmem %s2, 4
      %v1065 = vld [vmem:[%s1064] sm:$0x3]
      %v1066 = vunpack.c.l.b16 %v1039
      %v1067 = vunpack.c.l.b16 %v1042
      %v1068 = vunpack.c.l.b16 %v1046
      %v1069 = vunpack.c.l.b16 %v1049
      %v1070 = vunpack.c.l.b16 %v1053
      %v1071 = vunpack.c.l.b16 %v1056
      %v1072 = vunpack.c.l.b16 %v1060
      %v1073 = vunpack.c.l.b16 %v1063
      %v1074 = vpack.c.b16 %v1067, %v1066
      %v1075 = vpack.c.b16 %v1069, %v1068
      %v1076 = vpack.c.b16 %v1071, %v1070
      %v1077 = vpack.c.b16 %v1073, %v1072
      %v1079 = vsel %vm368, %v1074, 0
      %v1082 = vsel %vm368, %v1075, 0
      %v1085 = vsel %vm368, %v1076, 0
      %v1088 = vsel %vm368, %v1077, 0
      %v1091 = vsel %vm381, %v1065, 0
      %1093 = vmatprep.subr.bf16.mxu0 0
      %1094 = vmatpush1.bf16.msra.mxu0 %v1091
      %1095 = vmatprep.subr.bf16.mxu0 0
      %1096 = vmatpush1.bf16.msra.mxu0 0
      %1097 = vmatprep.subr.bf16.mxu0 0
      %1098 = vmatpush1.bf16.msra.mxu0 0
      %1099 = vmatprep.subr.bf16.mxu0 0
      %1100 = vmatpush1.bf16.msra.mxu0 0
      %1101 = vmatprep.subr.bf16.mxu0 0
      %1102 = vmatpush1.bf16.msra.mxu0 0
      %1103 = vmatprep.subr.bf16.mxu0 0
      %1104 = vmatpush1.bf16.msra.mxu0 0
      %1105 = vmatprep.subr.bf16.mxu0 0
      %1106 = vmatpush1.bf16.msra.mxu0 0
      %1107 = vmatprep.subr.bf16.mxu0 0
      %1108 = vmatpush1.bf16.msra.mxu0 0
      %1109 = vmatprep.subr.bf16.mxu0 0
      %1110 = vmatpush1.bf16.msra.mxu0 0
      %1111 = vmatprep.subr.bf16.mxu0 0
      %1112 = vmatpush1.bf16.msra.mxu0 0
      %1113 = vmatprep.subr.bf16.mxu0 0
      %1114 = vmatpush1.bf16.msra.mxu0 0
      %1115 = vmatprep.subr.bf16.mxu0 0
      %1116 = vmatpush1.bf16.msra.mxu0 0
      %1117 = vmatprep.subr.bf16.mxu0 0
      %1118 = vmatpush1.bf16.msra.mxu0 0
      %1119 = vmatprep.subr.bf16.mxu0 0
      %1120 = vmatpush1.bf16.msra.mxu0 0
      %1121 = vmatprep.subr.bf16.mxu0 0
      %1122 = vmatpush1.bf16.msra.mxu0 0
      %1123 = vmatprep.subr.bf16.mxu0 0
      %1124 = vmatpush1.bf16.msra.mxu0 0
      %1125 = vmatprep.mubr.bf16.mxu0 0
      %1126 = vmatmul.mubr.bf16.gmra.mrb[0].mxu0 %v1079
      %v1127 = vpop.f32.mrb[0].mxu0
      %v1128 = vadd.f32 0.0, %v1127
      %v1129 = vpop.f32.mrb[0].mxu0
      %v1130 = vpop.f32.mrb[0].mxu0
      %v1131 = vadd.f32 0.0, %v1130
      %v1132 = vpop.f32.mrb[0].mxu0
      %1133 = vmatprep.mubr.bf16.mxu0 0
      %1134 = vmatmul.mubr.bf16.gmra.mrb[0].mxu0 %v1082
      %v1135 = vpop.f32.mrb[0].mxu0
      %v1136 = vadd.f32 0.0, %v1135
      %v1137 = vpop.f32.mrb[0].mxu0
      %v1138 = vpop.f32.mrb[0].mxu0
      %v1139 = vadd.f32 0.0, %v1138
      %v1140 = vpop.f32.mrb[0].mxu0
      %1141 = vmatprep.mubr.bf16.mxu0 0
      %1142 = vmatmul.mubr.bf16.gmra.mrb[0].mxu0 %v1085
      %v1143 = vpop.f32.mrb[0].mxu0
      %v1144 = vadd.f32 0.0, %v1143
      %v1145 = vpop.f32.mrb[0].mxu0
      %v1146 = vpop.f32.mrb[0].mxu0
      %v1147 = vadd.f32 0.0, %v1146
      %v1148 = vpop.f32.mrb[0].mxu0
      %1149 = vmatprep.mubr.bf16.mxu0 0
      %1150 = vmatmul.mubr.bf16.gmra.mrb[0].mxu0 %v1088
      %v1151 = vpop.f32.mrb[0].mxu0
      %v1152 = vadd.f32 0.0, %v1151
      %v1153 = vpop.f32.mrb[0].mxu0
      %v1154 = vpop.f32.mrb[0].mxu0
      %v1155 = vadd.f32 0.0, %v1154
      %v1156 = vpop.f32.mrb[0].mxu0
      %1157 = vdwg.mxu0
      %v1158 = vadd.f32 %v1021, %v1128
      %v1159 = vadd.f32 %v1022, %v1131
      %v1160 = vadd.f32 %v1023, %v1136
      %v1161 = vadd.f32 %v1024, %v1139
      %v1162 = vadd.f32 %v1025, %v1144
      %v1163 = vadd.f32 %v1026, %v1147
      %v1164 = vadd.f32 %v1027, %v1152
      %v1165 = vadd.f32 %v1028, %v1155
      %v1167 = vrot.slane %v339, 5
      %v1168 = vrot.slane %v1167, 4
      %v1169 = vrot.slane %v340, 5
      %v1170 = vsel %vm1035, %v1168, %v1169
      %v1171 = vrot.slane %v1169, 4
      %v1172 = vrot.slane %v341, 5
      %v1173 = vsel %vm1035, %v1171, %v1172
      %s1174 = scalar_lea.vmem %s2, 10
      %v1175 = vld [vmem:[%s1174] sm:$0x3]
      %v1176 = vunpack.c.l.b16 %v1170
      %v1177 = vunpack.c.l.b16 %v1173
      %v1178 = vpack.c.b16 %v1177, %v1176
      %v1180 = vsel %vm368, %v1178, 0
      %v1183 = vsel %vm381, %v1175, 0
      %1185 = vmatprep.subr.bf16.mxu0 0
      %1186 = vmatpush1.bf16.msra.mxu0 %v1183
      %1187 = vmatprep.subr.bf16.mxu0 0
      %1188 = vmatpush1.bf16.msra.mxu0 0
      %1189 = vmatprep.subr.bf16.mxu0 0
      %1190 = vmatpush1.bf16.msra.mxu0 0
      %1191 = vmatprep.subr.bf16.mxu0 0
      %1192 = vmatpush1.bf16.msra.mxu0 0
      %1193 = vmatprep.subr.bf16.mxu0 0
      %1194 = vmatpush1.bf16.msra.mxu0 0
      %1195 = vmatprep.subr.bf16.mxu0 0
      %1196 = vmatpush1.bf16.msra.mxu0 0
      %1197 = vmatprep.subr.bf16.mxu0 0
      %1198 = vmatpush1.bf16.msra.mxu0 0
      %1199 = vmatprep.subr.bf16.mxu0 0
      %1200 = vmatpush1.bf16.msra.mxu0 0
      %1201 = vmatprep.subr.bf16.mxu0 0
      %1202 = vmatpush1.bf16.msra.mxu0 0
      %1203 = vmatprep.subr.bf16.mxu0 0
      %1204 = vmatpush1.bf16.msra.mxu0 0
      %1205 = vmatprep.subr.bf16.mxu0 0
      %1206 = vmatpush1.bf16.msra.mxu0 0
      %1207 = vmatprep.subr.bf16.mxu0 0
      %1208 = vmatpush1.bf16.msra.mxu0 0
      %1209 = vmatprep.subr.bf16.mxu0 0
      %1210 = vmatpush1.bf16.msra.mxu0 0
      %1211 = vmatprep.subr.bf16.mxu0 0
      %1212 = vmatpush1.bf16.msra.mxu0 0
      %1213 = vmatprep.subr.bf16.mxu0 0
      %1214 = vmatpush1.bf16.msra.mxu0 0
      %1215 = vmatprep.subr.bf16.mxu0 0
      %1216 = vmatpush1.bf16.msra.mxu0 0
      %1217 = vmatprep.mubr.bf16.mxu0 0
      %1218 = vmatmul.mubr.bf16.gmra.mrb[0].mxu0 %v1082
      %v1219 = vpop.f32.mrb[0].mxu0
      %v1220 = vadd.f32 0.0, %v1219
      %v1221 = vpop.f32.mrb[0].mxu0
      %v1222 = vpop.f32.mrb[0].mxu0
      %v1223 = vadd.f32 0.0, %v1222
      %v1224 = vpop.f32.mrb[0].mxu0
      %1225 = vmatprep.mubr.bf16.mxu0 0
      %1226 = vmatmul.mubr.bf16.gmra.mrb[0].mxu0 %v1085
      %v1227 = vpop.f32.mrb[0].mxu0
      %v1228 = vadd.f32 0.0, %v1227
      %v1229 = vpop.f32.mrb[0].mxu0
      %v1230 = vpop.f32.mrb[0].mxu0
      %v1231 = vadd.f32 0.0, %v1230
      %v1232 = vpop.f32.mrb[0].mxu0
      %1233 = vmatprep.mubr.bf16.mxu0 0
      %1234 = vmatmul.mubr.bf16.gmra.mrb[0].mxu0 %v1088
      %v1235 = vpop.f32.mrb[0].mxu0
      %v1236 = vadd.f32 0.0, %v1235
      %v1237 = vpop.f32.mrb[0].mxu0
      %v1238 = vpop.f32.mrb[0].mxu0
      %v1239 = vadd.f32 0.0, %v1238
      %v1240 = vpop.f32.mrb[0].mxu0
      %1241 = vmatprep.mubr.bf16.mxu0 0
      %1242 = vmatmul.mubr.bf16.gmra.mrb[0].mxu0 %v1180
      %v1243 = vpop.f32.mrb[0].mxu0
      %v1244 = vadd.f32 0.0, %v1243
      %v1245 = vpop.f32.mrb[0].mxu0
      %v1246 = vpop.f32.mrb[0].mxu0
      %v1247 = vadd.f32 0.0, %v1246
      %v1248 = vpop.f32.mrb[0].mxu0
      %1249 = vdwg.mxu0
      %v1250 = vadd.f32 %v1158, %v1220
      %v1251 = vadd.f32 %v1159, %v1223
      %v1252 = vadd.f32 %v1160, %v1228
      %v1253 = vadd.f32 %v1161, %v1231
      %v1254 = vadd.f32 %v1162, %v1236
      %v1255 = vadd.f32 %v1163, %v1239
      %v1256 = vadd.f32 %v1164, %v1244
      %v1257 = vadd.f32 %v1165, %v1247
      %v1259 = vrot.slane %v342, 5
      %v1260 = vrot.slane %v1259, 4
      %v1261 = vrot.slane %v343, 5
      %v1262 = vsel %vm1035, %v1260, %v1261
      %v1263 = vrot.slane %v1261, 4
      %v1264 = vrot.slane %v344, 5
      %v1265 = vsel %vm1035, %v1263, %v1264
      %s1266 = scalar_lea.vmem %s2, 16
      %v1267 = vld [vmem:[%s1266] sm:$0x3]
      %v1268 = vunpack.c.l.b16 %v1262
      %v1269 = vunpack.c.l.b16 %v1265
      %v1270 = vpack.c.b16 %v1269, %v1268
      %v1272 = vsel %vm368, %v1270, 0
      %v1275 = vsel %vm381, %v1267, 0
      %1277 = vmatprep.subr.bf16.mxu0 0
      %1278 = vmatpush1.bf16.msra.mxu0 %v1275
      %1279 = vmatprep.subr.bf16.mxu0 0
      %1280 = vmatpush1.bf16.msra.mxu0 0
      %1281 = vmatprep.subr.bf16.mxu0 0
      %1282 = vmatpush1.bf16.msra.mxu0 0
      %1283 = vmatprep.subr.bf16.mxu0 0
      %1284 = vmatpush1.bf16.msra.mxu0 0
      %1285 = vmatprep.subr.bf16.mxu0 0
      %1286 = vmatpush1.bf16.msra.mxu0 0
      %1287 = vmatprep.subr.bf16.mxu0 0
      %1288 = vmatpush1.bf16.msra.mxu0 0
      %1289 = vmatprep.subr.bf16.mxu0 0
      %1290 = vmatpush1.bf16.msra.mxu0 0
      %1291 = vmatprep.subr.bf16.mxu0 0
      %1292 = vmatpush1.bf16.msra.mxu0 0
      %1293 = vmatprep.subr.bf16.mxu0 0
      %1294 = vmatpush1.bf16.msra.mxu0 0
      %1295 = vmatprep.subr.bf16.mxu0 0
      %1296 = vmatpush1.bf16.msra.mxu0 0
      %1297 = vmatprep.subr.bf16.mxu0 0
      %1298 = vmatpush1.bf16.msra.mxu0 0
      %1299 = vmatprep.subr.bf16.mxu0 0
      %1300 = vmatpush1.bf16.msra.mxu0 0
      %1301 = vmatprep.subr.bf16.mxu0 0
      %1302 = vmatpush1.bf16.msra.mxu0 0
      %1303 = vmatprep.subr.bf16.mxu0 0
      %1304 = vmatpush1.bf16.msra.mxu0 0
      %1305 = vmatprep.subr.bf16.mxu0 0
      %1306 = vmatpush1.bf16.msra.mxu0 0
      %1307 = vmatprep.subr.bf16.mxu0 0
      %1308 = vmatpush1.bf16.msra.mxu0 0
      %1309 = vmatprep.mubr.bf16.mxu0 0
      %1310 = vmatmul.mubr.bf16.gmra.mrb[0].mxu0 %v1085
      %v1311 = vpop.f32.mrb[0].mxu0
      %v1312 = vadd.f32 0.0, %v1311
      %v1313 = vpop.f32.mrb[0].mxu0
      %v1314 = vpop.f32.mrb[0].mxu0
      %v1315 = vadd.f32 0.0, %v1314
      %v1316 = vpop.f32.mrb[0].mxu0
      %1317 = vmatprep.mubr.bf16.mxu0 0
      %1318 = vmatmul.mubr.bf16.gmra.mrb[0].mxu0 %v1088
      %v1319 = vpop.f32.mrb[0].mxu0
      %v1320 = vadd.f32 0.0, %v1319
      %v1321 = vpop.f32.mrb[0].mxu0
      %v1322 = vpop.f32.mrb[0].mxu0
      %v1323 = vadd.f32 0.0, %v1322
      %v1324 = vpop.f32.mrb[0].mxu0
      %1325 = vmatprep.mubr.bf16.mxu0 0
      %1326 = vmatmul.mubr.bf16.gmra.mrb[0].mxu0 %v1180
      %v1327 = vpop.f32.mrb[0].mxu0
      %v1328 = vadd.f32 0.0, %v1327
      %v1329 = vpop.f32.mrb[0].mxu0
      %v1330 = vpop.f32.mrb[0].mxu0
      %v1331 = vadd.f32 0.0, %v1330
      %v1332 = vpop.f32.mrb[0].mxu0
      %1333 = vmatprep.mubr.bf16.mxu0 0
      %1334 = vmatmul.mubr.bf16.gmra.mrb[0].mxu0 %v1272
      %v1335 = vpop.f32.mrb[0].mxu0
      %v1336 = vadd.f32 0.0, %v1335
      %v1337 = vpop.f32.mrb[0].mxu0
      %v1338 = vpop.f32.mrb[0].mxu0
      %v1339 = vadd.f32 0.0, %v1338
      %v1340 = vpop.f32.mrb[0].mxu0
      %1341 = vdwg.mxu0
      %v1342 = vadd.f32 %v1250, %v1312
      %v1343 = vadd.f32 %v1251, %v1315
      %v1344 = vadd.f32 %v1252, %v1320
      %v1345 = vadd.f32 %v1253, %v1323
      %v1346 = vadd.f32 %v1254, %v1328
      %v1347 = vadd.f32 %v1255, %v1331
      %v1348 = vadd.f32 %v1256, %v1336
      %v1349 = vadd.f32 %v1257, %v1339
      %v1350 = vld [vmem:[%s4] sm:$0x1]
      %v1352 = vlaneseq
      %v1353 = vshrl.u32 %v1352, 7
      %v1354 = vsub.s32 0, %v1353
      %v1355 = vrot.slane %v1350, %v1354
      %v1357 = vmul.f32 %v1342, %v1355
      %v1358 = vmul.f32 %v1343, %v1355
      %v1359 = vmul.f32 %v1344, %v1355
      %v1360 = vmul.f32 %v1345, %v1355
      %v1361 = vmul.f32 %v1346, %v1355
      %v1362 = vmul.f32 %v1347, %v1355
      %v1363 = vmul.f32 %v1348, %v1355
      %v1364 = vmul.f32 %v1349, %v1355
      %v1365 = vld [vmem:[%s5] sm:$0x1]
      %v1367 = vlaneseq
      %v1368 = vshrl.u32 %v1367, 7
      %v1369 = vsub.s32 0, %v1368
      %v1370 = vrot.slane %v1365, %v1369
      %v1372 = vadd.f32 %v1357, %v1370
      %v1373 = vadd.f32 %v1358, %v1370
      %v1374 = vadd.f32 %v1359, %v1370
      %v1375 = vadd.f32 %v1360, %v1370
      %v1376 = vadd.f32 %v1361, %v1370
      %v1377 = vadd.f32 %v1362, %v1370
      %v1378 = vadd.f32 %v1363, %v1370
      %v1379 = vadd.f32 %v1364, %v1370
      %vm1380 = vcmp.ge.f32.partialorder %v1372, 0.0
      %vm1381 = vcmp.ge.f32.partialorder %v1373, 0.0
      %vm1382 = vcmp.ge.f32.partialorder %v1374, 0.0
      %vm1383 = vcmp.ge.f32.partialorder %v1375, 0.0
      %vm1384 = vcmp.ge.f32.partialorder %v1376, 0.0
      %vm1385 = vcmp.ge.f32.partialorder %v1377, 0.0
      %vm1386 = vcmp.ge.f32.partialorder %v1378, 0.0
      %vm1387 = vcmp.ge.f32.partialorder %v1379, 0.0
      %v1388 = vmul.f32 %v1372, 0.05
      %v1389 = vmul.f32 %v1373, 0.05
      %v1390 = vmul.f32 %v1374, 0.05
      %v1391 = vmul.f32 %v1375, 0.05
      %v1392 = vmul.f32 %v1376, 0.05
      %v1393 = vmul.f32 %v1377, 0.05
      %v1394 = vmul.f32 %v1378, 0.05
      %v1395 = vmul.f32 %v1379, 0.05
      %v1396 = vsel %vm1380, %v1372, %v1388
      %v1397 = vsel %vm1381, %v1373, %v1389
      %v1398 = vsel %vm1382, %v1374, %v1390
      %v1399 = vsel %vm1383, %v1375, %v1391
      %v1400 = vsel %vm1384, %v1376, %v1392
      %v1401 = vsel %vm1385, %v1377, %v1393
      %v1402 = vsel %vm1386, %v1378, %v1394
      %v1403 = vsel %vm1387, %v1379, %v1395
      %v1404 = vld [vmem:[%s320] sm:$0xf]
      %v1405 = vld [vmem:[%s320 + $0x4] sm:$0xf]
      %v1406 = vld [vmem:[%s320 + $0x8] sm:$0x1]
      %v1407 = vld [vmem:[%s320 + $0xc] sm:$0xf]
      %v1408 = vld [vmem:[%s320 + $0x10] sm:$0xf]
      %v1409 = vld [vmem:[%s320 + $0x14] sm:$0x1]
      %v1410 = vld [vmem:[%s320 + $0x18] sm:$0xf]
      %v1411 = vld [vmem:[%s320 + $0x1c] sm:$0xf]
      %v1412 = vld [vmem:[%s320 + $0x20] sm:$0x1]
      %v1413 = vld [vmem:[%s320 + $0x24] sm:$0xf]
      %v1414 = vld [vmem:[%s320 + $0x28] sm:$0xf]
      %v1415 = vld [vmem:[%s320 + $0x2c] sm:$0x1]
      %v1416 = vld [vmem:[%s320 + $0x30] sm:$0xf]
      %v1417 = vld [vmem:[%s320 + $0x34] sm:$0xf]
      %v1418 = vld [vmem:[%s320 + $0x38] sm:$0x1]
      %v1419 = vld [vmem:[%s320 + $0x3c] sm:$0xf]
      %v1420 = vld [vmem:[%s320 + $0x40] sm:$0xf]
      %v1421 = vld [vmem:[%s320 + $0x44] sm:$0x1]
      %v1422 = vld [vmem:[%s3] sm:$0x3]
      %s1423 = scalar_lea.vmem %s3, 6
      %v1424 = vld [vmem:[%s1423] sm:$0x3]
      %v1433 = vunpack.c.l.b16 %v1407
      %v1434 = vunpack.c.l.b16 %v1408
      %v1435 = vunpack.c.l.b16 %v1410
      %v1436 = vunpack.c.l.b16 %v1411
      %v1437 = vunpack.c.l.b16 %v1413
      %v1438 = vunpack.c.l.b16 %v1414
      %v1439 = vunpack.c.l.b16 %v1416
      %v1440 = vunpack.c.l.b16 %v1417
      %v1441 = vpack.c.b16 %v1434, %v1433
      %v1442 = vpack.c.b16 %v1436, %v1435
      %v1443 = vpack.c.b16 %v1438, %v1437
      %v1444 = vpack.c.b16 %v1440, %v1439
      %v1446 = vsel %vm368, %v1441, 0
      %v1449 = vsel %vm368, %v1442, 0
      %v1452 = vsel %vm368, %v1443, 0
      %v1455 = vsel %vm368, %v1444, 0
      %v1458 = vsel %vm381, %v1424, 0
      %1460 = vmatprep.subr.bf16.mxu0 0
      %1461 = vmatpush1.bf16.msra.mxu0 %v1458
      %1462 = vmatprep.subr.bf16.mxu0 0
      %1463 = vmatpush1.bf16.msra.mxu0 0
      %1464 = vmatprep.subr.bf16.mxu0 0
      %1465 = vmatpush1.bf16.msra.mxu0 0
      %1466 = vmatprep.subr.bf16.mxu0 0
      %1467 = vmatpush1.bf16.msra.mxu0 0
      %1468 = vmatprep.subr.bf16.mxu0 0
      %1469 = vmatpush1.bf16.msra.mxu0 0
      %1470 = vmatprep.subr.bf16.mxu0 0
      %1471 = vmatpush1.bf16.msra.mxu0 0
      %1472 = vmatprep.subr.bf16.mxu0 0
      %1473 = vmatpush1.bf16.msra.mxu0 0
      %1474 = vmatprep.subr.bf16.mxu0 0
      %1475 = vmatpush1.bf16.msra.mxu0 0
      %1476 = vmatprep.subr.bf16.mxu0 0
      %1477 = vmatpush1.bf16.msra.mxu0 0
      %1478 = vmatprep.subr.bf16.mxu0 0
      %1479 = vmatpush1.bf16.msra.mxu0 0
      %1480 = vmatprep.subr.bf16.mxu0 0
      %1481 = vmatpush1.bf16.msra.mxu0 0
      %1482 = vmatprep.subr.bf16.mxu0 0
      %1483 = vmatpush1.bf16.msra.mxu0 0
      %1484 = vmatprep.subr.bf16.mxu0 0
      %1485 = vmatpush1.bf16.msra.mxu0 0
      %1486 = vmatprep.subr.bf16.mxu0 0
      %1487 = vmatpush1.bf16.msra.mxu0 0
      %1488 = vmatprep.subr.bf16.mxu0 0
      %1489 = vmatpush1.bf16.msra.mxu0 0
      %1490 = vmatprep.subr.bf16.mxu0 0
      %1491 = vmatpush1.bf16.msra.mxu0 0
      %1492 = vmatprep.mubr.bf16.mxu0 0
      %1493 = vmatmul.mubr.bf16.gmra.mrb[0].mxu0 %v1446
      %v1494 = vpop.f32.mrb[0].mxu0
      %v1495 = vadd.f32 0.0, %v1494
      %v1496 = vpop.f32.mrb[0].mxu0
      %v1497 = vpop.f32.mrb[0].mxu0
      %v1498 = vadd.f32 0.0, %v1497
      %v1499 = vpop.f32.mrb[0].mxu0
      %1500 = vmatprep.mubr.bf16.mxu0 0
      %1501 = vmatmul.mubr.bf16.gmra.mrb[0].mxu0 %v1449
      %v1502 = vpop.f32.mrb[0].mxu0
      %v1503 = vadd.f32 0.0, %v1502
      %v1504 = vpop.f32.mrb[0].mxu0
      %v1505 = vpop.f32.mrb[0].mxu0
      %v1506 = vadd.f32 0.0, %v1505
      %v1507 = vpop.f32.mrb[0].mxu0
      %1508 = vmatprep.mubr.bf16.mxu0 0
      %1509 = vmatmul.mubr.bf16.gmra.mrb[0].mxu0 %v1452
      %v1510 = vpop.f32.mrb[0].mxu0
      %v1511 = vadd.f32 0.0, %v1510
      %v1512 = vpop.f32.mrb[0].mxu0
      %v1513 = vpop.f32.mrb[0].mxu0
      %v1514 = vadd.f32 0.0, %v1513
      %v1515 = vpop.f32.mrb[0].mxu0
      %1516 = vmatprep.mubr.bf16.mxu0 0
      %1517 = vmatmul.mubr.bf16.gmra.mrb[0].mxu0 %v1455
      %v1518 = vpop.f32.mrb[0].mxu0
      %v1519 = vadd.f32 0.0, %v1518
      %v1520 = vpop.f32.mrb[0].mxu0
      %v1521 = vpop.f32.mrb[0].mxu0
      %v1522 = vadd.f32 0.0, %v1521
      %v1523 = vpop.f32.mrb[0].mxu0
      %1524 = vdwg.mxu0
      %v1527 = vunpack.c.l.b16 %v1404
      %v1528 = vunpack.c.l.b16 %v1405
      %v1529 = vpack.c.b16 %v1528, %v1527
      %v1531 = vsel %vm368, %v1529, 0
      %v1534 = vsel %vm381, %v1422, 0
      %1536 = vmatprep.subr.bf16.mxu0 0
      %1537 = vmatpush1.bf16.msra.mxu0 %v1534
      %1538 = vmatprep.subr.bf16.mxu0 0
      %1539 = vmatpush1.bf16.msra.mxu0 0
      %1540 = vmatprep.subr.bf16.mxu0 0
      %1541 = vmatpush1.bf16.msra.mxu0 0
      %1542 = vmatprep.subr.bf16.mxu0 0
      %1543 = vmatpush1.bf16.msra.mxu0 0
      %1544 = vmatprep.subr.bf16.mxu0 0
      %1545 = vmatpush1.bf16.msra.mxu0 0
      %1546 = vmatprep.subr.bf16.mxu0 0
      %1547 = vmatpush1.bf16.msra.mxu0 0
      %1548 = vmatprep.subr.bf16.mxu0 0
      %1549 = vmatpush1.bf16.msra.mxu0 0
      %1550 = vmatprep.subr.bf16.mxu0 0
      %1551 = vmatpush1.bf16.msra.mxu0 0
      %1552 = vmatprep.subr.bf16.mxu0 0
      %1553 = vmatpush1.bf16.msra.mxu0 0
      %1554 = vmatprep.subr.bf16.mxu0 0
      %1555 = vmatpush1.bf16.msra.mxu0 0
      %1556 = vmatprep.subr.bf16.mxu0 0
      %1557 = vmatpush1.bf16.msra.mxu0 0
      %1558 = vmatprep.subr.bf16.mxu0 0
      %1559 = vmatpush1.bf16.msra.mxu0 0
      %1560 = vmatprep.subr.bf16.mxu0 0
      %1561 = vmatpush1.bf16.msra.mxu0 0
      %1562 = vmatprep.subr.bf16.mxu0 0
      %1563 = vmatpush1.bf16.msra.mxu0 0
      %1564 = vmatprep.subr.bf16.mxu0 0
      %1565 = vmatpush1.bf16.msra.mxu0 0
      %1566 = vmatprep.subr.bf16.mxu0 0
      %1567 = vmatpush1.bf16.msra.mxu0 0
      %1568 = vmatprep.mubr.bf16.mxu0 0
      %1569 = vmatmul.mubr.bf16.gmra.mrb[0].mxu0 %v1531
      %v1570 = vpop.f32.mrb[0].mxu0
      %v1571 = vadd.f32 %v1495, %v1570
      %v1572 = vpop.f32.mrb[0].mxu0
      %v1573 = vpop.f32.mrb[0].mxu0
      %v1574 = vadd.f32 %v1498, %v1573
      %v1575 = vpop.f32.mrb[0].mxu0
      %1576 = vmatprep.mubr.bf16.mxu0 0
      %1577 = vmatmul.mubr.bf16.gmra.mrb[0].mxu0 %v1446
      %v1578 = vpop.f32.mrb[0].mxu0
      %v1579 = vadd.f32 %v1503, %v1578
      %v1580 = vpop.f32.mrb[0].mxu0
      %v1581 = vpop.f32.mrb[0].mxu0
      %v1582 = vadd.f32 %v1506, %v1581
      %v1583 = vpop.f32.mrb[0].mxu0
      %1584 = vmatprep.mubr.bf16.mxu0 0
      %1585 = vmatmul.mubr.bf16.gmra.mrb[0].mxu0 %v1449
      %v1586 = vpop.f32.mrb[0].mxu0
      %v1587 = vadd.f32 %v1511, %v1586
      %v1588 = vpop.f32.mrb[0].mxu0
      %v1589 = vpop.f32.mrb[0].mxu0
      %v1590 = vadd.f32 %v1514, %v1589
      %v1591 = vpop.f32.mrb[0].mxu0
      %1592 = vmatprep.mubr.bf16.mxu0 0
      %1593 = vmatmul.mubr.bf16.gmra.mrb[0].mxu0 %v1452
      %v1594 = vpop.f32.mrb[0].mxu0
      %v1595 = vadd.f32 %v1519, %v1594
      %v1596 = vpop.f32.mrb[0].mxu0
      %v1597 = vpop.f32.mrb[0].mxu0
      %v1598 = vadd.f32 %v1522, %v1597
      %v1599 = vpop.f32.mrb[0].mxu0
      %1600 = vdwg.mxu0
      %s1601 = scalar_lea.vmem %s3, 12
      %v1602 = vld [vmem:[%s1601] sm:$0x3]
      %v1605 = vunpack.c.l.b16 %v1419
      %v1606 = vunpack.c.l.b16 %v1420
      %v1607 = vpack.c.b16 %v1606, %v1605
      %v1609 = vsel %vm368, %v1607, 0
      %v1612 = vsel %vm381, %v1602, 0
      %1614 = vmatprep.subr.bf16.mxu0 0
      %1615 = vmatpush1.bf16.msra.mxu0 %v1612
      %1616 = vmatprep.subr.bf16.mxu0 0
      %1617 = vmatpush1.bf16.msra.mxu0 0
      %1618 = vmatprep.subr.bf16.mxu0 0
      %1619 = vmatpush1.bf16.msra.mxu0 0
      %1620 = vmatprep.subr.bf16.mxu0 0
      %1621 = vmatpush1.bf16.msra.mxu0 0
      %1622 = vmatprep.subr.bf16.mxu0 0
      %1623 = vmatpush1.bf16.msra.mxu0 0
      %1624 = vmatprep.subr.bf16.mxu0 0
      %1625 = vmatpush1.bf16.msra.mxu0 0
      %1626 = vmatprep.subr.bf16.mxu0 0
      %1627 = vmatpush1.bf16.msra.mxu0 0
      %1628 = vmatprep.subr.bf16.mxu0 0
      %1629 = vmatpush1.bf16.msra.mxu0 0
      %1630 = vmatprep.subr.bf16.mxu0 0
      %1631 = vmatpush1.bf16.msra.mxu0 0
      %1632 = vmatprep.subr.bf16.mxu0 0
      %1633 = vmatpush1.bf16.msra.mxu0 0
      %1634 = vmatprep.subr.bf16.mxu0 0
      %1635 = vmatpush1.bf16.msra.mxu0 0
      %1636 = vmatprep.subr.bf16.mxu0 0
      %1637 = vmatpush1.bf16.msra.mxu0 0
      %1638 = vmatprep.subr.bf16.mxu0 0
      %1639 = vmatpush1.bf16.msra.mxu0 0
      %1640 = vmatprep.subr.bf16.mxu0 0
      %1641 = vmatpush1.bf16.msra.mxu0 0
      %1642 = vmatprep.subr.bf16.mxu0 0
      %1643 = vmatpush1.bf16.msra.mxu0 0
      %1644 = vmatprep.subr.bf16.mxu0 0
      %1645 = vmatpush1.bf16.msra.mxu0 0
      %1646 = vmatprep.mubr.bf16.mxu0 0
      %1647 = vmatmul.mubr.bf16.gmra.mrb[0].mxu0 %v1449
      %v1648 = vpop.f32.mrb[0].mxu0
      %v1649 = vadd.f32 0.0, %v1648
      %v1650 = vpop.f32.mrb[0].mxu0
      %v1651 = vpop.f32.mrb[0].mxu0
      %v1652 = vadd.f32 0.0, %v1651
      %v1653 = vpop.f32.mrb[0].mxu0
      %1654 = vmatprep.mubr.bf16.mxu0 0
      %1655 = vmatmul.mubr.bf16.gmra.mrb[0].mxu0 %v1452
      %v1656 = vpop.f32.mrb[0].mxu0
      %v1657 = vadd.f32 0.0, %v1656
      %v1658 = vpop.f32.mrb[0].mxu0
      %v1659 = vpop.f32.mrb[0].mxu0
      %v1660 = vadd.f32 0.0, %v1659
      %v1661 = vpop.f32.mrb[0].mxu0
      %1662 = vmatprep.mubr.bf16.mxu0 0
      %1663 = vmatmul.mubr.bf16.gmra.mrb[0].mxu0 %v1455
      %v1664 = vpop.f32.mrb[0].mxu0
      %v1665 = vadd.f32 0.0, %v1664
      %v1666 = vpop.f32.mrb[0].mxu0
      %v1667 = vpop.f32.mrb[0].mxu0
      %v1668 = vadd.f32 0.0, %v1667
      %v1669 = vpop.f32.mrb[0].mxu0
      %1670 = vmatprep.mubr.bf16.mxu0 0
      %1671 = vmatmul.mubr.bf16.gmra.mrb[0].mxu0 %v1609
      %v1672 = vpop.f32.mrb[0].mxu0
      %v1673 = vadd.f32 0.0, %v1672
      %v1674 = vpop.f32.mrb[0].mxu0
      %v1675 = vpop.f32.mrb[0].mxu0
      %v1676 = vadd.f32 0.0, %v1675
      %v1677 = vpop.f32.mrb[0].mxu0
      %1678 = vdwg.mxu0
      %v1679 = vadd.f32 %v1571, %v1649
      %v1680 = vadd.f32 %v1574, %v1652
      %v1681 = vadd.f32 %v1579, %v1657
      %v1682 = vadd.f32 %v1582, %v1660
      %v1683 = vadd.f32 %v1587, %v1665
      %v1684 = vadd.f32 %v1590, %v1668
      %v1685 = vadd.f32 %v1595, %v1673
      %v1686 = vadd.f32 %v1598, %v1676
      %v1688 = vshrl.u32 %v1404, 16
      %v1690 = vrot.slane %v1688, 4
      %v1691 = vshll.u32 %v1404, 16
      %v1693 = vrot.slane %v1691, 5
      %v1694 = vor.u32 %v1690, %v1693
      %v1695 = vrot.slane %v1694, 4
      %v1697 = vshll.u32 %v1405, 16
      %v1699 = vrot.slane %v1697, 5
      %v1700 = vsel %vm614, %v1695, %v1699
      %v1701 = vshrl.u32 %v1405, 16
      %v1703 = vrot.slane %v1701, 4
      %v1704 = vor.u32 %v1703, %v1699
      %v1705 = vrot.slane %v1704, 4
      %v1707 = vshll.u32 %v1406, 16
      %v1709 = vrot.slane %v1707, 5
      %v1710 = vsel %vm614, %v1705, %v1709
      %v1712 = vshrl.u32 %v1407, 16
      %v1714 = vrot.slane %v1712, 4
      %v1715 = vshll.u32 %v1407, 16
      %v1717 = vrot.slane %v1715, 5
      %v1718 = vor.u32 %v1714, %v1717
      %v1719 = vrot.slane %v1718, 4
      %v1721 = vshll.u32 %v1408, 16
      %v1723 = vrot.slane %v1721, 5
      %v1724 = vsel %vm614, %v1719, %v1723
      %v1725 = vshrl.u32 %v1408, 16
      %v1727 = vrot.slane %v1725, 4
      %v1728 = vor.u32 %v1727, %v1723
      %v1729 = vrot.slane %v1728, 4
      %v1731 = vshll.u32 %v1409, 16
      %v1733 = vrot.slane %v1731, 5
      %v1734 = vsel %vm614, %v1729, %v1733
      %v1736 = vshrl.u32 %v1410, 16
      %v1738 = vrot.slane %v1736, 4
      %v1739 = vshll.u32 %v1410, 16
      %v1741 = vrot.slane %v1739, 5
      %v1742 = vor.u32 %v1738, %v1741
      %v1743 = vrot.slane %v1742, 4
      %v1745 = vshll.u32 %v1411, 16
      %v1747 = vrot.slane %v1745, 5
      %v1748 = vsel %vm614, %v1743, %v1747
      %v1749 = vshrl.u32 %v1411, 16
      %v1751 = vrot.slane %v1749, 4
      %v1752 = vor.u32 %v1751, %v1747
      %v1753 = vrot.slane %v1752, 4
      %v1755 = vshll.u32 %v1412, 16
      %v1757 = vrot.slane %v1755, 5
      %v1758 = vsel %vm614, %v1753, %v1757
      %v1760 = vshrl.u32 %v1413, 16
      %v1762 = vrot.slane %v1760, 4
      %v1763 = vshll.u32 %v1413, 16
      %v1765 = vrot.slane %v1763, 5
      %v1766 = vor.u32 %v1762, %v1765
      %v1767 = vrot.slane %v1766, 4
      %v1769 = vshll.u32 %v1414, 16
      %v1771 = vrot.slane %v1769, 5
      %v1772 = vsel %vm614, %v1767, %v1771
      %v1773 = vshrl.u32 %v1414, 16
      %v1775 = vrot.slane %v1773, 4
      %v1776 = vor.u32 %v1775, %v1771
      %v1777 = vrot.slane %v1776, 4
      %v1779 = vshll.u32 %v1415, 16
      %v1781 = vrot.slane %v1779, 5
      %v1782 = vsel %vm614, %v1777, %v1781
      %s1783 = scalar_lea.vmem %s3, 2
      %v1784 = vld [vmem:[%s1783] sm:$0x3]
      %v1785 = vunpack.c.l.b16 %v1700
      %v1786 = vunpack.c.l.b16 %v1710
      %v1787 = vunpack.c.l.b16 %v1724
      %v1788 = vunpack.c.l.b16 %v1734
      %v1789 = vunpack.c.l.b16 %v1748
      %v1790 = vunpack.c.l.b16 %v1758
      %v1791 = vunpack.c.l.b16 %v1772
      %v1792 = vunpack.c.l.b16 %v1782
      %v1793 = vpack.c.b16 %v1786, %v1785
      %v1794 = vpack.c.b16 %v1788, %v1787
      %v1795 = vpack.c.b16 %v1790, %v1789
      %v1796 = vpack.c.b16 %v1792, %v1791
      %v1798 = vsel %vm368, %v1793, 0
      %v1801 = vsel %vm368, %v1794, 0
      %v1804 = vsel %vm368, %v1795, 0
      %v1807 = vsel %vm368, %v1796, 0
      %v1810 = vsel %vm381, %v1784, 0
      %1812 = vmatprep.subr.bf16.mxu0 0
      %1813 = vmatpush1.bf16.msra.mxu0 %v1810
      %1814 = vmatprep.subr.bf16.mxu0 0
      %1815 = vmatpush1.bf16.msra.mxu0 0
      %1816 = vmatprep.subr.bf16.mxu0 0
      %1817 = vmatpush1.bf16.msra.mxu0 0
      %1818 = vmatprep.subr.bf16.mxu0 0
      %1819 = vmatpush1.bf16.msra.mxu0 0
      %1820 = vmatprep.subr.bf16.mxu0 0
      %1821 = vmatpush1.bf16.msra.mxu0 0
      %1822 = vmatprep.subr.bf16.mxu0 0
      %1823 = vmatpush1.bf16.msra.mxu0 0
      %1824 = vmatprep.subr.bf16.mxu0 0
      %1825 = vmatpush1.bf16.msra.mxu0 0
      %1826 = vmatprep.subr.bf16.mxu0 0
      %1827 = vmatpush1.bf16.msra.mxu0 0
      %1828 = vmatprep.subr.bf16.mxu0 0
      %1829 = vmatpush1.bf16.msra.mxu0 0
      %1830 = vmatprep.subr.bf16.mxu0 0
      %1831 = vmatpush1.bf16.msra.mxu0 0
      %1832 = vmatprep.subr.bf16.mxu0 0
      %1833 = vmatpush1.bf16.msra.mxu0 0
      %1834 = vmatprep.subr.bf16.mxu0 0
      %1835 = vmatpush1.bf16.msra.mxu0 0
      %1836 = vmatprep.subr.bf16.mxu0 0
      %1837 = vmatpush1.bf16.msra.mxu0 0
      %1838 = vmatprep.subr.bf16.mxu0 0
      %1839 = vmatpush1.bf16.msra.mxu0 0
      %1840 = vmatprep.subr.bf16.mxu0 0
      %1841 = vmatpush1.bf16.msra.mxu0 0
      %1842 = vmatprep.subr.bf16.mxu0 0
      %1843 = vmatpush1.bf16.msra.mxu0 0
      %1844 = vmatprep.mubr.bf16.mxu0 0
      %1845 = vmatmul.mubr.bf16.gmra.mrb[0].mxu0 %v1798
      %v1846 = vpop.f32.mrb[0].mxu0
      %v1847 = vadd.f32 0.0, %v1846
      %v1848 = vpop.f32.mrb[0].mxu0
      %v1849 = vpop.f32.mrb[0].mxu0
      %v1850 = vadd.f32 0.0, %v1849
      %v1851 = vpop.f32.mrb[0].mxu0
      %1852 = vmatprep.mubr.bf16.mxu0 0
      %1853 = vmatmul.mubr.bf16.gmra.mrb[0].mxu0 %v1801
      %v1854 = vpop.f32.mrb[0].mxu0
      %v1855 = vadd.f32 0.0, %v1854
      %v1856 = vpop.f32.mrb[0].mxu0
      %v1857 = vpop.f32.mrb[0].mxu0
      %v1858 = vadd.f32 0.0, %v1857
      %v1859 = vpop.f32.mrb[0].mxu0
      %1860 = vmatprep.mubr.bf16.mxu0 0
      %1861 = vmatmul.mubr.bf16.gmra.mrb[0].mxu0 %v1804
      %v1862 = vpop.f32.mrb[0].mxu0
      %v1863 = vadd.f32 0.0, %v1862
      %v1864 = vpop.f32.mrb[0].mxu0
      %v1865 = vpop.f32.mrb[0].mxu0
      %v1866 = vadd.f32 0.0, %v1865
      %v1867 = vpop.f32.mrb[0].mxu0
      %1868 = vmatprep.mubr.bf16.mxu0 0
      %1869 = vmatmul.mubr.bf16.gmra.mrb[0].mxu0 %v1807
      %v1870 = vpop.f32.mrb[0].mxu0
      %v1871 = vadd.f32 0.0, %v1870
      %v1872 = vpop.f32.mrb[0].mxu0
      %v1873 = vpop.f32.mrb[0].mxu0
      %v1874 = vadd.f32 0.0, %v1873
      %v1875 = vpop.f32.mrb[0].mxu0
      %1876 = vdwg.mxu0
      %v1877 = vadd.f32 %v1679, %v1847
      %v1878 = vadd.f32 %v1680, %v1850
      %v1879 = vadd.f32 %v1681, %v1855
      %v1880 = vadd.f32 %v1682, %v1858
      %v1881 = vadd.f32 %v1683, %v1863
      %v1882 = vadd.f32 %v1684, %v1866
      %v1883 = vadd.f32 %v1685, %v1871
      %v1884 = vadd.f32 %v1686, %v1874
      %v1886 = vshrl.u32 %v1416, 16
      %v1888 = vrot.slane %v1886, 4
      %v1889 = vshll.u32 %v1416, 16
      %v1891 = vrot.slane %v1889, 5
      %v1892 = vor.u32 %v1888, %v1891
      %v1893 = vrot.slane %v1892, 4
      %v1895 = vshll.u32 %v1417, 16
      %v1897 = vrot.slane %v1895, 5
      %v1898 = vsel %vm614, %v1893, %v1897
      %v1899 = vshrl.u32 %v1417, 16
      %v1901 = vrot.slane %v1899, 4
      %v1902 = vor.u32 %v1901, %v1897
      %v1903 = vrot.slane %v1902, 4
      %v1905 = vshll.u32 %v1418, 16
      %v1907 = vrot.slane %v1905, 5
      %v1908 = vsel %vm614, %v1903, %v1907
      %s1909 = scalar_lea.vmem %s3, 8
      %v1910 = vld [vmem:[%s1909] sm:$0x3]
      %v1911 = vunpack.c.l.b16 %v1898
      %v1912 = vunpack.c.l.b16 %v1908
      %v1913 = vpack.c.b16 %v1912, %v1911
      %v1915 = vsel %vm368, %v1913, 0
      %v1918 = vsel %vm381, %v1910, 0
      %1920 = vmatprep.subr.bf16.mxu0 0
      %1921 = vmatpush1.bf16.msra.mxu0 %v1918
      %1922 = vmatprep.subr.bf16.mxu0 0
      %1923 = vmatpush1.bf16.msra.mxu0 0
      %1924 = vmatprep.subr.bf16.mxu0 0
      %1925 = vmatpush1.bf16.msra.mxu0 0
      %1926 = vmatprep.subr.bf16.mxu0 0
      %1927 = vmatpush1.bf16.msra.mxu0 0
      %1928 = vmatprep.subr.bf16.mxu0 0
      %1929 = vmatpush1.bf16.msra.mxu0 0
      %1930 = vmatprep.subr.bf16.mxu0 0
      %1931 = vmatpush1.bf16.msra.mxu0 0
      %1932 = vmatprep.subr.bf16.mxu0 0
      %1933 = vmatpush1.bf16.msra.mxu0 0
      %1934 = vmatprep.subr.bf16.mxu0 0
      %1935 = vmatpush1.bf16.msra.mxu0 0
      %1936 = vmatprep.subr.bf16.mxu0 0
      %1937 = vmatpush1.bf16.msra.mxu0 0
      %1938 = vmatprep.subr.bf16.mxu0 0
      %1939 = vmatpush1.bf16.msra.mxu0 0
      %1940 = vmatprep.subr.bf16.mxu0 0
      %1941 = vmatpush1.bf16.msra.mxu0 0
      %1942 = vmatprep.subr.bf16.mxu0 0
      %1943 = vmatpush1.bf16.msra.mxu0 0
      %1944 = vmatprep.subr.bf16.mxu0 0
      %1945 = vmatpush1.bf16.msra.mxu0 0
      %1946 = vmatprep.subr.bf16.mxu0 0
      %1947 = vmatpush1.bf16.msra.mxu0 0
      %1948 = vmatprep.subr.bf16.mxu0 0
      %1949 = vmatpush1.bf16.msra.mxu0 0
      %1950 = vmatprep.subr.bf16.mxu0 0
      %1951 = vmatpush1.bf16.msra.mxu0 0
      %1952 = vmatprep.mubr.bf16.mxu0 0
      %1953 = vmatmul.mubr.bf16.gmra.mrb[0].mxu0 %v1801
      %v1954 = vpop.f32.mrb[0].mxu0
      %v1955 = vadd.f32 0.0, %v1954
      %v1956 = vpop.f32.mrb[0].mxu0
      %v1957 = vpop.f32.mrb[0].mxu0
      %v1958 = vadd.f32 0.0, %v1957
      %v1959 = vpop.f32.mrb[0].mxu0
      %1960 = vmatprep.mubr.bf16.mxu0 0
      %1961 = vmatmul.mubr.bf16.gmra.mrb[0].mxu0 %v1804
      %v1962 = vpop.f32.mrb[0].mxu0
      %v1963 = vadd.f32 0.0, %v1962
      %v1964 = vpop.f32.mrb[0].mxu0
      %v1965 = vpop.f32.mrb[0].mxu0
      %v1966 = vadd.f32 0.0, %v1965
      %v1967 = vpop.f32.mrb[0].mxu0
      %1968 = vmatprep.mubr.bf16.mxu0 0
      %1969 = vmatmul.mubr.bf16.gmra.mrb[0].mxu0 %v1807
      %v1970 = vpop.f32.mrb[0].mxu0
      %v1971 = vadd.f32 0.0, %v1970
      %v1972 = vpop.f32.mrb[0].mxu0
      %v1973 = vpop.f32.mrb[0].mxu0
      %v1974 = vadd.f32 0.0, %v1973
      %v1975 = vpop.f32.mrb[0].mxu0
      %1976 = vmatprep.mubr.bf16.mxu0 0
      %1977 = vmatmul.mubr.bf16.gmra.mrb[0].mxu0 %v1915
      %v1978 = vpop.f32.mrb[0].mxu0
      %v1979 = vadd.f32 0.0, %v1978
      %v1980 = vpop.f32.mrb[0].mxu0
      %v1981 = vpop.f32.mrb[0].mxu0
      %v1982 = vadd.f32 0.0, %v1981
      %v1983 = vpop.f32.mrb[0].mxu0
      %1984 = vdwg.mxu0
      %v1985 = vadd.f32 %v1877, %v1955
      %v1986 = vadd.f32 %v1878, %v1958
      %v1987 = vadd.f32 %v1879, %v1963
      %v1988 = vadd.f32 %v1880, %v1966
      %v1989 = vadd.f32 %v1881, %v1971
      %v1990 = vadd.f32 %v1882, %v1974
      %v1991 = vadd.f32 %v1883, %v1979
      %v1992 = vadd.f32 %v1884, %v1982
      %v1994 = vshrl.u32 %v1419, 16
      %v1996 = vrot.slane %v1994, 4
      %v1997 = vshll.u32 %v1419, 16
      %v1999 = vrot.slane %v1997, 5
      %v2000 = vor.u32 %v1996, %v1999
      %v2001 = vrot.slane %v2000, 4
      %v2003 = vshll.u32 %v1420, 16
      %v2005 = vrot.slane %v2003, 5
      %v2006 = vsel %vm614, %v2001, %v2005
      %v2007 = vshrl.u32 %v1420, 16
      %v2009 = vrot.slane %v2007, 4
      %v2010 = vor.u32 %v2009, %v2005
      %v2011 = vrot.slane %v2010, 4
      %v2013 = vshll.u32 %v1421, 16
      %v2015 = vrot.slane %v2013, 5
      %v2016 = vsel %vm614, %v2011, %v2015
      %s2017 = scalar_lea.vmem %s3, 14
      %v2018 = vld [vmem:[%s2017] sm:$0x3]
      %v2019 = vunpack.c.l.b16 %v2006
      %v2020 = vunpack.c.l.b16 %v2016
      %v2021 = vpack.c.b16 %v2020, %v2019
      %v2023 = vsel %vm368, %v2021, 0
      %v2026 = vsel %vm381, %v2018, 0
      %2028 = vmatprep.subr.bf16.mxu0 0
      %2029 = vmatpush1.bf16.msra.mxu0 %v2026
      %2030 = vmatprep.subr.bf16.mxu0 0
      %2031 = vmatpush1.bf16.msra.mxu0 0
      %2032 = vmatprep.subr.bf16.mxu0 0
      %2033 = vmatpush1.bf16.msra.mxu0 0
      %2034 = vmatprep.subr.bf16.mxu0 0
      %2035 = vmatpush1.bf16.msra.mxu0 0
      %2036 = vmatprep.subr.bf16.mxu0 0
      %2037 = vmatpush1.bf16.msra.mxu0 0
      %2038 = vmatprep.subr.bf16.mxu0 0
      %2039 = vmatpush1.bf16.msra.mxu0 0
      %2040 = vmatprep.subr.bf16.mxu0 0
      %2041 = vmatpush1.bf16.msra.mxu0 0
      %2042 = vmatprep.subr.bf16.mxu0 0
      %2043 = vmatpush1.bf16.msra.mxu0 0
      %2044 = vmatprep.subr.bf16.mxu0 0
      %2045 = vmatpush1.bf16.msra.mxu0 0
      %2046 = vmatprep.subr.bf16.mxu0 0
      %2047 = vmatpush1.bf16.msra.mxu0 0
      %2048 = vmatprep.subr.bf16.mxu0 0
      %2049 = vmatpush1.bf16.msra.mxu0 0
      %2050 = vmatprep.subr.bf16.mxu0 0
      %2051 = vmatpush1.bf16.msra.mxu0 0
      %2052 = vmatprep.subr.bf16.mxu0 0
      %2053 = vmatpush1.bf16.msra.mxu0 0
      %2054 = vmatprep.subr.bf16.mxu0 0
      %2055 = vmatpush1.bf16.msra.mxu0 0
      %2056 = vmatprep.subr.bf16.mxu0 0
      %2057 = vmatpush1.bf16.msra.mxu0 0
      %2058 = vmatprep.subr.bf16.mxu0 0
      %2059 = vmatpush1.bf16.msra.mxu0 0
      %2060 = vmatprep.mubr.bf16.mxu0 0
      %2061 = vmatmul.mubr.bf16.gmra.mrb[0].mxu0 %v1804
      %v2062 = vpop.f32.mrb[0].mxu0
      %v2063 = vadd.f32 0.0, %v2062
      %v2064 = vpop.f32.mrb[0].mxu0
      %v2065 = vpop.f32.mrb[0].mxu0
      %v2066 = vadd.f32 0.0, %v2065
      %v2067 = vpop.f32.mrb[0].mxu0
      %2068 = vmatprep.mubr.bf16.mxu0 0
      %2069 = vmatmul.mubr.bf16.gmra.mrb[0].mxu0 %v1807
      %v2070 = vpop.f32.mrb[0].mxu0
      %v2071 = vadd.f32 0.0, %v2070
      %v2072 = vpop.f32.mrb[0].mxu0
      %v2073 = vpop.f32.mrb[0].mxu0
      %v2074 = vadd.f32 0.0, %v2073
      %v2075 = vpop.f32.mrb[0].mxu0
      %2076 = vmatprep.mubr.bf16.mxu0 0
      %2077 = vmatmul.mubr.bf16.gmra.mrb[0].mxu0 %v1915
      %v2078 = vpop.f32.mrb[0].mxu0
      %v2079 = vadd.f32 0.0, %v2078
      %v2080 = vpop.f32.mrb[0].mxu0
      %v2081 = vpop.f32.mrb[0].mxu0
      %v2082 = vadd.f32 0.0, %v2081
      %v2083 = vpop.f32.mrb[0].mxu0
      %2084 = vmatprep.mubr.bf16.mxu0 0
      %2085 = vmatmul.mubr.bf16.gmra.mrb[0].mxu0 %v2023
      %v2086 = vpop.f32.mrb[0].mxu0
      %v2087 = vadd.f32 0.0, %v2086
      %v2088 = vpop.f32.mrb[0].mxu0
      %v2089 = vpop.f32.mrb[0].mxu0
      %v2090 = vadd.f32 0.0, %v2089
      %v2091 = vpop.f32.mrb[0].mxu0
      %2092 = vdwg.mxu0
      %v2093 = vadd.f32 %v1985, %v2063
      %v2094 = vadd.f32 %v1986, %v2066
      %v2095 = vadd.f32 %v1987, %v2071
      %v2096 = vadd.f32 %v1988, %v2074
      %v2097 = vadd.f32 %v1989, %v2079
      %v2098 = vadd.f32 %v1990, %v2082
      %v2099 = vadd.f32 %v1991, %v2087
      %v2100 = vadd.f32 %v1992, %v2090
      %v2105 = vrot.slane %v1404, 5
      %v2106 = vrot.slane %v2105, 4
      %v2107 = vrot.slane %v1405, 5
      %v2108 = vsel %vm1035, %v2106, %v2107
      %v2109 = vrot.slane %v2107, 4
      %v2110 = vrot.slane %v1406, 5
      %v2111 = vsel %vm1035, %v2109, %v2110
      %v2112 = vrot.slane %v1407, 5
      %v2113 = vrot.slane %v2112, 4
      %v2114 = vrot.slane %v1408, 5
      %v2115 = vsel %vm1035, %v2113, %v2114
      %v2116 = vrot.slane %v2114, 4
      %v2117 = vrot.slane %v1409, 5
      %v2118 = vsel %vm1035, %v2116, %v2117
      %v2119 = vrot.slane %v1410, 5
      %v2120 = vrot.slane %v2119, 4
      %v2121 = vrot.slane %v1411, 5
      %v2122 = vsel %vm1035, %v2120, %v2121
      %v2123 = vrot.slane %v2121, 4
      %v2124 = vrot.slane %v1412, 5
      %v2125 = vsel %vm1035, %v2123, %v2124
      %v2126 = vrot.slane %v1413, 5
      %v2127 = vrot.slane %v2126, 4
      %v2128 = vrot.slane %v1414, 5
      %v2129 = vsel %vm1035, %v2127, %v2128
      %v2130 = vrot.slane %v2128, 4
      %v2131 = vrot.slane %v1415, 5
      %v2132 = vsel %vm1035, %v2130, %v2131
      %s2133 = scalar_lea.vmem %s3, 4
      %v2134 = vld [vmem:[%s2133] sm:$0x3]
      %v2135 = vunpack.c.l.b16 %v2108
      %v2136 = vunpack.c.l.b16 %v2111
      %v2137 = vunpack.c.l.b16 %v2115
      %v2138 = vunpack.c.l.b16 %v2118
      %v2139 = vunpack.c.l.b16 %v2122
      %v2140 = vunpack.c.l.b16 %v2125
      %v2141 = vunpack.c.l.b16 %v2129
      %v2142 = vunpack.c.l.b16 %v2132
      %v2143 = vpack.c.b16 %v2136, %v2135
      %v2144 = vpack.c.b16 %v2138, %v2137
      %v2145 = vpack.c.b16 %v2140, %v2139
      %v2146 = vpack.c.b16 %v2142, %v2141
      %v2148 = vsel %vm368, %v2143, 0
      %v2151 = vsel %vm368, %v2144, 0
      %v2154 = vsel %vm368, %v2145, 0
      %v2157 = vsel %vm368, %v2146, 0
      %v2160 = vsel %vm381, %v2134, 0
      %2162 = vmatprep.subr.bf16.mxu0 0
      %2163 = vmatpush1.bf16.msra.mxu0 %v2160
      %2164 = vmatprep.subr.bf16.mxu0 0
      %2165 = vmatpush1.bf16.msra.mxu0 0
      %2166 = vmatprep.subr.bf16.mxu0 0
      %2167 = vmatpush1.bf16.msra.mxu0 0
      %2168 = vmatprep.subr.bf16.mxu0 0
      %2169 = vmatpush1.bf16.msra.mxu0 0
      %2170 = vmatprep.subr.bf16.mxu0 0
      %2171 = vmatpush1.bf16.msra.mxu0 0
      %2172 = vmatprep.subr.bf16.mxu0 0
      %2173 = vmatpush1.bf16.msra.mxu0 0
      %2174 = vmatprep.subr.bf16.mxu0 0
      %2175 = vmatpush1.bf16.msra.mxu0 0
      %2176 = vmatprep.subr.bf16.mxu0 0
      %2177 = vmatpush1.bf16.msra.mxu0 0
      %2178 = vmatprep.subr.bf16.mxu0 0
      %2179 = vmatpush1.bf16.msra.mxu0 0
      %2180 = vmatprep.subr.bf16.mxu0 0
      %2181 = vmatpush1.bf16.msra.mxu0 0
      %2182 = vmatprep.subr.bf16.mxu0 0
      %2183 = vmatpush1.bf16.msra.mxu0 0
      %2184 = vmatprep.subr.bf16.mxu0 0
      %2185 = vmatpush1.bf16.msra.mxu0 0
      %2186 = vmatprep.subr.bf16.mxu0 0
      %2187 = vmatpush1.bf16.msra.mxu0 0
      %2188 = vmatprep.subr.bf16.mxu0 0
      %2189 = vmatpush1.bf16.msra.mxu0 0
      %2190 = vmatprep.subr.bf16.mxu0 0
      %2191 = vmatpush1.bf16.msra.mxu0 0
      %2192 = vmatprep.subr.bf16.mxu0 0
      %2193 = vmatpush1.bf16.msra.mxu0 0
      %2194 = vmatprep.mubr.bf16.mxu0 0
      %2195 = vmatmul.mubr.bf16.gmra.mrb[0].mxu0 %v2148
      %v2196 = vpop.f32.mrb[0].mxu0
      %v2197 = vadd.f32 0.0, %v2196
      %v2198 = vpop.f32.mrb[0].mxu0
      %v2199 = vpop.f32.mrb[0].mxu0
      %v2200 = vadd.f32 0.0, %v2199
      %v2201 = vpop.f32.mrb[0].mxu0
      %2202 = vmatprep.mubr.bf16.mxu0 0
      %2203 = vmatmul.mubr.bf16.gmra.mrb[0].mxu0 %v2151
      %v2204 = vpop.f32.mrb[0].mxu0
      %v2205 = vadd.f32 0.0, %v2204
      %v2206 = vpop.f32.mrb[0].mxu0
      %v2207 = vpop.f32.mrb[0].mxu0
      %v2208 = vadd.f32 0.0, %v2207
      %v2209 = vpop.f32.mrb[0].mxu0
      %2210 = vmatprep.mubr.bf16.mxu0 0
      %2211 = vmatmul.mubr.bf16.gmra.mrb[0].mxu0 %v2154
      %v2212 = vpop.f32.mrb[0].mxu0
      %v2213 = vadd.f32 0.0, %v2212
      %v2214 = vpop.f32.mrb[0].mxu0
      %v2215 = vpop.f32.mrb[0].mxu0
      %v2216 = vadd.f32 0.0, %v2215
      %v2217 = vpop.f32.mrb[0].mxu0
      %2218 = vmatprep.mubr.bf16.mxu0 0
      %2219 = vmatmul.mubr.bf16.gmra.mrb[0].mxu0 %v2157
      %v2220 = vpop.f32.mrb[0].mxu0
      %v2221 = vadd.f32 0.0, %v2220
      %v2222 = vpop.f32.mrb[0].mxu0
      %v2223 = vpop.f32.mrb[0].mxu0
      %v2224 = vadd.f32 0.0, %v2223
      %v2225 = vpop.f32.mrb[0].mxu0
      %2226 = vdwg.mxu0
      %v2227 = vadd.f32 %v2093, %v2197
      %v2228 = vadd.f32 %v2094, %v2200
      %v2229 = vadd.f32 %v2095, %v2205
      %v2230 = vadd.f32 %v2096, %v2208
      %v2231 = vadd.f32 %v2097, %v2213
      %v2232 = vadd.f32 %v2098, %v2216
      %v2233 = vadd.f32 %v2099, %v2221
      %v2234 = vadd.f32 %v2100, %v2224
      %v2236 = vrot.slane %v1416, 5
      %v2237 = vrot.slane %v2236, 4
      %v2238 = vrot.slane %v1417, 5
      %v2239 = vsel %vm1035, %v2237, %v2238
      %v2240 = vrot.slane %v2238, 4
      %v2241 = vrot.slane %v1418, 5
      %v2242 = vsel %vm1035, %v2240, %v2241
      %s2243 = scalar_lea.vmem %s3, 10
      %v2244 = vld [vmem:[%s2243] sm:$0x3]
      %v2245 = vunpack.c.l.b16 %v2239
      %v2246 = vunpack.c.l.b16 %v2242
      %v2247 = vpack.c.b16 %v2246, %v2245
      %v2249 = vsel %vm368, %v2247, 0
      %v2252 = vsel %vm381, %v2244, 0
      %2254 = vmatprep.subr.bf16.mxu0 0
      %2255 = vmatpush1.bf16.msra.mxu0 %v2252
      %2256 = vmatprep.subr.bf16.mxu0 0
      %2257 = vmatpush1.bf16.msra.mxu0 0
      %2258 = vmatprep.subr.bf16.mxu0 0
      %2259 = vmatpush1.bf16.msra.mxu0 0
      %2260 = vmatprep.subr.bf16.mxu0 0
      %2261 = vmatpush1.bf16.msra.mxu0 0
      %2262 = vmatprep.subr.bf16.mxu0 0
      %2263 = vmatpush1.bf16.msra.mxu0 0
      %2264 = vmatprep.subr.bf16.mxu0 0
      %2265 = vmatpush1.bf16.msra.mxu0 0
      %2266 = vmatprep.subr.bf16.mxu0 0
      %2267 = vmatpush1.bf16.msra.mxu0 0
      %2268 = vmatprep.subr.bf16.mxu0 0
      %2269 = vmatpush1.bf16.msra.mxu0 0
      %2270 = vmatprep.subr.bf16.mxu0 0
      %2271 = vmatpush1.bf16.msra.mxu0 0
      %2272 = vmatprep.subr.bf16.mxu0 0
      %2273 = vmatpush1.bf16.msra.mxu0 0
      %2274 = vmatprep.subr.bf16.mxu0 0
      %2275 = vmatpush1.bf16.msra.mxu0 0
      %2276 = vmatprep.subr.bf16.mxu0 0
      %2277 = vmatpush1.bf16.msra.mxu0 0
      %2278 = vmatprep.subr.bf16.mxu0 0
      %2279 = vmatpush1.bf16.msra.mxu0 0
      %2280 = vmatprep.subr.bf16.mxu0 0
      %2281 = vmatpush1.bf16.msra.mxu0 0
      %2282 = vmatprep.subr.bf16.mxu0 0
      %2283 = vmatpush1.bf16.msra.mxu0 0
      %2284 = vmatprep.subr.bf16.mxu0 0
      %2285 = vmatpush1.bf16.msra.mxu0 0
      %2286 = vmatprep.mubr.bf16.mxu0 0
      %2287 = vmatmul.mubr.bf16.gmra.mrb[0].mxu0 %v2151
      %v2288 = vpop.f32.mrb[0].mxu0
      %v2289 = vadd.f32 0.0, %v2288
      %v2290 = vpop.f32.mrb[0].mxu0
      %v2291 = vpop.f32.mrb[0].mxu0
      %v2292 = vadd.f32 0.0, %v2291
      %v2293 = vpop.f32.mrb[0].mxu0
      %2294 = vmatprep.mubr.bf16.mxu0 0
      %2295 = vmatmul.mubr.bf16.gmra.mrb[0].mxu0 %v2154
      %v2296 = vpop.f32.mrb[0].mxu0
      %v2297 = vadd.f32 0.0, %v2296
      %v2298 = vpop.f32.mrb[0].mxu0
      %v2299 = vpop.f32.mrb[0].mxu0
      %v2300 = vadd.f32 0.0, %v2299
      %v2301 = vpop.f32.mrb[0].mxu0
      %2302 = vmatprep.mubr.bf16.mxu0 0
      %2303 = vmatmul.mubr.bf16.gmra.mrb[0].mxu0 %v2157
      %v2304 = vpop.f32.mrb[0].mxu0
      %v2305 = vadd.f32 0.0, %v2304
      %v2306 = vpop.f32.mrb[0].mxu0
      %v2307 = vpop.f32.mrb[0].mxu0
      %v2308 = vadd.f32 0.0, %v2307
      %v2309 = vpop.f32.mrb[0].mxu0
      %2310 = vmatprep.mubr.bf16.mxu0 0
      %2311 = vmatmul.mubr.bf16.gmra.mrb[0].mxu0 %v2249
      %v2312 = vpop.f32.mrb[0].mxu0
      %v2313 = vadd.f32 0.0, %v2312
      %v2314 = vpop.f32.mrb[0].mxu0
      %v2315 = vpop.f32.mrb[0].mxu0
      %v2316 = vadd.f32 0.0, %v2315
      %v2317 = vpop.f32.mrb[0].mxu0
      %2318 = vdwg.mxu0
      %v2319 = vadd.f32 %v2227, %v2289
      %v2320 = vadd.f32 %v2228, %v2292
      %v2321 = vadd.f32 %v2229, %v2297
      %v2322 = vadd.f32 %v2230, %v2300
      %v2323 = vadd.f32 %v2231, %v2305
      %v2324 = vadd.f32 %v2232, %v2308
      %v2325 = vadd.f32 %v2233, %v2313
      %v2326 = vadd.f32 %v2234, %v2316
      %v2328 = vrot.slane %v1419, 5
      %v2329 = vrot.slane %v2328, 4
      %v2330 = vrot.slane %v1420, 5
      %v2331 = vsel %vm1035, %v2329, %v2330
      %v2332 = vrot.slane %v2330, 4
      %v2333 = vrot.slane %v1421, 5
      %v2334 = vsel %vm1035, %v2332, %v2333
      %s2335 = scalar_lea.vmem %s3, 16
      %v2336 = vld [vmem:[%s2335] sm:$0x3]
      %v2337 = vunpack.c.l.b16 %v2331
      %v2338 = vunpack.c.l.b16 %v2334
      %v2339 = vpack.c.b16 %v2338, %v2337
      %v2341 = vsel %vm368, %v2339, 0
      %v2344 = vsel %vm381, %v2336, 0
      %2346 = vmatprep.subr.bf16.mxu0 0
      %2347 = vmatpush1.bf16.msra.mxu0 %v2344
      %2348 = vmatprep.subr.bf16.mxu0 0
      %2349 = vmatpush1.bf16.msra.mxu0 0
      %2350 = vmatprep.subr.bf16.mxu0 0
      %2351 = vmatpush1.bf16.msra.mxu0 0
      %2352 = vmatprep.subr.bf16.mxu0 0
      %2353 = vmatpush1.bf16.msra.mxu0 0
      %2354 = vmatprep.subr.bf16.mxu0 0
      %2355 = vmatpush1.bf16.msra.mxu0 0
      %2356 = vmatprep.subr.bf16.mxu0 0
      %2357 = vmatpush1.bf16.msra.mxu0 0
      %2358 = vmatprep.subr.bf16.mxu0 0
      %2359 = vmatpush1.bf16.msra.mxu0 0
      %2360 = vmatprep.subr.bf16.mxu0 0
      %2361 = vmatpush1.bf16.msra.mxu0 0
      %2362 = vmatprep.subr.bf16.mxu0 0
      %2363 = vmatpush1.bf16.msra.mxu0 0
      %2364 = vmatprep.subr.bf16.mxu0 0
      %2365 = vmatpush1.bf16.msra.mxu0 0
      %2366 = vmatprep.subr.bf16.mxu0 0
      %2367 = vmatpush1.bf16.msra.mxu0 0
      %2368 = vmatprep.subr.bf16.mxu0 0
      %2369 = vmatpush1.bf16.msra.mxu0 0
      %2370 = vmatprep.subr.bf16.mxu0 0
      %2371 = vmatpush1.bf16.msra.mxu0 0
      %2372 = vmatprep.subr.bf16.mxu0 0
      %2373 = vmatpush1.bf16.msra.mxu0 0
      %2374 = vmatprep.subr.bf16.mxu0 0
      %2375 = vmatpush1.bf16.msra.mxu0 0
      %2376 = vmatprep.subr.bf16.mxu0 0
      %2377 = vmatpush1.bf16.msra.mxu0 0
      %2378 = vmatprep.mubr.bf16.mxu0 0
      %2379 = vmatmul.mubr.bf16.gmra.mrb[0].mxu0 %v2154
      %v2380 = vpop.f32.mrb[0].mxu0
      %v2381 = vadd.f32 0.0, %v2380
      %v2382 = vpop.f32.mrb[0].mxu0
      %v2383 = vpop.f32.mrb[0].mxu0
      %v2384 = vadd.f32 0.0, %v2383
      %v2385 = vpop.f32.mrb[0].mxu0
      %2386 = vmatprep.mubr.bf16.mxu0 0
      %2387 = vmatmul.mubr.bf16.gmra.mrb[0].mxu0 %v2157
      %v2388 = vpop.f32.mrb[0].mxu0
      %v2389 = vadd.f32 0.0, %v2388
      %v2390 = vpop.f32.mrb[0].mxu0
      %v2391 = vpop.f32.mrb[0].mxu0
      %v2392 = vadd.f32 0.0, %v2391
      %v2393 = vpop.f32.mrb[0].mxu0
      %2394 = vmatprep.mubr.bf16.mxu0 0
      %2395 = vmatmul.mubr.bf16.gmra.mrb[0].mxu0 %v2249
      %v2396 = vpop.f32.mrb[0].mxu0
      %v2397 = vadd.f32 0.0, %v2396
      %v2398 = vpop.f32.mrb[0].mxu0
      %v2399 = vpop.f32.mrb[0].mxu0
      %v2400 = vadd.f32 0.0, %v2399
      %v2401 = vpop.f32.mrb[0].mxu0
      %2402 = vmatprep.mubr.bf16.mxu0 0
      %2403 = vmatmul.mubr.bf16.gmra.mrb[0].mxu0 %v2341
      %v2404 = vpop.f32.mrb[0].mxu0
      %v2405 = vadd.f32 0.0, %v2404
      %v2406 = vpop.f32.mrb[0].mxu0
      %v2407 = vpop.f32.mrb[0].mxu0
      %v2408 = vadd.f32 0.0, %v2407
      %v2409 = vpop.f32.mrb[0].mxu0
      %2410 = vdwg.mxu0
      %v2411 = vadd.f32 %v2319, %v2381
      %v2412 = vadd.f32 %v2320, %v2384
      %v2413 = vadd.f32 %v2321, %v2389
      %v2414 = vadd.f32 %v2322, %v2392
      %v2415 = vadd.f32 %v2323, %v2397
      %v2416 = vadd.f32 %v2324, %v2400
      %v2417 = vadd.f32 %v2325, %v2405
      %v2418 = vadd.f32 %v2326, %v2408
      %v2419 = vld [vmem:[%s6] sm:$0x1]
      %v2421 = vlaneseq
      %v2422 = vshrl.u32 %v2421, 7
      %v2423 = vsub.s32 0, %v2422
      %v2424 = vrot.slane %v2419, %v2423
      %v2426 = vmul.f32 %v1396, %v2424
      %v2427 = vmul.f32 %v1397, %v2424
      %v2428 = vmul.f32 %v1398, %v2424
      %v2429 = vmul.f32 %v1399, %v2424
      %v2430 = vmul.f32 %v1400, %v2424
      %v2431 = vmul.f32 %v1401, %v2424
      %v2432 = vmul.f32 %v1402, %v2424
      %v2433 = vmul.f32 %v1403, %v2424
      %v2434 = vld [vmem:[%s7] sm:$0x1]
      %v2436 = vlaneseq
      %v2437 = vshrl.u32 %v2436, 7
      %v2438 = vsub.s32 0, %v2437
      %v2439 = vrot.slane %v2434, %v2438
      %v2441 = vadd.f32 %v2426, %v2439
      %v2442 = vadd.f32 %v2427, %v2439
      %v2443 = vadd.f32 %v2428, %v2439
      %v2444 = vadd.f32 %v2429, %v2439
      %v2445 = vadd.f32 %v2430, %v2439
      %v2446 = vadd.f32 %v2431, %v2439
      %v2447 = vadd.f32 %v2432, %v2439
      %v2448 = vadd.f32 %v2433, %v2439
      %v2449 = vadd.f32 %v2441, %v2411
      %v2450 = vadd.f32 %v2442, %v2412
      %v2451 = vadd.f32 %v2443, %v2413
      %v2452 = vadd.f32 %v2444, %v2414
      %v2453 = vadd.f32 %v2445, %v2415
      %v2454 = vadd.f32 %v2446, %v2416
      %v2455 = vadd.f32 %v2447, %v2417
      %v2456 = vadd.f32 %v2448, %v2418
      %vm2457 = vcmask 261120
      %2458 = vst.msk [vmem:[%s325] sm:$0xff] %vm2457, %v2449
      %2459 = vst.msk [vmem:[%s325 + $0x8] sm:$0xff] %vm2457, %v2450
      %2460 = vst.msk [vmem:[%s325 + $0x10] sm:$0xff] %vm2457, %v2451
      %2461 = vst.msk [vmem:[%s325 + $0x18] sm:$0xff] %vm2457, %v2452
      %2462 = vst.msk [vmem:[%s325 + $0x20] sm:$0xff] %vm2457, %v2453
      %2463 = vst.msk [vmem:[%s325 + $0x28] sm:$0xff] %vm2457, %v2454
      %2464 = vst.msk [vmem:[%s325 + $0x30] sm:$0xff] %vm2457, %v2455
      %2465 = vst.msk [vmem:[%s325 + $0x38] sm:$0xff] %vm2457, %v2456
      %p2466 = scmp.lt.s32.totalorder %s19, 7
      %s2467 = scalar_select %p2466, %s19, 7
      %s2468 = smul.addr %s2467, 8
      %s2469 = smul.addr %s2468, 8
      %s2470 = scalar_lea.vmem %s8, %s2469
      // Predicated region
      $region53: #{residual_deconv_block.5} parent=51 // pred_check
        %p2471 = pneg %p215
      $region54: #{residual_deconv_block.5} parent=51 // pred_check_branch
        %2473 = sbr.rel (%p2471) target = $region56
      $region55: #{residual_deconv_block.5} parent=51 // pred_region
        _
      $region56: #{residual_deconv_block.5} parent=51 // pred_fallthru
        _
    $region52: #{residual_deconv_block.5} parent=5 // pred_fallthru
      _
    %p2474 = scmp.le.s32.totalorder 2, %s14
    // Predicated region
    $region57: #{residual_deconv_block.5} parent=5 // pred_check
      %p2475 = pneg %p2474
    $region58: #{residual_deconv_block.5} parent=5 // pred_check_branch
      %2477 = sbr.rel (%p2475) target = $region60
    $region59: #{residual_deconv_block.5} parent=5 // pred_region
      %s2478 = ssub.s32 %s14, 2
      // Predicated region
      $region61: #{residual_deconv_block.5} parent=59 // pred_check
        %p2479 = pneg %p221
      $region62: #{residual_deconv_block.5} parent=59 // pred_check_branch
        %2481 = sbr.rel (%p2479) target = $region64
      $region63: #{residual_deconv_block.5} parent=59 // pred_region
        %p2482 = scmp.lt.s32.totalorder %s20, 7
        %s2483 = scalar_select %p2482, %s20, 7
        %s2484 = smul.addr %s2483, 8
        %s2485 = smul.addr %s2484, 8
        %s2486 = scalar_lea.vmem %s8, %s2485
      $region64: #{residual_deconv_block.5} parent=59 // pred_fallthru
        _
    $region60: #{residual_deconv_block.5} parent=5 // pred_fallthru
      _
  $region6: #{residual_deconv_block.5} parent=0 // loop_footer
    %s18 = sadd.s32 1, %s14
  $region7: #{residual_deconv_block.5} parent=0 // loop_footer_branch
    %13 = sbr.rel target = $region3
  $region8: #{residual_deconv_block.5} parent=0 // loop_exit
    _

</llo_original>
